<compile_context>
chip_gen: v7x
topology: tpu7x:2x2x1
jax: 0.10.0
libtpu: 0.0.40
codegen_flags: <defaults>
</compile_context>

<pallas_src>
import jax
import jax.numpy as jnp
from jax import lax
from jax.experimental import pallas as pl
from jax.experimental.pallas import tpu as pltpu

# Small, shape-consistent stand-ins for the repo hyperparameters.
MEL_N_CHANNELS = 16        # mel_n_channels
MODEL_HIDDEN_SIZE = 32     # model_hidden_size
MODEL_NUM_LAYERS = 2       # model_num_layers
MODEL_EMBEDDING_SIZE = 32  # model_embedding_size


def _largest_divisor(total, target, align=1):
    """Largest divisor of `total` that is <= target and a multiple of `align`
    (falls back to `total`, i.e. a full-extent block, if none exists)."""
    if total <= target:
        return total
    for c in range(target, 0, -1):
        if total % c == 0 and c % align == 0:
            return c
    return total


# ------------------------------ fused kernel ---------------------------------
def _make_fused_kernel(num_layers, hidden, tc):
    H = hidden

    def kernel(*refs):
        # Unpack refs (order fixed by pallas_call: inputs, outputs, scratch).
        it = iter(refs)
        x_ref = next(it)                                            # (Tc, Bc, D_in) time-major chunk
        layers = [(next(it), next(it), next(it)) for _ in range(num_layers)]  # (w_ih, w_hh, b)
        lin_w_ref = next(it)                                        # (H, E)
        lin_b_ref = next(it)                                        # (1, E)
        out_ref = next(it)                                          # (Bc, E)
        gates_ref = next(it)                                        # (Tc, Bc, 4H) scratch
        act_ref = next(it) if num_layers > 1 else None              # (Tc, Bc, H) scratch
        hc = [(next(it), next(it)) for _ in range(num_layers)]      # per-layer (h, c) state

        t_chunk = pl.program_id(1)

        # hidden_init=None -> zeros. Time is the innermost grid axis, so this
        # re-initializes correctly at the first chunk of every batch block.
        @pl.when(t_chunk == 0)
        def _():
            for h_ref, c_ref in hc:
                h_ref[...] = jnp.zeros_like(h_ref)
                c_ref[...] = jnp.zeros_like(c_ref)

        h_top = None
        for l in range(num_layers):
            w_ih_ref, w_hh_ref, b_ref = layers[l]
            h_ref, c_ref = hc[l]
            last_layer = (l == num_layers - 1)

            inp = x_ref[...] if l == 0 else act_ref[...]            # (Tc, Bc, D_in)
            # Input projection + bias for the WHOLE chunk in one MXU matmul
            # (M = Tc*Bc), hoisted off the serial critical path. Bias is added
            # once here, not per timestep.
            gates_ref[...] = (
                jnp.einsum("tbd,dg->tbg", inp, w_ih_ref[...],
                           preferred_element_type=jnp.float32)
                + b_ref[...])

            w_hh = w_hh_ref[...]

            def step(t, carry, _w_hh=w_hh, _last=last_layer):
                h, c = carry
                # PyTorch gate order: i, f, g, o
                g = gates_ref[t] + jnp.dot(h, _w_hh,
                                           preferred_element_type=jnp.float32)
                i = jax.nn.sigmoid(g[:, 0:H])
                f = jax.nn.sigmoid(g[:, H:2 * H])
                gg = jnp.tanh(g[:, 2 * H:3 * H])
                o = jax.nn.sigmoid(g[:, 3 * H:4 * H])
                c = f * c + i * gg
                h = o * jnp.tanh(c)
                if not _last:
                    act_ref[t] = h          # layer output never leaves VMEM
                return h, c

            h_fin, c_fin = lax.fori_loop(0, tc, step,
                                         (h_ref[...], c_ref[...]),
                                         unroll=min(tc, 8))
            h_ref[...] = h_fin
            c_ref[...] = c_fin
            h_top = h_fin

        # Linear -> ReLU -> L2 normalize on the final top-layer hidden state.
        # Only the last time chunk writes the (Bc, E) embedding to the output.
        @pl.when(t_chunk == pl.num_programs(1) - 1)
        def _():
            y = jnp.dot(h_top, lin_w_ref[...],
                        preferred_element_type=jnp.float32) + lin_b_ref[...]
            y = jnp.maximum(y, 0.0)                                   # ReLU
            norm = jnp.sqrt(jnp.sum(y * y, axis=1, keepdims=True))    # torch.norm(dim=1)
            out_ref[...] = y / (norm + 1e-5)   # eps added to the norm (PyTorch semantics)

    return kernel


# --------------------------------- wrapper ------------------------------------
def speaker_encoder_forward(utterances, params, *, time_chunk=64, batch_block=64):
    """utterances: (B, T, mel_n_channels), batch_first like the PyTorch module."""
    lstm = params["lstm"]
    L = len(lstm)
    H = lstm[0][1].shape[0]
    E = params["lin_w"].shape[1]

    # Time-major so every per-timestep access inside the kernel is a cheap
    # leading-axis index.
    x = jnp.transpose(jnp.asarray(utterances, jnp.float32), (1, 0, 2))  # (T, B, D)
    T, B, D = x.shape

    Tc = _largest_divisor(T, time_chunk)             # leading block dim: no alignment needed
    Bc = _largest_divisor(B, batch_block, align=8)   # sublane block dim: 8-aligned or full
    grid = (B // Bc, T // Tc)

    in_specs = [pl.BlockSpec((Tc, Bc, D), lambda b, t: (t, b, 0))]
    flat_weights = []
    for (w_ih, w_hh, bias) in lstm:
        d_in = w_ih.shape[0]
        in_specs += [
            pl.BlockSpec((d_in, 4 * H), lambda b, t: (0, 0)),
            pl.BlockSpec((H, 4 * H), lambda b, t: (0, 0)),
            pl.BlockSpec((1, 4 * H), lambda b, t: (0, 0)),
        ]
        flat_weights += [w_ih, w_hh, bias]
    in_specs += [
        pl.BlockSpec((H, E), lambda b, t: (0, 0)),
        pl.BlockSpec((1, E), lambda b, t: (0, 0)),
    ]

    scratch = [pltpu.VMEM((Tc, Bc, 4 * H), jnp.float32)]       # precomputed gates (reused per layer)
    if L > 1:
        scratch.append(pltpu.VMEM((Tc, Bc, H), jnp.float32))   # inter-layer activation chunk
    for _ in range(L):
        scratch += [pltpu.VMEM((Bc, H), jnp.float32),          # h state (persists across chunks)
                    pltpu.VMEM((Bc, H), jnp.float32)]          # c state

    return pl.pallas_call(
        _make_fused_kernel(L, H, Tc),
        out_shape=jax.ShapeDtypeStruct((B, E), jnp.float32),
        grid_spec=pltpu.PrefetchScalarGridSpec(
            num_scalar_prefetch=0,
            grid=grid,
            in_specs=in_specs,
            out_specs=pl.BlockSpec((Bc, E), lambda b, t: (b, 0)),
            scratch_shapes=scratch,
        ),
        compiler_params=pltpu.CompilerParams(
            # Batch blocks are independent (megacore-parallel on v7x);
            # the time recurrence is sequential.
            dimension_semantics=("parallel", "arbitrary"),
            vmem_limit_bytes=32 * 1024 * 1024,
        ),
    )(x, *flat_weights, params["lin_w"], params["lin_b"])


# ----------------------------- params / reference -----------------------------
def init_params(key):
    params = {"lstm": []}
    k = 1.0 / float(jnp.sqrt(jnp.float32(MODEL_HIDDEN_SIZE)))
    keys = jax.random.split(key, MODEL_NUM_LAYERS * 4 + 2)
    idx = 0
    d_in = MEL_N_CHANNELS
    for _ in range(MODEL_NUM_LAYERS):
        w_ih = jax.random.uniform(keys[idx], (4 * MODEL_HIDDEN_SIZE, d_in),
                                  minval=-k, maxval=k, dtype=jnp.float32); idx += 1
        w_hh = jax.random.uniform(keys[idx], (4 * MODEL_HIDDEN_SIZE, MODEL_HIDDEN_SIZE),
                                  minval=-k, maxval=k, dtype=jnp.float32); idx += 1
        b_ih = jax.random.uniform(keys[idx], (4 * MODEL_HIDDEN_SIZE,),
                                  minval=-k, maxval=k, dtype=jnp.float32); idx += 1
        b_hh = jax.random.uniform(keys[idx], (4 * MODEL_HIDDEN_SIZE,),
                                  minval=-k, maxval=k, dtype=jnp.float32); idx += 1
        params["lstm"].append((w_ih.T, w_hh.T, (b_ih + b_hh).reshape(1, -1)))
        d_in = MODEL_HIDDEN_SIZE
    lin_w = jax.random.uniform(keys[idx], (MODEL_EMBEDDING_SIZE, MODEL_HIDDEN_SIZE),
                               minval=-k, maxval=k, dtype=jnp.float32); idx += 1
    lin_b = jax.random.uniform(keys[idx], (MODEL_EMBEDDING_SIZE,),
                               minval=-k, maxval=k, dtype=jnp.float32)
    params["lin_w"] = lin_w.T
    params["lin_b"] = lin_b.reshape(1, -1)
    return params


def reference_forward(utterances, params):
    """Pure-JAX reference (lax.scan LSTM) matching PyTorch semantics."""
    x = jnp.transpose(utterances, (1, 0, 2)).astype(jnp.float32)
    B = x.shape[1]
    for (w_ih, w_hh, b) in params["lstm"]:
        H = w_hh.shape[0]

        def step(carry, xt, w_ih=w_ih, w_hh=w_hh, b=b, H=H):
            h, c = carry
            gates = xt @ w_ih + h @ w_hh + b[0]
            i = jax.nn.sigmoid(gates[:, 0:H])
            f = jax.nn.sigmoid(gates[:, H:2 * H])
            g = jnp.tanh(gates[:, 2 * H:3 * H])
            o = jax.nn.sigmoid(gates[:, 3 * H:4 * H])
            c = f * c + i * g
            h = o * jnp.tanh(c)
            return (h, c), h

        init = (jnp.zeros((B, H), jnp.float32), jnp.zeros((B, H), jnp.float32))
        _, x = lax.scan(step, init, x)
    y = jnp.maximum(x[-1] @ params["lin_w"] + params["lin_b"], 0.0)
    return y / (jnp.linalg.norm(y, axis=1, keepdims=True) + 1e-5)


if __name__ == "__main__":
    key = jax.random.PRNGKey(0)
    k_params, k_x = jax.random.split(key)

    B, T = 2, 8
    utterances = jax.random.normal(k_x, (B, T, MEL_N_CHANNELS), dtype=jnp.float32)
    params = init_params(k_params)

    embeds = jax.block_until_ready(speaker_encoder_forward(utterances, params))
    ref = jax.block_until_ready(reference_forward(utterances, params))

    assert embeds.shape == (B, MODEL_EMBEDDING_SIZE)
    assert jnp.allclose(embeds, ref, atol=2e-4, rtol=2e-4), "mismatch vs reference"
    print("KERNEL_OK")
</pallas_src>

<mosaic_0001>
module attributes {stable_mosaic.version = 11 : i64} {
  func.func @kernel(%arg0: i32, %arg1: i32, %arg2: memref<8x2x16xf32, #tpu.memory_space<vmem>>, %arg3: memref<16x128xf32, #tpu.memory_space<vmem>>, %arg4: memref<32x128xf32, #tpu.memory_space<vmem>>, %arg5: memref<1x128xf32, #tpu.memory_space<vmem>>, %arg6: memref<32x128xf32, #tpu.memory_space<vmem>>, %arg7: memref<32x128xf32, #tpu.memory_space<vmem>>, %arg8: memref<1x128xf32, #tpu.memory_space<vmem>>, %arg9: memref<32x32xf32, #tpu.memory_space<vmem>>, %arg10: memref<1x32xf32, #tpu.memory_space<vmem>>, %arg11: memref<2x32xf32, #tpu.memory_space<vmem>>, %arg12: memref<8x2x128xf32, #tpu.memory_space<vmem>>, %arg13: memref<8x2x32xf32, #tpu.memory_space<vmem>>, %arg14: memref<2x32xf32, #tpu.memory_space<vmem>>, %arg15: memref<2x32xf32, #tpu.memory_space<vmem>>, %arg16: memref<2x32xf32, #tpu.memory_space<vmem>>, %arg17: memref<2x32xf32, #tpu.memory_space<vmem>>) attributes {dimension_semantics = [#tpu.dimension_semantics<parallel>, #tpu.dimension_semantics<arbitrary>], iteration_bounds = array<i64: 1, 1>, scalar_prefetch = 0 : i64, scratch_operands = 6 : i64, tpu.core_type = #tpu.core_type<tc>, window_params = [{transform_indices = @transform_0, window_bounds = array<i64: 8, 2, 16>}, {pipeline_mode = #tpu.pipeline_mode<synchronous>, transform_indices = @transform_1, window_bounds = array<i64: 16, 128>}, {pipeline_mode = #tpu.pipeline_mode<synchronous>, transform_indices = @transform_2, window_bounds = array<i64: 32, 128>}, {pipeline_mode = #tpu.pipeline_mode<synchronous>, transform_indices = @transform_3, window_bounds = array<i64: 1, 128>}, {pipeline_mode = #tpu.pipeline_mode<synchronous>, transform_indices = @transform_4, window_bounds = array<i64: 32, 128>}, {pipeline_mode = #tpu.pipeline_mode<synchronous>, transform_indices = @transform_5, window_bounds = array<i64: 32, 128>}, {pipeline_mode = #tpu.pipeline_mode<synchronous>, transform_indices = @transform_6, window_bounds = array<i64: 1, 128>}, {pipeline_mode = #tpu.pipeline_mode<synchronous>, transform_indices = @transform_7, window_bounds = array<i64: 32, 32>}, {pipeline_mode = #tpu.pipeline_mode<synchronous>, transform_indices = @transform_8, window_bounds = array<i64: 1, 32>}, {transform_indices = @transform_9, window_bounds = array<i64: 2, 32>}]} {
    %c0_i32 = arith.constant 0 : i32
    %0 = arith.cmpi eq, %arg1, %c0_i32 : i32
    %1 = arith.extui %0 : i1 to i32
    %c0_i32_0 = arith.constant 0 : i32
    %2 = arith.cmpi ne, %1, %c0_i32_0 : i32
    scf.if %2 {
      %cst_165 = arith.constant 0.000000e+00 : f32
      %544 = vector.broadcast %cst_165 : f32 to vector<2x32xf32>
      %c0_166 = arith.constant 0 : index
      %c0_167 = arith.constant 0 : index
      %545 = vector.load %arg14[%c0_166, %c0_167] : memref<2x32xf32, #tpu.memory_space<vmem>>, vector<2x32xf32>
      tpu.vector_store %arg14[%c0_166, %c0_167], %544 {strides = array<i32>} : memref<2x32xf32, #tpu.memory_space<vmem>>, vector<2x32xf32>,
      %cst_168 = arith.constant 0.000000e+00 : f32
      %546 = vector.broadcast %cst_168 : f32 to vector<2x32xf32>
      %c0_169 = arith.constant 0 : index
      %c0_170 = arith.constant 0 : index
      %547 = vector.load %arg15[%c0_169, %c0_170] : memref<2x32xf32, #tpu.memory_space<vmem>>, vector<2x32xf32>
      tpu.vector_store %arg15[%c0_169, %c0_170], %546 {strides = array<i32>} : memref<2x32xf32, #tpu.memory_space<vmem>>, vector<2x32xf32>,
      %cst_171 = arith.constant 0.000000e+00 : f32
      %548 = vector.broadcast %cst_171 : f32 to vector<2x32xf32>
      %c0_172 = arith.constant 0 : index
      %c0_173 = arith.constant 0 : index
      %549 = vector.load %arg16[%c0_172, %c0_173] : memref<2x32xf32, #tpu.memory_space<vmem>>, vector<2x32xf32>
      tpu.vector_store %arg16[%c0_172, %c0_173], %548 {strides = array<i32>} : memref<2x32xf32, #tpu.memory_space<vmem>>, vector<2x32xf32>,
      %cst_174 = arith.constant 0.000000e+00 : f32
      %550 = vector.broadcast %cst_174 : f32 to vector<2x32xf32>
      %c0_175 = arith.constant 0 : index
      %c0_176 = arith.constant 0 : index
      %551 = vector.load %arg17[%c0_175, %c0_176] : memref<2x32xf32, #tpu.memory_space<vmem>>, vector<2x32xf32>
      tpu.vector_store %arg17[%c0_175, %c0_176], %550 {strides = array<i32>} : memref<2x32xf32, #tpu.memory_space<vmem>>, vector<2x32xf32>,
    } else {
    }
    %c0 = arith.constant 0 : index
    %c0_1 = arith.constant 0 : index
    %c0_2 = arith.constant 0 : index
    %3 = vector.load %arg2[%c0, %c0_1, %c0_2] : memref<8x2x16xf32, #tpu.memory_space<vmem>>, vector<8x2x16xf32>
    %c0_3 = arith.constant 0 : index
    %c0_4 = arith.constant 0 : index
    %4 = vector.load %arg3[%c0_3, %c0_4] : memref<16x128xf32, #tpu.memory_space<vmem>>, vector<16x128xf32>
    "tpu.trace_start"() <{level = 10 : i32, message = "tbd,dg->tbg"}> : () -> ()
    %cst = arith.constant dense<0.000000e+00> : vector<8x2x128xf32>
    %5 = tpu.matmul %3, %4, %cst {dimension_numbers = #tpu.dot_dimension_numbers<[2], [0], [0, 1], [1], [0, 0, 0, 1, 1, 1], [], []>} : vector<8x2x16xf32>, vector<16x128xf32>, vector<8x2x128xf32> -> vector<8x2x128xf32>
    "tpu.trace_stop"() : () -> ()
    %c0_5 = arith.constant 0 : index
    %c0_6 = arith.constant 0 : index
    %6 = vector.load %arg5[%c0_5, %c0_6] : memref<1x128xf32, #tpu.memory_space<vmem>>, vector<1x128xf32>
    %7 = vector.shape_cast %6 : vector<1x128xf32> to vector<1x1x128xf32>
    %8 = vector.broadcast %7 : vector<1x1x128xf32> to vector<8x2x128xf32>
    %9 = arith.addf %5, %8 : vector<8x2x128xf32>
    %c0_7 = arith.constant 0 : index
    %c0_8 = arith.constant 0 : index
    %c0_9 = arith.constant 0 : index
    %10 = vector.load %arg12[%c0_7, %c0_8, %c0_9] : memref<8x2x128xf32, #tpu.memory_space<vmem>>, vector<8x2x128xf32>
    tpu.vector_store %arg12[%c0_7, %c0_8, %c0_9], %9 {strides = array<i32>} : memref<8x2x128xf32, #tpu.memory_space<vmem>>, vector<8x2x128xf32>,
    %c0_10 = arith.constant 0 : index
    %c0_11 = arith.constant 0 : index
    %11 = vector.load %arg4[%c0_10, %c0_11] : memref<32x128xf32, #tpu.memory_space<vmem>>, vector<32x128xf32>
    %c0_12 = arith.constant 0 : index
    %c0_13 = arith.constant 0 : index
    %12 = vector.load %arg14[%c0_12, %c0_13] : memref<2x32xf32, #tpu.memory_space<vmem>>, vector<2x32xf32>
    %c0_14 = arith.constant 0 : index
    %c0_15 = arith.constant 0 : index
    %13 = vector.load %arg15[%c0_14, %c0_15] : memref<2x32xf32, #tpu.memory_space<vmem>>, vector<2x32xf32>
    %c0_i32_16 = arith.constant 0 : i32
    %14 = arith.index_cast %c0_i32_16 : i32 to index
    %c0_17 = arith.constant 0 : index
    %c0_18 = arith.constant 0 : index
    %15 = vector.load %arg12[%14, %c0_17, %c0_18] : memref<8x2x128xf32, #tpu.memory_space<vmem>>, vector<1x2x128xf32>
    %16 = vector.shape_cast %15 : vector<1x2x128xf32> to vector<2x128xf32>
    %cst_19 = arith.constant dense<0.000000e+00> : vector<2x128xf32>
    %17 = tpu.matmul %12, %11, %cst_19 {dimension_numbers = #tpu.dot_dimension_numbers<[1], [0], [0], [1], [0, 0, 1, 1], [], []>} : vector<2x32xf32>, vector<32x128xf32>, vector<2x128xf32> -> vector<2x128xf32>
    %18 = arith.addf %16, %17 : vector<2x128xf32>
    %19 = vector.extract_strided_slice %18 {offsets = [0, 0], sizes = [2, 32], strides = [1, 1]} : vector<2x128xf32> to vector<2x32xf32>
    %20 = arith.negf %19 : vector<2x32xf32>
    %21 = math.exp %20 : vector<2x32xf32>
    %cst_20 = arith.constant 1.000000e+00 : f32
    %22 = vector.broadcast %cst_20 : f32 to vector<2x32xf32>
    %23 = arith.addf %22, %21 : vector<2x32xf32>
    %24 = arith.divf %22, %23 : vector<2x32xf32>
    %25 = vector.extract_strided_slice %18 {offsets = [0, 32], sizes = [2, 32], strides = [1, 1]} : vector<2x128xf32> to vector<2x32xf32>
    %26 = arith.negf %25 : vector<2x32xf32>
    %27 = math.exp %26 : vector<2x32xf32>
    %cst_21 = arith.constant 1.000000e+00 : f32
    %28 = vector.broadcast %cst_21 : f32 to vector<2x32xf32>
    %29 = arith.addf %28, %27 : vector<2x32xf32>
    %30 = arith.divf %28, %29 : vector<2x32xf32>
    %31 = vector.extract_strided_slice %18 {offsets = [0, 64], sizes = [2, 32], strides = [1, 1]} : vector<2x128xf32> to vector<2x32xf32>
    %32 = math.tanh %31 : vector<2x32xf32>
    %33 = vector.extract_strided_slice %18 {offsets = [0, 96], sizes = [2, 32], strides = [1, 1]} : vector<2x128xf32> to vector<2x32xf32>
    %34 = arith.negf %33 : vector<2x32xf32>
    %35 = math.exp %34 : vector<2x32xf32>
    %cst_22 = arith.constant 1.000000e+00 : f32
    %36 = vector.broadcast %cst_22 : f32 to vector<2x32xf32>
    %37 = arith.addf %36, %35 : vector<2x32xf32>
    %38 = arith.divf %36, %37 : vector<2x32xf32>
    %39 = arith.mulf %30, %13 : vector<2x32xf32>
    %40 = arith.mulf %24, %32 : vector<2x32xf32>
    %41 = arith.addf %39, %40 : vector<2x32xf32>
    %42 = math.tanh %41 : vector<2x32xf32>
    %43 = arith.mulf %38, %42 : vector<2x32xf32>
    %44 = arith.index_cast %c0_i32_16 : i32 to index
    %c0_23 = arith.constant 0 : index
    %c0_24 = arith.constant 0 : index
    %45 = vector.load %arg13[%44, %c0_23, %c0_24] : memref<8x2x32xf32, #tpu.memory_space<vmem>>, vector<1x2x32xf32>
    %46 = vector.shape_cast %45 : vector<1x2x32xf32> to vector<2x32xf32>
    %47 = vector.shape_cast %43 : vector<2x32xf32> to vector<1x2x32xf32>
    tpu.vector_store %arg13[%44, %c0_23, %c0_24], %47 {strides = array<i32>} : memref<8x2x32xf32, #tpu.memory_space<vmem>>, vector<1x2x32xf32>,
    %c1_i32 = arith.constant 1 : i32
    %48 = arith.index_cast %c1_i32 : i32 to index
    %c0_25 = arith.constant 0 : index
    %c0_26 = arith.constant 0 : index
    %49 = vector.load %arg12[%48, %c0_25, %c0_26] : memref<8x2x128xf32, #tpu.memory_space<vmem>>, vector<1x2x128xf32>
    %50 = vector.shape_cast %49 : vector<1x2x128xf32> to vector<2x128xf32>
    %cst_27 = arith.constant dense<0.000000e+00> : vector<2x128xf32>
    %51 = tpu.matmul %43, %11, %cst_27 {dimension_numbers = #tpu.dot_dimension_numbers<[1], [0], [0], [1], [0, 0, 1, 1], [], []>} : vector<2x32xf32>, vector<32x128xf32>, vector<2x128xf32> -> vector<2x128xf32>
    %52 = arith.addf %50, %51 : vector<2x128xf32>
    %53 = vector.extract_strided_slice %52 {offsets = [0, 0], sizes = [2, 32], strides = [1, 1]} : vector<2x128xf32> to vector<2x32xf32>
    %54 = arith.negf %53 : vector<2x32xf32>
    %55 = math.exp %54 : vector<2x32xf32>
    %cst_28 = arith.constant 1.000000e+00 : f32
    %56 = vector.broadcast %cst_28 : f32 to vector<2x32xf32>
    %57 = arith.addf %56, %55 : vector<2x32xf32>
    %58 = arith.divf %56, %57 : vector<2x32xf32>
    %59 = vector.extract_strided_slice %52 {offsets = [0, 32], sizes = [2, 32], strides = [1, 1]} : vector<2x128xf32> to vector<2x32xf32>
    %60 = arith.negf %59 : vector<2x32xf32>
    %61 = math.exp %60 : vector<2x32xf32>
    %cst_29 = arith.constant 1.000000e+00 : f32
    %62 = vector.broadcast %cst_29 : f32 to vector<2x32xf32>
    %63 = arith.addf %62, %61 : vector<2x32xf32>
    %64 = arith.divf %62, %63 : vector<2x32xf32>
    %65 = vector.extract_strided_slice %52 {offsets = [0, 64], sizes = [2, 32], strides = [1, 1]} : vector<2x128xf32> to vector<2x32xf32>
    %66 = math.tanh %65 : vector<2x32xf32>
    %67 = vector.extract_strided_slice %52 {offsets = [0, 96], sizes = [2, 32], strides = [1, 1]} : vector<2x128xf32> to vector<2x32xf32>
    %68 = arith.negf %67 : vector<2x32xf32>
    %69 = math.exp %68 : vector<2x32xf32>
    %cst_30 = arith.constant 1.000000e+00 : f32
    %70 = vector.broadcast %cst_30 : f32 to vector<2x32xf32>
    %71 = arith.addf %70, %69 : vector<2x32xf32>
    %72 = arith.divf %70, %71 : vector<2x32xf32>
    %73 = arith.mulf %64, %41 : vector<2x32xf32>
    %74 = arith.mulf %58, %66 : vector<2x32xf32>
    %75 = arith.addf %73, %74 : vector<2x32xf32>
    %76 = math.tanh %75 : vector<2x32xf32>
    %77 = arith.mulf %72, %76 : vector<2x32xf32>
    %78 = arith.index_cast %c1_i32 : i32 to index
    %c0_31 = arith.constant 0 : index
    %c0_32 = arith.constant 0 : index
    %79 = vector.load %arg13[%78, %c0_31, %c0_32] : memref<8x2x32xf32, #tpu.memory_space<vmem>>, vector<1x2x32xf32>
    %80 = vector.shape_cast %79 : vector<1x2x32xf32> to vector<2x32xf32>
    %81 = vector.shape_cast %77 : vector<2x32xf32> to vector<1x2x32xf32>
    tpu.vector_store %arg13[%78, %c0_31, %c0_32], %81 {strides = array<i32>} : memref<8x2x32xf32, #tpu.memory_space<vmem>>, vector<1x2x32xf32>,
    %c2_i32 = arith.constant 2 : i32
    %82 = arith.index_cast %c2_i32 : i32 to index
    %c0_33 = arith.constant 0 : index
    %c0_34 = arith.constant 0 : index
    %83 = vector.load %arg12[%82, %c0_33, %c0_34] : memref<8x2x128xf32, #tpu.memory_space<vmem>>, vector<1x2x128xf32>
    %84 = vector.shape_cast %83 : vector<1x2x128xf32> to vector<2x128xf32>
    %cst_35 = arith.constant dense<0.000000e+00> : vector<2x128xf32>
    %85 = tpu.matmul %77, %11, %cst_35 {dimension_numbers = #tpu.dot_dimension_numbers<[1], [0], [0], [1], [0, 0, 1, 1], [], []>} : vector<2x32xf32>, vector<32x128xf32>, vector<2x128xf32> -> vector<2x128xf32>
    %86 = arith.addf %84, %85 : vector<2x128xf32>
    %87 = vector.extract_strided_slice %86 {offsets = [0, 0], sizes = [2, 32], strides = [1, 1]} : vector<2x128xf32> to vector<2x32xf32>
    %88 = arith.negf %87 : vector<2x32xf32>
    %89 = math.exp %88 : vector<2x32xf32>
    %cst_36 = arith.constant 1.000000e+00 : f32
    %90 = vector.broadcast %cst_36 : f32 to vector<2x32xf32>
    %91 = arith.addf %90, %89 : vector<2x32xf32>
    %92 = arith.divf %90, %91 : vector<2x32xf32>
    %93 = vector.extract_strided_slice %86 {offsets = [0, 32], sizes = [2, 32], strides = [1, 1]} : vector<2x128xf32> to vector<2x32xf32>
    %94 = arith.negf %93 : vector<2x32xf32>
    %95 = math.exp %94 : vector<2x32xf32>
    %cst_37 = arith.constant 1.000000e+00 : f32
    %96 = vector.broadcast %cst_37 : f32 to vector<2x32xf32>
    %97 = arith.addf %96, %95 : vector<2x32xf32>
    %98 = arith.divf %96, %97 : vector<2x32xf32>
    %99 = vector.extract_strided_slice %86 {offsets = [0, 64], sizes = [2, 32], strides = [1, 1]} : vector<2x128xf32> to vector<2x32xf32>
    %100 = math.tanh %99 : vector<2x32xf32>
    %101 = vector.extract_strided_slice %86 {offsets = [0, 96], sizes = [2, 32], strides = [1, 1]} : vector<2x128xf32> to vector<2x32xf32>
    %102 = arith.negf %101 : vector<2x32xf32>
    %103 = math.exp %102 : vector<2x32xf32>
    %cst_38 = arith.constant 1.000000e+00 : f32
    %104 = vector.broadcast %cst_38 : f32 to vector<2x32xf32>
    %105 = arith.addf %104, %103 : vector<2x32xf32>
    %106 = arith.divf %104, %105 : vector<2x32xf32>
    %107 = arith.mulf %98, %75 : vector<2x32xf32>
    %108 = arith.mulf %92, %100 : vector<2x32xf32>
    %109 = arith.addf %107, %108 : vector<2x32xf32>
    %110 = math.tanh %109 : vector<2x32xf32>
    %111 = arith.mulf %106, %110 : vector<2x32xf32>
    %112 = arith.index_cast %c2_i32 : i32 to index
    %c0_39 = arith.constant 0 : index
    %c0_40 = arith.constant 0 : index
    %113 = vector.load %arg13[%112, %c0_39, %c0_40] : memref<8x2x32xf32, #tpu.memory_space<vmem>>, vector<1x2x32xf32>
    %114 = vector.shape_cast %113 : vector<1x2x32xf32> to vector<2x32xf32>
    %115 = vector.shape_cast %111 : vector<2x32xf32> to vector<1x2x32xf32>
    tpu.vector_store %arg13[%112, %c0_39, %c0_40], %115 {strides = array<i32>} : memref<8x2x32xf32, #tpu.memory_space<vmem>>, vector<1x2x32xf32>,
    %c3_i32 = arith.constant 3 : i32
    %116 = arith.index_cast %c3_i32 : i32 to index
    %c0_41 = arith.constant 0 : index
    %c0_42 = arith.constant 0 : index
    %117 = vector.load %arg12[%116, %c0_41, %c0_42] : memref<8x2x128xf32, #tpu.memory_space<vmem>>, vector<1x2x128xf32>
    %118 = vector.shape_cast %117 : vector<1x2x128xf32> to vector<2x128xf32>
    %cst_43 = arith.constant dense<0.000000e+00> : vector<2x128xf32>
    %119 = tpu.matmul %111, %11, %cst_43 {dimension_numbers = #tpu.dot_dimension_numbers<[1], [0], [0], [1], [0, 0, 1, 1], [], []>} : vector<2x32xf32>, vector<32x128xf32>, vector<2x128xf32> -> vector<2x128xf32>
    %120 = arith.addf %118, %119 : vector<2x128xf32>
    %121 = vector.extract_strided_slice %120 {offsets = [0, 0], sizes = [2, 32], strides = [1, 1]} : vector<2x128xf32> to vector<2x32xf32>
    %122 = arith.negf %121 : vector<2x32xf32>
    %123 = math.exp %122 : vector<2x32xf32>
    %cst_44 = arith.constant 1.000000e+00 : f32
    %124 = vector.broadcast %cst_44 : f32 to vector<2x32xf32>
    %125 = arith.addf %124, %123 : vector<2x32xf32>
    %126 = arith.divf %124, %125 : vector<2x32xf32>
    %127 = vector.extract_strided_slice %120 {offsets = [0, 32], sizes = [2, 32], strides = [1, 1]} : vector<2x128xf32> to vector<2x32xf32>
    %128 = arith.negf %127 : vector<2x32xf32>
    %129 = math.exp %128 : vector<2x32xf32>
    %cst_45 = arith.constant 1.000000e+00 : f32
    %130 = vector.broadcast %cst_45 : f32 to vector<2x32xf32>
    %131 = arith.addf %130, %129 : vector<2x32xf32>
    %132 = arith.divf %130, %131 : vector<2x32xf32>
    %133 = vector.extract_strided_slice %120 {offsets = [0, 64], sizes = [2, 32], strides = [1, 1]} : vector<2x128xf32> to vector<2x32xf32>
    %134 = math.tanh %133 : vector<2x32xf32>
    %135 = vector.extract_strided_slice %120 {offsets = [0, 96], sizes = [2, 32], strides = [1, 1]} : vector<2x128xf32> to vector<2x32xf32>
    %136 = arith.negf %135 : vector<2x32xf32>
    %137 = math.exp %136 : vector<2x32xf32>
    %cst_46 = arith.constant 1.000000e+00 : f32
    %138 = vector.broadcast %cst_46 : f32 to vector<2x32xf32>
    %139 = arith.addf %138, %137 : vector<2x32xf32>
    %140 = arith.divf %138, %139 : vector<2x32xf32>
    %141 = arith.mulf %132, %109 : vector<2x32xf32>
    %142 = arith.mulf %126, %134 : vector<2x32xf32>
    %143 = arith.addf %141, %142 : vector<2x32xf32>
    %144 = math.tanh %143 : vector<2x32xf32>
    %145 = arith.mulf %140, %144 : vector<2x32xf32>
    %146 = arith.index_cast %c3_i32 : i32 to index
    %c0_47 = arith.constant 0 : index
    %c0_48 = arith.constant 0 : index
    %147 = vector.load %arg13[%146, %c0_47, %c0_48] : memref<8x2x32xf32, #tpu.memory_space<vmem>>, vector<1x2x32xf32>
    %148 = vector.shape_cast %147 : vector<1x2x32xf32> to vector<2x32xf32>
    %149 = vector.shape_cast %145 : vector<2x32xf32> to vector<1x2x32xf32>
    tpu.vector_store %arg13[%146, %c0_47, %c0_48], %149 {strides = array<i32>} : memref<8x2x32xf32, #tpu.memory_space<vmem>>, vector<1x2x32xf32>,
    %c4_i32 = arith.constant 4 : i32
    %150 = arith.index_cast %c4_i32 : i32 to index
    %c0_49 = arith.constant 0 : index
    %c0_50 = arith.constant 0 : index
    %151 = vector.load %arg12[%150, %c0_49, %c0_50] : memref<8x2x128xf32, #tpu.memory_space<vmem>>, vector<1x2x128xf32>
    %152 = vector.shape_cast %151 : vector<1x2x128xf32> to vector<2x128xf32>
    %cst_51 = arith.constant dense<0.000000e+00> : vector<2x128xf32>
    %153 = tpu.matmul %145, %11, %cst_51 {dimension_numbers = #tpu.dot_dimension_numbers<[1], [0], [0], [1], [0, 0, 1, 1], [], []>} : vector<2x32xf32>, vector<32x128xf32>, vector<2x128xf32> -> vector<2x128xf32>
    %154 = arith.addf %152, %153 : vector<2x128xf32>
    %155 = vector.extract_strided_slice %154 {offsets = [0, 0], sizes = [2, 32], strides = [1, 1]} : vector<2x128xf32> to vector<2x32xf32>
    %156 = arith.negf %155 : vector<2x32xf32>
    %157 = math.exp %156 : vector<2x32xf32>
    %cst_52 = arith.constant 1.000000e+00 : f32
    %158 = vector.broadcast %cst_52 : f32 to vector<2x32xf32>
    %159 = arith.addf %158, %157 : vector<2x32xf32>
    %160 = arith.divf %158, %159 : vector<2x32xf32>
    %161 = vector.extract_strided_slice %154 {offsets = [0, 32], sizes = [2, 32], strides = [1, 1]} : vector<2x128xf32> to vector<2x32xf32>
    %162 = arith.negf %161 : vector<2x32xf32>
    %163 = math.exp %162 : vector<2x32xf32>
    %cst_53 = arith.constant 1.000000e+00 : f32
    %164 = vector.broadcast %cst_53 : f32 to vector<2x32xf32>
    %165 = arith.addf %164, %163 : vector<2x32xf32>
    %166 = arith.divf %164, %165 : vector<2x32xf32>
    %167 = vector.extract_strided_slice %154 {offsets = [0, 64], sizes = [2, 32], strides = [1, 1]} : vector<2x128xf32> to vector<2x32xf32>
    %168 = math.tanh %167 : vector<2x32xf32>
    %169 = vector.extract_strided_slice %154 {offsets = [0, 96], sizes = [2, 32], strides = [1, 1]} : vector<2x128xf32> to vector<2x32xf32>
    %170 = arith.negf %169 : vector<2x32xf32>
    %171 = math.exp %170 : vector<2x32xf32>
    %cst_54 = arith.constant 1.000000e+00 : f32
    %172 = vector.broadcast %cst_54 : f32 to vector<2x32xf32>
    %173 = arith.addf %172, %171 : vector<2x32xf32>
    %174 = arith.divf %172, %173 : vector<2x32xf32>
    %175 = arith.mulf %166, %143 : vector<2x32xf32>
    %176 = arith.mulf %160, %168 : vector<2x32xf32>
    %177 = arith.addf %175, %176 : vector<2x32xf32>
    %178 = math.tanh %177 : vector<2x32xf32>
    %179 = arith.mulf %174, %178 : vector<2x32xf32>
    %180 = arith.index_cast %c4_i32 : i32 to index
    %c0_55 = arith.constant 0 : index
    %c0_56 = arith.constant 0 : index
    %181 = vector.load %arg13[%180, %c0_55, %c0_56] : memref<8x2x32xf32, #tpu.memory_space<vmem>>, vector<1x2x32xf32>
    %182 = vector.shape_cast %181 : vector<1x2x32xf32> to vector<2x32xf32>
    %183 = vector.shape_cast %179 : vector<2x32xf32> to vector<1x2x32xf32>
    tpu.vector_store %arg13[%180, %c0_55, %c0_56], %183 {strides = array<i32>} : memref<8x2x32xf32, #tpu.memory_space<vmem>>, vector<1x2x32xf32>,
    %c5_i32 = arith.constant 5 : i32
    %184 = arith.index_cast %c5_i32 : i32 to index
    %c0_57 = arith.constant 0 : index
    %c0_58 = arith.constant 0 : index
    %185 = vector.load %arg12[%184, %c0_57, %c0_58] : memref<8x2x128xf32, #tpu.memory_space<vmem>>, vector<1x2x128xf32>
    %186 = vector.shape_cast %185 : vector<1x2x128xf32> to vector<2x128xf32>
    %cst_59 = arith.constant dense<0.000000e+00> : vector<2x128xf32>
    %187 = tpu.matmul %179, %11, %cst_59 {dimension_numbers = #tpu.dot_dimension_numbers<[1], [0], [0], [1], [0, 0, 1, 1], [], []>} : vector<2x32xf32>, vector<32x128xf32>, vector<2x128xf32> -> vector<2x128xf32>
    %188 = arith.addf %186, %187 : vector<2x128xf32>
    %189 = vector.extract_strided_slice %188 {offsets = [0, 0], sizes = [2, 32], strides = [1, 1]} : vector<2x128xf32> to vector<2x32xf32>
    %190 = arith.negf %189 : vector<2x32xf32>
    %191 = math.exp %190 : vector<2x32xf32>
    %cst_60 = arith.constant 1.000000e+00 : f32
    %192 = vector.broadcast %cst_60 : f32 to vector<2x32xf32>
    %193 = arith.addf %192, %191 : vector<2x32xf32>
    %194 = arith.divf %192, %193 : vector<2x32xf32>
    %195 = vector.extract_strided_slice %188 {offsets = [0, 32], sizes = [2, 32], strides = [1, 1]} : vector<2x128xf32> to vector<2x32xf32>
    %196 = arith.negf %195 : vector<2x32xf32>
    %197 = math.exp %196 : vector<2x32xf32>
    %cst_61 = arith.constant 1.000000e+00 : f32
    %198 = vector.broadcast %cst_61 : f32 to vector<2x32xf32>
    %199 = arith.addf %198, %197 : vector<2x32xf32>
    %200 = arith.divf %198, %199 : vector<2x32xf32>
    %201 = vector.extract_strided_slice %188 {offsets = [0, 64], sizes = [2, 32], strides = [1, 1]} : vector<2x128xf32> to vector<2x32xf32>
    %202 = math.tanh %201 : vector<2x32xf32>
    %203 = vector.extract_strided_slice %188 {offsets = [0, 96], sizes = [2, 32], strides = [1, 1]} : vector<2x128xf32> to vector<2x32xf32>
    %204 = arith.negf %203 : vector<2x32xf32>
    %205 = math.exp %204 : vector<2x32xf32>
    %cst_62 = arith.constant 1.000000e+00 : f32
    %206 = vector.broadcast %cst_62 : f32 to vector<2x32xf32>
    %207 = arith.addf %206, %205 : vector<2x32xf32>
    %208 = arith.divf %206, %207 : vector<2x32xf32>
    %209 = arith.mulf %200, %177 : vector<2x32xf32>
    %210 = arith.mulf %194, %202 : vector<2x32xf32>
    %211 = arith.addf %209, %210 : vector<2x32xf32>
    %212 = math.tanh %211 : vector<2x32xf32>
    %213 = arith.mulf %208, %212 : vector<2x32xf32>
    %214 = arith.index_cast %c5_i32 : i32 to index
    %c0_63 = arith.constant 0 : index
    %c0_64 = arith.constant 0 : index
    %215 = vector.load %arg13[%214, %c0_63, %c0_64] : memref<8x2x32xf32, #tpu.memory_space<vmem>>, vector<1x2x32xf32>
    %216 = vector.shape_cast %215 : vector<1x2x32xf32> to vector<2x32xf32>
    %217 = vector.shape_cast %213 : vector<2x32xf32> to vector<1x2x32xf32>
    tpu.vector_store %arg13[%214, %c0_63, %c0_64], %217 {strides = array<i32>} : memref<8x2x32xf32, #tpu.memory_space<vmem>>, vector<1x2x32xf32>,
    %c6_i32 = arith.constant 6 : i32
    %218 = arith.index_cast %c6_i32 : i32 to index
    %c0_65 = arith.constant 0 : index
    %c0_66 = arith.constant 0 : index
    %219 = vector.load %arg12[%218, %c0_65, %c0_66] : memref<8x2x128xf32, #tpu.memory_space<vmem>>, vector<1x2x128xf32>
    %220 = vector.shape_cast %219 : vector<1x2x128xf32> to vector<2x128xf32>
    %cst_67 = arith.constant dense<0.000000e+00> : vector<2x128xf32>
    %221 = tpu.matmul %213, %11, %cst_67 {dimension_numbers = #tpu.dot_dimension_numbers<[1], [0], [0], [1], [0, 0, 1, 1], [], []>} : vector<2x32xf32>, vector<32x128xf32>, vector<2x128xf32> -> vector<2x128xf32>
    %222 = arith.addf %220, %221 : vector<2x128xf32>
    %223 = vector.extract_strided_slice %222 {offsets = [0, 0], sizes = [2, 32], strides = [1, 1]} : vector<2x128xf32> to vector<2x32xf32>
    %224 = arith.negf %223 : vector<2x32xf32>
    %225 = math.exp %224 : vector<2x32xf32>
    %cst_68 = arith.constant 1.000000e+00 : f32
    %226 = vector.broadcast %cst_68 : f32 to vector<2x32xf32>
    %227 = arith.addf %226, %225 : vector<2x32xf32>
    %228 = arith.divf %226, %227 : vector<2x32xf32>
    %229 = vector.extract_strided_slice %222 {offsets = [0, 32], sizes = [2, 32], strides = [1, 1]} : vector<2x128xf32> to vector<2x32xf32>
    %230 = arith.negf %229 : vector<2x32xf32>
    %231 = math.exp %230 : vector<2x32xf32>
    %cst_69 = arith.constant 1.000000e+00 : f32
    %232 = vector.broadcast %cst_69 : f32 to vector<2x32xf32>
    %233 = arith.addf %232, %231 : vector<2x32xf32>
    %234 = arith.divf %232, %233 : vector<2x32xf32>
    %235 = vector.extract_strided_slice %222 {offsets = [0, 64], sizes = [2, 32], strides = [1, 1]} : vector<2x128xf32> to vector<2x32xf32>
    %236 = math.tanh %235 : vector<2x32xf32>
    %237 = vector.extract_strided_slice %222 {offsets = [0, 96], sizes = [2, 32], strides = [1, 1]} : vector<2x128xf32> to vector<2x32xf32>
    %238 = arith.negf %237 : vector<2x32xf32>
    %239 = math.exp %238 : vector<2x32xf32>
    %cst_70 = arith.constant 1.000000e+00 : f32
    %240 = vector.broadcast %cst_70 : f32 to vector<2x32xf32>
    %241 = arith.addf %240, %239 : vector<2x32xf32>
    %242 = arith.divf %240, %241 : vector<2x32xf32>
    %243 = arith.mulf %234, %211 : vector<2x32xf32>
    %244 = arith.mulf %228, %236 : vector<2x32xf32>
    %245 = arith.addf %243, %244 : vector<2x32xf32>
    %246 = math.tanh %245 : vector<2x32xf32>
    %247 = arith.mulf %242, %246 : vector<2x32xf32>
    %248 = arith.index_cast %c6_i32 : i32 to index
    %c0_71 = arith.constant 0 : index
    %c0_72 = arith.constant 0 : index
    %249 = vector.load %arg13[%248, %c0_71, %c0_72] : memref<8x2x32xf32, #tpu.memory_space<vmem>>, vector<1x2x32xf32>
    %250 = vector.shape_cast %249 : vector<1x2x32xf32> to vector<2x32xf32>
    %251 = vector.shape_cast %247 : vector<2x32xf32> to vector<1x2x32xf32>
    tpu.vector_store %arg13[%248, %c0_71, %c0_72], %251 {strides = array<i32>} : memref<8x2x32xf32, #tpu.memory_space<vmem>>, vector<1x2x32xf32>,
    %c7_i32 = arith.constant 7 : i32
    %252 = arith.index_cast %c7_i32 : i32 to index
    %c0_73 = arith.constant 0 : index
    %c0_74 = arith.constant 0 : index
    %253 = vector.load %arg12[%252, %c0_73, %c0_74] : memref<8x2x128xf32, #tpu.memory_space<vmem>>, vector<1x2x128xf32>
    %254 = vector.shape_cast %253 : vector<1x2x128xf32> to vector<2x128xf32>
    %cst_75 = arith.constant dense<0.000000e+00> : vector<2x128xf32>
    %255 = tpu.matmul %247, %11, %cst_75 {dimension_numbers = #tpu.dot_dimension_numbers<[1], [0], [0], [1], [0, 0, 1, 1], [], []>} : vector<2x32xf32>, vector<32x128xf32>, vector<2x128xf32> -> vector<2x128xf32>
    %256 = arith.addf %254, %255 : vector<2x128xf32>
    %257 = vector.extract_strided_slice %256 {offsets = [0, 0], sizes = [2, 32], strides = [1, 1]} : vector<2x128xf32> to vector<2x32xf32>
    %258 = arith.negf %257 : vector<2x32xf32>
    %259 = math.exp %258 : vector<2x32xf32>
    %cst_76 = arith.constant 1.000000e+00 : f32
    %260 = vector.broadcast %cst_76 : f32 to vector<2x32xf32>
    %261 = arith.addf %260, %259 : vector<2x32xf32>
    %262 = arith.divf %260, %261 : vector<2x32xf32>
    %263 = vector.extract_strided_slice %256 {offsets = [0, 32], sizes = [2, 32], strides = [1, 1]} : vector<2x128xf32> to vector<2x32xf32>
    %264 = arith.negf %263 : vector<2x32xf32>
    %265 = math.exp %264 : vector<2x32xf32>
    %cst_77 = arith.constant 1.000000e+00 : f32
    %266 = vector.broadcast %cst_77 : f32 to vector<2x32xf32>
    %267 = arith.addf %266, %265 : vector<2x32xf32>
    %268 = arith.divf %266, %267 : vector<2x32xf32>
    %269 = vector.extract_strided_slice %256 {offsets = [0, 64], sizes = [2, 32], strides = [1, 1]} : vector<2x128xf32> to vector<2x32xf32>
    %270 = math.tanh %269 : vector<2x32xf32>
    %271 = vector.extract_strided_slice %256 {offsets = [0, 96], sizes = [2, 32], strides = [1, 1]} : vector<2x128xf32> to vector<2x32xf32>
    %272 = arith.negf %271 : vector<2x32xf32>
    %273 = math.exp %272 : vector<2x32xf32>
    %cst_78 = arith.constant 1.000000e+00 : f32
    %274 = vector.broadcast %cst_78 : f32 to vector<2x32xf32>
    %275 = arith.addf %274, %273 : vector<2x32xf32>
    %276 = arith.divf %274, %275 : vector<2x32xf32>
    %277 = arith.mulf %268, %245 : vector<2x32xf32>
    %278 = arith.mulf %262, %270 : vector<2x32xf32>
    %279 = arith.addf %277, %278 : vector<2x32xf32>
    %280 = math.tanh %279 : vector<2x32xf32>
    %281 = arith.mulf %276, %280 : vector<2x32xf32>
    %282 = arith.index_cast %c7_i32 : i32 to index
    %c0_79 = arith.constant 0 : index
    %c0_80 = arith.constant 0 : index
    %283 = vector.load %arg13[%282, %c0_79, %c0_80] : memref<8x2x32xf32, #tpu.memory_space<vmem>>, vector<1x2x32xf32>
    %284 = vector.shape_cast %283 : vector<1x2x32xf32> to vector<2x32xf32>
    %285 = vector.shape_cast %281 : vector<2x32xf32> to vector<1x2x32xf32>
    tpu.vector_store %arg13[%282, %c0_79, %c0_80], %285 {strides = array<i32>} : memref<8x2x32xf32, #tpu.memory_space<vmem>>, vector<1x2x32xf32>,
    %c8_i32 = arith.constant 8 : i32
    %c0_81 = arith.constant 0 : index
    %c0_82 = arith.constant 0 : index
    %286 = vector.load %arg14[%c0_81, %c0_82] : memref<2x32xf32, #tpu.memory_space<vmem>>, vector<2x32xf32>
    tpu.vector_store %arg14[%c0_81, %c0_82], %281 {strides = array<i32>} : memref<2x32xf32, #tpu.memory_space<vmem>>, vector<2x32xf32>,
    %c0_83 = arith.constant 0 : index
    %c0_84 = arith.constant 0 : index
    %287 = vector.load %arg15[%c0_83, %c0_84] : memref<2x32xf32, #tpu.memory_space<vmem>>, vector<2x32xf32>
    tpu.vector_store %arg15[%c0_83, %c0_84], %279 {strides = array<i32>} : memref<2x32xf32, #tpu.memory_space<vmem>>, vector<2x32xf32>,
    %c0_85 = arith.constant 0 : index
    %c0_86 = arith.constant 0 : index
    %c0_87 = arith.constant 0 : index
    %288 = vector.load %arg13[%c0_85, %c0_86, %c0_87] : memref<8x2x32xf32, #tpu.memory_space<vmem>>, vector<8x2x32xf32>
    %c0_88 = arith.constant 0 : index
    %c0_89 = arith.constant 0 : index
    %289 = vector.load %arg6[%c0_88, %c0_89] : memref<32x128xf32, #tpu.memory_space<vmem>>, vector<32x128xf32>
    "tpu.trace_start"() <{level = 10 : i32, message = "tbd,dg->tbg"}> : () -> ()
    %cst_90 = arith.constant dense<0.000000e+00> : vector<8x2x128xf32>
    %290 = tpu.matmul %288, %289, %cst_90 {dimension_numbers = #tpu.dot_dimension_numbers<[2], [0], [0, 1], [1], [0, 0, 0, 1, 1, 1], [], []>} : vector<8x2x32xf32>, vector<32x128xf32>, vector<8x2x128xf32> -> vector<8x2x128xf32>
    "tpu.trace_stop"() : () -> ()
    %c0_91 = arith.constant 0 : index
    %c0_92 = arith.constant 0 : index
    %291 = vector.load %arg8[%c0_91, %c0_92] : memref<1x128xf32, #tpu.memory_space<vmem>>, vector<1x128xf32>
    %292 = vector.shape_cast %291 : vector<1x128xf32> to vector<1x1x128xf32>
    %293 = vector.broadcast %292 : vector<1x1x128xf32> to vector<8x2x128xf32>
    %294 = arith.addf %290, %293 : vector<8x2x128xf32>
    %c0_93 = arith.constant 0 : index
    %c0_94 = arith.constant 0 : index
    %c0_95 = arith.constant 0 : index
    %295 = vector.load %arg12[%c0_93, %c0_94, %c0_95] : memref<8x2x128xf32, #tpu.memory_space<vmem>>, vector<8x2x128xf32>
    tpu.vector_store %arg12[%c0_93, %c0_94, %c0_95], %294 {strides = array<i32>} : memref<8x2x128xf32, #tpu.memory_space<vmem>>, vector<8x2x128xf32>,
    %c0_96 = arith.constant 0 : index
    %c0_97 = arith.constant 0 : index
    %296 = vector.load %arg7[%c0_96, %c0_97] : memref<32x128xf32, #tpu.memory_space<vmem>>, vector<32x128xf32>
    %c0_98 = arith.constant 0 : index
    %c0_99 = arith.constant 0 : index
    %297 = vector.load %arg16[%c0_98, %c0_99] : memref<2x32xf32, #tpu.memory_space<vmem>>, vector<2x32xf32>
    %c0_100 = arith.constant 0 : index
    %c0_101 = arith.constant 0 : index
    %298 = vector.load %arg17[%c0_100, %c0_101] : memref<2x32xf32, #tpu.memory_space<vmem>>, vector<2x32xf32>
    %c0_i32_102 = arith.constant 0 : i32
    %299 = arith.index_cast %c0_i32_102 : i32 to index
    %c0_103 = arith.constant 0 : index
    %c0_104 = arith.constant 0 : index
    %300 = vector.load %arg12[%299, %c0_103, %c0_104] : memref<8x2x128xf32, #tpu.memory_space<vmem>>, vector<1x2x128xf32>
    %301 = vector.shape_cast %300 : vector<1x2x128xf32> to vector<2x128xf32>
    %cst_105 = arith.constant dense<0.000000e+00> : vector<2x128xf32>
    %302 = tpu.matmul %297, %296, %cst_105 {dimension_numbers = #tpu.dot_dimension_numbers<[1], [0], [0], [1], [0, 0, 1, 1], [], []>} : vector<2x32xf32>, vector<32x128xf32>, vector<2x128xf32> -> vector<2x128xf32>
    %303 = arith.addf %301, %302 : vector<2x128xf32>
    %304 = vector.extract_strided_slice %303 {offsets = [0, 0], sizes = [2, 32], strides = [1, 1]} : vector<2x128xf32> to vector<2x32xf32>
    %305 = arith.negf %304 : vector<2x32xf32>
    %306 = math.exp %305 : vector<2x32xf32>
    %cst_106 = arith.constant 1.000000e+00 : f32
    %307 = vector.broadcast %cst_106 : f32 to vector<2x32xf32>
    %308 = arith.addf %307, %306 : vector<2x32xf32>
    %309 = arith.divf %307, %308 : vector<2x32xf32>
    %310 = vector.extract_strided_slice %303 {offsets = [0, 32], sizes = [2, 32], strides = [1, 1]} : vector<2x128xf32> to vector<2x32xf32>
    %311 = arith.negf %310 : vector<2x32xf32>
    %312 = math.exp %311 : vector<2x32xf32>
    %cst_107 = arith.constant 1.000000e+00 : f32
    %313 = vector.broadcast %cst_107 : f32 to vector<2x32xf32>
    %314 = arith.addf %313, %312 : vector<2x32xf32>
    %315 = arith.divf %313, %314 : vector<2x32xf32>
    %316 = vector.extract_strided_slice %303 {offsets = [0, 64], sizes = [2, 32], strides = [1, 1]} : vector<2x128xf32> to vector<2x32xf32>
    %317 = math.tanh %316 : vector<2x32xf32>
    %318 = vector.extract_strided_slice %303 {offsets = [0, 96], sizes = [2, 32], strides = [1, 1]} : vector<2x128xf32> to vector<2x32xf32>
    %319 = arith.negf %318 : vector<2x32xf32>
    %320 = math.exp %319 : vector<2x32xf32>
    %cst_108 = arith.constant 1.000000e+00 : f32
    %321 = vector.broadcast %cst_108 : f32 to vector<2x32xf32>
    %322 = arith.addf %321, %320 : vector<2x32xf32>
    %323 = arith.divf %321, %322 : vector<2x32xf32>
    %324 = arith.mulf %315, %298 : vector<2x32xf32>
    %325 = arith.mulf %309, %317 : vector<2x32xf32>
    %326 = arith.addf %324, %325 : vector<2x32xf32>
    %327 = math.tanh %326 : vector<2x32xf32>
    %328 = arith.mulf %323, %327 : vector<2x32xf32>
    %c1_i32_109 = arith.constant 1 : i32
    %329 = arith.index_cast %c1_i32_109 : i32 to index
    %c0_110 = arith.constant 0 : index
    %c0_111 = arith.constant 0 : index
    %330 = vector.load %arg12[%329, %c0_110, %c0_111] : memref<8x2x128xf32, #tpu.memory_space<vmem>>, vector<1x2x128xf32>
    %331 = vector.shape_cast %330 : vector<1x2x128xf32> to vector<2x128xf32>
    %cst_112 = arith.constant dense<0.000000e+00> : vector<2x128xf32>
    %332 = tpu.matmul %328, %296, %cst_112 {dimension_numbers = #tpu.dot_dimension_numbers<[1], [0], [0], [1], [0, 0, 1, 1], [], []>} : vector<2x32xf32>, vector<32x128xf32>, vector<2x128xf32> -> vector<2x128xf32>
    %333 = arith.addf %331, %332 : vector<2x128xf32>
    %334 = vector.extract_strided_slice %333 {offsets = [0, 0], sizes = [2, 32], strides = [1, 1]} : vector<2x128xf32> to vector<2x32xf32>
    %335 = arith.negf %334 : vector<2x32xf32>
    %336 = math.exp %335 : vector<2x32xf32>
    %cst_113 = arith.constant 1.000000e+00 : f32
    %337 = vector.broadcast %cst_113 : f32 to vector<2x32xf32>
    %338 = arith.addf %337, %336 : vector<2x32xf32>
    %339 = arith.divf %337, %338 : vector<2x32xf32>
    %340 = vector.extract_strided_slice %333 {offsets = [0, 32], sizes = [2, 32], strides = [1, 1]} : vector<2x128xf32> to vector<2x32xf32>
    %341 = arith.negf %340 : vector<2x32xf32>
    %342 = math.exp %341 : vector<2x32xf32>
    %cst_114 = arith.constant 1.000000e+00 : f32
    %343 = vector.broadcast %cst_114 : f32 to vector<2x32xf32>
    %344 = arith.addf %343, %342 : vector<2x32xf32>
    %345 = arith.divf %343, %344 : vector<2x32xf32>
    %346 = vector.extract_strided_slice %333 {offsets = [0, 64], sizes = [2, 32], strides = [1, 1]} : vector<2x128xf32> to vector<2x32xf32>
    %347 = math.tanh %346 : vector<2x32xf32>
    %348 = vector.extract_strided_slice %333 {offsets = [0, 96], sizes = [2, 32], strides = [1, 1]} : vector<2x128xf32> to vector<2x32xf32>
    %349 = arith.negf %348 : vector<2x32xf32>
    %350 = math.exp %349 : vector<2x32xf32>
    %cst_115 = arith.constant 1.000000e+00 : f32
    %351 = vector.broadcast %cst_115 : f32 to vector<2x32xf32>
    %352 = arith.addf %351, %350 : vector<2x32xf32>
    %353 = arith.divf %351, %352 : vector<2x32xf32>
    %354 = arith.mulf %345, %326 : vector<2x32xf32>
    %355 = arith.mulf %339, %347 : vector<2x32xf32>
    %356 = arith.addf %354, %355 : vector<2x32xf32>
    %357 = math.tanh %356 : vector<2x32xf32>
    %358 = arith.mulf %353, %357 : vector<2x32xf32>
    %c2_i32_116 = arith.constant 2 : i32
    %359 = arith.index_cast %c2_i32_116 : i32 to index
    %c0_117 = arith.constant 0 : index
    %c0_118 = arith.constant 0 : index
    %360 = vector.load %arg12[%359, %c0_117, %c0_118] : memref<8x2x128xf32, #tpu.memory_space<vmem>>, vector<1x2x128xf32>
    %361 = vector.shape_cast %360 : vector<1x2x128xf32> to vector<2x128xf32>
    %cst_119 = arith.constant dense<0.000000e+00> : vector<2x128xf32>
    %362 = tpu.matmul %358, %296, %cst_119 {dimension_numbers = #tpu.dot_dimension_numbers<[1], [0], [0], [1], [0, 0, 1, 1], [], []>} : vector<2x32xf32>, vector<32x128xf32>, vector<2x128xf32> -> vector<2x128xf32>
    %363 = arith.addf %361, %362 : vector<2x128xf32>
    %364 = vector.extract_strided_slice %363 {offsets = [0, 0], sizes = [2, 32], strides = [1, 1]} : vector<2x128xf32> to vector<2x32xf32>
    %365 = arith.negf %364 : vector<2x32xf32>
    %366 = math.exp %365 : vector<2x32xf32>
    %cst_120 = arith.constant 1.000000e+00 : f32
    %367 = vector.broadcast %cst_120 : f32 to vector<2x32xf32>
    %368 = arith.addf %367, %366 : vector<2x32xf32>
    %369 = arith.divf %367, %368 : vector<2x32xf32>
    %370 = vector.extract_strided_slice %363 {offsets = [0, 32], sizes = [2, 32], strides = [1, 1]} : vector<2x128xf32> to vector<2x32xf32>
    %371 = arith.negf %370 : vector<2x32xf32>
    %372 = math.exp %371 : vector<2x32xf32>
    %cst_121 = arith.constant 1.000000e+00 : f32
    %373 = vector.broadcast %cst_121 : f32 to vector<2x32xf32>
    %374 = arith.addf %373, %372 : vector<2x32xf32>
    %375 = arith.divf %373, %374 : vector<2x32xf32>
    %376 = vector.extract_strided_slice %363 {offsets = [0, 64], sizes = [2, 32], strides = [1, 1]} : vector<2x128xf32> to vector<2x32xf32>
    %377 = math.tanh %376 : vector<2x32xf32>
    %378 = vector.extract_strided_slice %363 {offsets = [0, 96], sizes = [2, 32], strides = [1, 1]} : vector<2x128xf32> to vector<2x32xf32>
    %379 = arith.negf %378 : vector<2x32xf32>
    %380 = math.exp %379 : vector<2x32xf32>
    %cst_122 = arith.constant 1.000000e+00 : f32
    %381 = vector.broadcast %cst_122 : f32 to vector<2x32xf32>
    %382 = arith.addf %381, %380 : vector<2x32xf32>
    %383 = arith.divf %381, %382 : vector<2x32xf32>
    %384 = arith.mulf %375, %356 : vector<2x32xf32>
    %385 = arith.mulf %369, %377 : vector<2x32xf32>
    %386 = arith.addf %384, %385 : vector<2x32xf32>
    %387 = math.tanh %386 : vector<2x32xf32>
    %388 = arith.mulf %383, %387 : vector<2x32xf32>
    %c3_i32_123 = arith.constant 3 : i32
    %389 = arith.index_cast %c3_i32_123 : i32 to index
    %c0_124 = arith.constant 0 : index
    %c0_125 = arith.constant 0 : index
    %390 = vector.load %arg12[%389, %c0_124, %c0_125] : memref<8x2x128xf32, #tpu.memory_space<vmem>>, vector<1x2x128xf32>
    %391 = vector.shape_cast %390 : vector<1x2x128xf32> to vector<2x128xf32>
    %cst_126 = arith.constant dense<0.000000e+00> : vector<2x128xf32>
    %392 = tpu.matmul %388, %296, %cst_126 {dimension_numbers = #tpu.dot_dimension_numbers<[1], [0], [0], [1], [0, 0, 1, 1], [], []>} : vector<2x32xf32>, vector<32x128xf32>, vector<2x128xf32> -> vector<2x128xf32>
    %393 = arith.addf %391, %392 : vector<2x128xf32>
    %394 = vector.extract_strided_slice %393 {offsets = [0, 0], sizes = [2, 32], strides = [1, 1]} : vector<2x128xf32> to vector<2x32xf32>
    %395 = arith.negf %394 : vector<2x32xf32>
    %396 = math.exp %395 : vector<2x32xf32>
    %cst_127 = arith.constant 1.000000e+00 : f32
    %397 = vector.broadcast %cst_127 : f32 to vector<2x32xf32>
    %398 = arith.addf %397, %396 : vector<2x32xf32>
    %399 = arith.divf %397, %398 : vector<2x32xf32>
    %400 = vector.extract_strided_slice %393 {offsets = [0, 32], sizes = [2, 32], strides = [1, 1]} : vector<2x128xf32> to vector<2x32xf32>
    %401 = arith.negf %400 : vector<2x32xf32>
    %402 = math.exp %401 : vector<2x32xf32>
    %cst_128 = arith.constant 1.000000e+00 : f32
    %403 = vector.broadcast %cst_128 : f32 to vector<2x32xf32>
    %404 = arith.addf %403, %402 : vector<2x32xf32>
    %405 = arith.divf %403, %404 : vector<2x32xf32>
    %406 = vector.extract_strided_slice %393 {offsets = [0, 64], sizes = [2, 32], strides = [1, 1]} : vector<2x128xf32> to vector<2x32xf32>
    %407 = math.tanh %406 : vector<2x32xf32>
    %408 = vector.extract_strided_slice %393 {offsets = [0, 96], sizes = [2, 32], strides = [1, 1]} : vector<2x128xf32> to vector<2x32xf32>
    %409 = arith.negf %408 : vector<2x32xf32>
    %410 = math.exp %409 : vector<2x32xf32>
    %cst_129 = arith.constant 1.000000e+00 : f32
    %411 = vector.broadcast %cst_129 : f32 to vector<2x32xf32>
    %412 = arith.addf %411, %410 : vector<2x32xf32>
    %413 = arith.divf %411, %412 : vector<2x32xf32>
    %414 = arith.mulf %405, %386 : vector<2x32xf32>
    %415 = arith.mulf %399, %407 : vector<2x32xf32>
    %416 = arith.addf %414, %415 : vector<2x32xf32>
    %417 = math.tanh %416 : vector<2x32xf32>
    %418 = arith.mulf %413, %417 : vector<2x32xf32>
    %c4_i32_130 = arith.constant 4 : i32
    %419 = arith.index_cast %c4_i32_130 : i32 to index
    %c0_131 = arith.constant 0 : index
    %c0_132 = arith.constant 0 : index
    %420 = vector.load %arg12[%419, %c0_131, %c0_132] : memref<8x2x128xf32, #tpu.memory_space<vmem>>, vector<1x2x128xf32>
    %421 = vector.shape_cast %420 : vector<1x2x128xf32> to vector<2x128xf32>
    %cst_133 = arith.constant dense<0.000000e+00> : vector<2x128xf32>
    %422 = tpu.matmul %418, %296, %cst_133 {dimension_numbers = #tpu.dot_dimension_numbers<[1], [0], [0], [1], [0, 0, 1, 1], [], []>} : vector<2x32xf32>, vector<32x128xf32>, vector<2x128xf32> -> vector<2x128xf32>
    %423 = arith.addf %421, %422 : vector<2x128xf32>
    %424 = vector.extract_strided_slice %423 {offsets = [0, 0], sizes = [2, 32], strides = [1, 1]} : vector<2x128xf32> to vector<2x32xf32>
    %425 = arith.negf %424 : vector<2x32xf32>
    %426 = math.exp %425 : vector<2x32xf32>
    %cst_134 = arith.constant 1.000000e+00 : f32
    %427 = vector.broadcast %cst_134 : f32 to vector<2x32xf32>
    %428 = arith.addf %427, %426 : vector<2x32xf32>
    %429 = arith.divf %427, %428 : vector<2x32xf32>
    %430 = vector.extract_strided_slice %423 {offsets = [0, 32], sizes = [2, 32], strides = [1, 1]} : vector<2x128xf32> to vector<2x32xf32>
    %431 = arith.negf %430 : vector<2x32xf32>
    %432 = math.exp %431 : vector<2x32xf32>
    %cst_135 = arith.constant 1.000000e+00 : f32
    %433 = vector.broadcast %cst_135 : f32 to vector<2x32xf32>
    %434 = arith.addf %433, %432 : vector<2x32xf32>
    %435 = arith.divf %433, %434 : vector<2x32xf32>
    %436 = vector.extract_strided_slice %423 {offsets = [0, 64], sizes = [2, 32], strides = [1, 1]} : vector<2x128xf32> to vector<2x32xf32>
    %437 = math.tanh %436 : vector<2x32xf32>
    %438 = vector.extract_strided_slice %423 {offsets = [0, 96], sizes = [2, 32], strides = [1, 1]} : vector<2x128xf32> to vector<2x32xf32>
    %439 = arith.negf %438 : vector<2x32xf32>
    %440 = math.exp %439 : vector<2x32xf32>
    %cst_136 = arith.constant 1.000000e+00 : f32
    %441 = vector.broadcast %cst_136 : f32 to vector<2x32xf32>
    %442 = arith.addf %441, %440 : vector<2x32xf32>
    %443 = arith.divf %441, %442 : vector<2x32xf32>
    %444 = arith.mulf %435, %416 : vector<2x32xf32>
    %445 = arith.mulf %429, %437 : vector<2x32xf32>
    %446 = arith.addf %444, %445 : vector<2x32xf32>
    %447 = math.tanh %446 : vector<2x32xf32>
    %448 = arith.mulf %443, %447 : vector<2x32xf32>
    %c5_i32_137 = arith.constant 5 : i32
    %449 = arith.index_cast %c5_i32_137 : i32 to index
    %c0_138 = arith.constant 0 : index
    %c0_139 = arith.constant 0 : index
    %450 = vector.load %arg12[%449, %c0_138, %c0_139] : memref<8x2x128xf32, #tpu.memory_space<vmem>>, vector<1x2x128xf32>
    %451 = vector.shape_cast %450 : vector<1x2x128xf32> to vector<2x128xf32>
    %cst_140 = arith.constant dense<0.000000e+00> : vector<2x128xf32>
    %452 = tpu.matmul %448, %296, %cst_140 {dimension_numbers = #tpu.dot_dimension_numbers<[1], [0], [0], [1], [0, 0, 1, 1], [], []>} : vector<2x32xf32>, vector<32x128xf32>, vector<2x128xf32> -> vector<2x128xf32>
    %453 = arith.addf %451, %452 : vector<2x128xf32>
    %454 = vector.extract_strided_slice %453 {offsets = [0, 0], sizes = [2, 32], strides = [1, 1]} : vector<2x128xf32> to vector<2x32xf32>
    %455 = arith.negf %454 : vector<2x32xf32>
    %456 = math.exp %455 : vector<2x32xf32>
    %cst_141 = arith.constant 1.000000e+00 : f32
    %457 = vector.broadcast %cst_141 : f32 to vector<2x32xf32>
    %458 = arith.addf %457, %456 : vector<2x32xf32>
    %459 = arith.divf %457, %458 : vector<2x32xf32>
    %460 = vector.extract_strided_slice %453 {offsets = [0, 32], sizes = [2, 32], strides = [1, 1]} : vector<2x128xf32> to vector<2x32xf32>
    %461 = arith.negf %460 : vector<2x32xf32>
    %462 = math.exp %461 : vector<2x32xf32>
    %cst_142 = arith.constant 1.000000e+00 : f32
    %463 = vector.broadcast %cst_142 : f32 to vector<2x32xf32>
    %464 = arith.addf %463, %462 : vector<2x32xf32>
    %465 = arith.divf %463, %464 : vector<2x32xf32>
    %466 = vector.extract_strided_slice %453 {offsets = [0, 64], sizes = [2, 32], strides = [1, 1]} : vector<2x128xf32> to vector<2x32xf32>
    %467 = math.tanh %466 : vector<2x32xf32>
    %468 = vector.extract_strided_slice %453 {offsets = [0, 96], sizes = [2, 32], strides = [1, 1]} : vector<2x128xf32> to vector<2x32xf32>
    %469 = arith.negf %468 : vector<2x32xf32>
    %470 = math.exp %469 : vector<2x32xf32>
    %cst_143 = arith.constant 1.000000e+00 : f32
    %471 = vector.broadcast %cst_143 : f32 to vector<2x32xf32>
    %472 = arith.addf %471, %470 : vector<2x32xf32>
    %473 = arith.divf %471, %472 : vector<2x32xf32>
    %474 = arith.mulf %465, %446 : vector<2x32xf32>
    %475 = arith.mulf %459, %467 : vector<2x32xf32>
    %476 = arith.addf %474, %475 : vector<2x32xf32>
    %477 = math.tanh %476 : vector<2x32xf32>
    %478 = arith.mulf %473, %477 : vector<2x32xf32>
    %c6_i32_144 = arith.constant 6 : i32
    %479 = arith.index_cast %c6_i32_144 : i32 to index
    %c0_145 = arith.constant 0 : index
    %c0_146 = arith.constant 0 : index
    %480 = vector.load %arg12[%479, %c0_145, %c0_146] : memref<8x2x128xf32, #tpu.memory_space<vmem>>, vector<1x2x128xf32>
    %481 = vector.shape_cast %480 : vector<1x2x128xf32> to vector<2x128xf32>
    %cst_147 = arith.constant dense<0.000000e+00> : vector<2x128xf32>
    %482 = tpu.matmul %478, %296, %cst_147 {dimension_numbers = #tpu.dot_dimension_numbers<[1], [0], [0], [1], [0, 0, 1, 1], [], []>} : vector<2x32xf32>, vector<32x128xf32>, vector<2x128xf32> -> vector<2x128xf32>
    %483 = arith.addf %481, %482 : vector<2x128xf32>
    %484 = vector.extract_strided_slice %483 {offsets = [0, 0], sizes = [2, 32], strides = [1, 1]} : vector<2x128xf32> to vector<2x32xf32>
    %485 = arith.negf %484 : vector<2x32xf32>
    %486 = math.exp %485 : vector<2x32xf32>
    %cst_148 = arith.constant 1.000000e+00 : f32
    %487 = vector.broadcast %cst_148 : f32 to vector<2x32xf32>
    %488 = arith.addf %487, %486 : vector<2x32xf32>
    %489 = arith.divf %487, %488 : vector<2x32xf32>
    %490 = vector.extract_strided_slice %483 {offsets = [0, 32], sizes = [2, 32], strides = [1, 1]} : vector<2x128xf32> to vector<2x32xf32>
    %491 = arith.negf %490 : vector<2x32xf32>
    %492 = math.exp %491 : vector<2x32xf32>
    %cst_149 = arith.constant 1.000000e+00 : f32
    %493 = vector.broadcast %cst_149 : f32 to vector<2x32xf32>
    %494 = arith.addf %493, %492 : vector<2x32xf32>
    %495 = arith.divf %493, %494 : vector<2x32xf32>
    %496 = vector.extract_strided_slice %483 {offsets = [0, 64], sizes = [2, 32], strides = [1, 1]} : vector<2x128xf32> to vector<2x32xf32>
    %497 = math.tanh %496 : vector<2x32xf32>
    %498 = vector.extract_strided_slice %483 {offsets = [0, 96], sizes = [2, 32], strides = [1, 1]} : vector<2x128xf32> to vector<2x32xf32>
    %499 = arith.negf %498 : vector<2x32xf32>
    %500 = math.exp %499 : vector<2x32xf32>
    %cst_150 = arith.constant 1.000000e+00 : f32
    %501 = vector.broadcast %cst_150 : f32 to vector<2x32xf32>
    %502 = arith.addf %501, %500 : vector<2x32xf32>
    %503 = arith.divf %501, %502 : vector<2x32xf32>
    %504 = arith.mulf %495, %476 : vector<2x32xf32>
    %505 = arith.mulf %489, %497 : vector<2x32xf32>
    %506 = arith.addf %504, %505 : vector<2x32xf32>
    %507 = math.tanh %506 : vector<2x32xf32>
    %508 = arith.mulf %503, %507 : vector<2x32xf32>
    %c7_i32_151 = arith.constant 7 : i32
    %509 = arith.index_cast %c7_i32_151 : i32 to index
    %c0_152 = arith.constant 0 : index
    %c0_153 = arith.constant 0 : index
    %510 = vector.load %arg12[%509, %c0_152, %c0_153] : memref<8x2x128xf32, #tpu.memory_space<vmem>>, vector<1x2x128xf32>
    %511 = vector.shape_cast %510 : vector<1x2x128xf32> to vector<2x128xf32>
    %cst_154 = arith.constant dense<0.000000e+00> : vector<2x128xf32>
    %512 = tpu.matmul %508, %296, %cst_154 {dimension_numbers = #tpu.dot_dimension_numbers<[1], [0], [0], [1], [0, 0, 1, 1], [], []>} : vector<2x32xf32>, vector<32x128xf32>, vector<2x128xf32> -> vector<2x128xf32>
    %513 = arith.addf %511, %512 : vector<2x128xf32>
    %514 = vector.extract_strided_slice %513 {offsets = [0, 0], sizes = [2, 32], strides = [1, 1]} : vector<2x128xf32> to vector<2x32xf32>
    %515 = arith.negf %514 : vector<2x32xf32>
    %516 = math.exp %515 : vector<2x32xf32>
    %cst_155 = arith.constant 1.000000e+00 : f32
    %517 = vector.broadcast %cst_155 : f32 to vector<2x32xf32>
    %518 = arith.addf %517, %516 : vector<2x32xf32>
    %519 = arith.divf %517, %518 : vector<2x32xf32>
    %520 = vector.extract_strided_slice %513 {offsets = [0, 32], sizes = [2, 32], strides = [1, 1]} : vector<2x128xf32> to vector<2x32xf32>
    %521 = arith.negf %520 : vector<2x32xf32>
    %522 = math.exp %521 : vector<2x32xf32>
    %cst_156 = arith.constant 1.000000e+00 : f32
    %523 = vector.broadcast %cst_156 : f32 to vector<2x32xf32>
    %524 = arith.addf %523, %522 : vector<2x32xf32>
    %525 = arith.divf %523, %524 : vector<2x32xf32>
    %526 = vector.extract_strided_slice %513 {offsets = [0, 64], sizes = [2, 32], strides = [1, 1]} : vector<2x128xf32> to vector<2x32xf32>
    %527 = math.tanh %526 : vector<2x32xf32>
    %528 = vector.extract_strided_slice %513 {offsets = [0, 96], sizes = [2, 32], strides = [1, 1]} : vector<2x128xf32> to vector<2x32xf32>
    %529 = arith.negf %528 : vector<2x32xf32>
    %530 = math.exp %529 : vector<2x32xf32>
    %cst_157 = arith.constant 1.000000e+00 : f32
    %531 = vector.broadcast %cst_157 : f32 to vector<2x32xf32>
    %532 = arith.addf %531, %530 : vector<2x32xf32>
    %533 = arith.divf %531, %532 : vector<2x32xf32>
    %534 = arith.mulf %525, %506 : vector<2x32xf32>
    %535 = arith.mulf %519, %527 : vector<2x32xf32>
    %536 = arith.addf %534, %535 : vector<2x32xf32>
    %537 = math.tanh %536 : vector<2x32xf32>
    %538 = arith.mulf %533, %537 : vector<2x32xf32>
    %c8_i32_158 = arith.constant 8 : i32
    %c0_159 = arith.constant 0 : index
    %c0_160 = arith.constant 0 : index
    %539 = vector.load %arg16[%c0_159, %c0_160] : memref<2x32xf32, #tpu.memory_space<vmem>>, vector<2x32xf32>
    tpu.vector_store %arg16[%c0_159, %c0_160], %538 {strides = array<i32>} : memref<2x32xf32, #tpu.memory_space<vmem>>, vector<2x32xf32>,
    %c0_161 = arith.constant 0 : index
    %c0_162 = arith.constant 0 : index
    %540 = vector.load %arg17[%c0_161, %c0_162] : memref<2x32xf32, #tpu.memory_space<vmem>>, vector<2x32xf32>
    tpu.vector_store %arg17[%c0_161, %c0_162], %536 {strides = array<i32>} : memref<2x32xf32, #tpu.memory_space<vmem>>, vector<2x32xf32>,
    %c0_i32_163 = arith.constant 0 : i32
    %541 = arith.cmpi eq, %arg1, %c0_i32_163 : i32
    %542 = arith.extui %541 : i1 to i32
    %c0_i32_164 = arith.constant 0 : i32
    %543 = arith.cmpi ne, %542, %c0_i32_164 : i32
    scf.if %543 {
      %c0_165 = arith.constant 0 : index
      %c0_166 = arith.constant 0 : index
      %544 = vector.load %arg9[%c0_165, %c0_166] : memref<32x32xf32, #tpu.memory_space<vmem>>, vector<32x32xf32>
      %cst_167 = arith.constant dense<0.000000e+00> : vector<2x32xf32>
      %545 = tpu.matmul %538, %544, %cst_167 {dimension_numbers = #tpu.dot_dimension_numbers<[1], [0], [0], [1], [0, 0, 1, 1], [], []>} : vector<2x32xf32>, vector<32x32xf32>, vector<2x32xf32> -> vector<2x32xf32>
      %c0_168 = arith.constant 0 : index
      %c0_169 = arith.constant 0 : index
      %546 = vector.load %arg10[%c0_168, %c0_169] : memref<1x32xf32, #tpu.memory_space<vmem>>, vector<1x32xf32>
      %547 = vector.broadcast %546 : vector<1x32xf32> to vector<2x32xf32>
      %548 = arith.addf %545, %547 : vector<2x32xf32>
      %cst_170 = arith.constant 0.000000e+00 : f32
      %549 = vector.broadcast %cst_170 : f32 to vector<2x32xf32>
      %550 = arith.maximumf %548, %549 : vector<2x32xf32>
      %551 = arith.mulf %550, %550 : vector<2x32xf32>
      %cst_171 = arith.constant dense<0.000000e+00> : vector<2xf32>
      %552 = vector.multi_reduction <add>, %551, %cst_171 [1] : vector<2x32xf32> to vector<2xf32>
      %553 = vector.shape_cast %552 : vector<2xf32> to vector<2x1xf32>
      %554 = math.sqrt %553 : vector<2x1xf32>
      %cst_172 = arith.constant 9.99999974E-6 : f32
      %555 = vector.broadcast %cst_172 : f32 to vector<2x1xf32>
      %556 = arith.addf %554, %555 : vector<2x1xf32>
      %557 = vector.broadcast %556 : vector<2x1xf32> to vector<2x32xf32>
      %558 = arith.divf %550, %557 : vector<2x32xf32>
      %c0_173 = arith.constant 0 : index
      %c0_174 = arith.constant 0 : index
      %559 = vector.load %arg11[%c0_173, %c0_174] : memref<2x32xf32, #tpu.memory_space<vmem>>, vector<2x32xf32>
      tpu.vector_store %arg11[%c0_173, %c0_174], %558 {strides = array<i32>} : memref<2x32xf32, #tpu.memory_space<vmem>>, vector<2x32xf32>,
    } else {
    }
    return
  }
  func.func @transform_0(%arg0: i32, %arg1: i32) -> (i32, i32, i32) {
    %c0_i32 = arith.constant 0 : i32
    %c0_i32_0 = arith.constant 0 : i32
    return %arg1, %arg0, %c0_i32 : i32, i32, i32
  }
  func.func @transform_1(%arg0: i32, %arg1: i32) -> (i32, i32) {
    %c0_i32 = arith.constant 0 : i32
    %c0_i32_0 = arith.constant 0 : i32
    %c0_i32_1 = arith.constant 0 : i32
    return %c0_i32, %c0_i32_0 : i32, i32
  }
  func.func @transform_2(%arg0: i32, %arg1: i32) -> (i32, i32) {
    %c0_i32 = arith.constant 0 : i32
    %c0_i32_0 = arith.constant 0 : i32
    %c0_i32_1 = arith.constant 0 : i32
    return %c0_i32, %c0_i32_0 : i32, i32
  }
  func.func @transform_3(%arg0: i32, %arg1: i32) -> (i32, i32) {
    %c0_i32 = arith.constant 0 : i32
    %c0_i32_0 = arith.constant 0 : i32
    %c0_i32_1 = arith.constant 0 : i32
    return %c0_i32, %c0_i32_0 : i32, i32
  }
  func.func @transform_4(%arg0: i32, %arg1: i32) -> (i32, i32) {
    %c0_i32 = arith.constant 0 : i32
    %c0_i32_0 = arith.constant 0 : i32
    %c0_i32_1 = arith.constant 0 : i32
    return %c0_i32, %c0_i32_0 : i32, i32
  }
  func.func @transform_5(%arg0: i32, %arg1: i32) -> (i32, i32) {
    %c0_i32 = arith.constant 0 : i32
    %c0_i32_0 = arith.constant 0 : i32
    %c0_i32_1 = arith.constant 0 : i32
    return %c0_i32, %c0_i32_0 : i32, i32
  }
  func.func @transform_6(%arg0: i32, %arg1: i32) -> (i32, i32) {
    %c0_i32 = arith.constant 0 : i32
    %c0_i32_0 = arith.constant 0 : i32
    %c0_i32_1 = arith.constant 0 : i32
    return %c0_i32, %c0_i32_0 : i32, i32
  }
  func.func @transform_7(%arg0: i32, %arg1: i32) -> (i32, i32) {
    %c0_i32 = arith.constant 0 : i32
    %c0_i32_0 = arith.constant 0 : i32
    %c0_i32_1 = arith.constant 0 : i32
    return %c0_i32, %c0_i32_0 : i32, i32
  }
  func.func @transform_8(%arg0: i32, %arg1: i32) -> (i32, i32) {
    %c0_i32 = arith.constant 0 : i32
    %c0_i32_0 = arith.constant 0 : i32
    %c0_i32_1 = arith.constant 0 : i32
    return %c0_i32, %c0_i32_0 : i32, i32
  }
  func.func @transform_9(%arg0: i32, %arg1: i32) -> (i32, i32) {
    %c0_i32 = arith.constant 0 : i32
    %c0_i32_0 = arith.constant 0 : i32
    return %arg0, %c0_i32 : i32, i32
  }
}

</mosaic_0001>

<llo_original>
// kernel: tpu_custom_call.1
$region0: #{tpu_custom_call.1}
  #allocation0 [shape = 'u32[]', space=smem, size = 0x4, offset = 0x4, fixed_abs, tag = 'smem constant byte address 0x4 - core index']
  #allocation1 [shape = 'u32[144,128]{1,0:T(1,128)}', space=vmem, size = 0x12000, scoped, tag = 'internal scratch']
  #allocation2 [shape = 'f32[8,2,128]{2,1,0:T(2,128)}', space=vmem, size = 0x2000, scoped, tag = 'scratch operand']
  #allocation3 [shape = 'f32[8,2,32]{2,1,0:T(2,128)}', space=vmem, size = 0x2000, scoped, tag = 'scratch operand']
  #allocation4 [shape = 'f32[2,32]{1,0:T(2,128)}', space=vmem, size = 0x400, scoped, tag = 'scratch operand']
  #allocation5 [shape = 'f32[2,32]{1,0:T(2,128)}', space=vmem, size = 0x400, scoped, tag = 'scratch operand']
  #allocation6 [shape = 'f32[2,32]{1,0:T(2,128)}', space=vmem, size = 0x400, scoped, tag = 'scratch operand']
  #allocation7 [shape = 'f32[2,32]{1,0:T(2,128)}', space=vmem, size = 0x400, scoped, tag = 'scratch operand']
  %s0 = inlined_call_operand.hbm [shape: f32[8,2,16], index: 0, kind: input, shape index: {}]
  %s1 = inlined_call_operand.hbm [shape: f32[16,128], index: 1, kind: input, shape index: {}]
  %s2 = inlined_call_operand.hbm [shape: f32[32,128], index: 2, kind: input, shape index: {}]
  %s3 = inlined_call_operand.vmem [shape: f32[1,128], index: 3, kind: input, shape index: {}]
  %s4 = inlined_call_operand.hbm [shape: f32[32,128], index: 4, kind: input, shape index: {}]
  %s5 = inlined_call_operand.hbm [shape: f32[32,128], index: 5, kind: input, shape index: {}]
  %s6 = inlined_call_operand.vmem [shape: f32[1,128], index: 6, kind: input, shape index: {}]
  %s7 = inlined_call_operand.hbm [shape: f32[32,32], index: 7, kind: input, shape index: {}]
  %s8 = inlined_call_operand.vmem [shape: f32[1,32], index: 8, kind: input, shape index: {}]
  %s9 = inlined_call_operand.hbm [shape: f32[2,32], index: 9, kind: output, shape index: {}]
  %s10 = sld [smem:[#allocation0]]
  $region78: #{tpu_custom_call.1} parent=0
    _
  %s12 = ssub.s32 1, %s10
  %s13 = scalar_select 0, %s12, %s10
  $region1: #{tpu_custom_call.1} parent=0
    #allocation8 [shape = 'u8[8192]{0}', space=vmem, size = 0x2000, scoped, tag = 'input window, operand 0, single buffered']
    #allocation9 [shape = 's32[1]{0}', space=sflag, size = 0x4, scoped, tag = 'scoped memory for tpu_custom_call.1']
    #allocation10 [shape = 's32[1]{0}', space=sflag, size = 0x4, scoped, tag = 'scoped memory for tpu_custom_call.1']
    #allocation11 [shape = 'u8[8192]{0}', space=vmem, size = 0x2000, scoped, tag = 'input window, operand 1, single buffered']
    #allocation12 [shape = 's32[1]{0}', space=sflag, size = 0x4, scoped, tag = 'scoped memory for tpu_custom_call.1']
    #allocation13 [shape = 'u8[16384]{0}', space=vmem, size = 0x4000, scoped, tag = 'input window, operand 2, single buffered']
    #allocation14 [shape = 'u8[16384]{0}', space=vmem, size = 0x4000, scoped, tag = 'input window, operand 4, single buffered']
    #allocation15 [shape = 's32[1]{0}', space=sflag, size = 0x4, scoped, tag = 'scoped memory for tpu_custom_call.1']
    #allocation16 [shape = 'u8[16384]{0}', space=vmem, size = 0x4000, scoped, tag = 'input window, operand 5, single buffered']
    #allocation17 [shape = 'u8[16384]{0}', space=vmem, size = 0x4000, scoped, tag = 'input window, operand 7, single buffered']
    #allocation18 [shape = 's32[1]{0}', space=sflag, size = 0x4, scoped, tag = 'scoped memory for tpu_custom_call.1']
    #allocation19 [shape = 'u8[1024]{0}', space=vmem, size = 0x400, scoped, tag = 'output window, operand 0, single buffered']
    %14 = vsyncpa [#allocation9], 0
    %15 = vsyncpa [#allocation12], 0
    %16 = vsyncpa [#allocation15], 0
    %17 = vsyncpa [#allocation18], 0
    %18 = vsyncpa [#allocation10], 0
    // Predicated region
    $region2: #{tpu_custom_call.1} parent=1 // pred_check
      _
    $region3: #{tpu_custom_call.1} parent=1 // pred_check_branch
      %20 = sbr.rel (0) target = $region5
    $region4: #{tpu_custom_call.1} parent=1 // pred_region
      %s22 = ssub.s32 256, 256
      %23 = vsyncadd [#allocation9], %s22
      %s24 = sshll.u32 [#allocation8], 4
      %s25 = int_to_ptr.vmem [resolvable:$true] %s24
      %30 = dma.hbm_to_vmem [thread:$0]  %s0, 256, %s25, [#allocation9], 32, 32, 2
    $region5: #{tpu_custom_call.1} parent=1 // pred_fallthru
      _
    // Predicated region
    $region6: #{tpu_custom_call.1} parent=1 // pred_check
      _
    $region7: #{tpu_custom_call.1} parent=1 // pred_check_branch
      %32 = sbr.rel (0) target = $region9
    $region8: #{tpu_custom_call.1} parent=1 // pred_region
      %s34 = ssub.s32 256, 256
      %35 = vsyncadd [#allocation12], %s34
      %s36 = sshll.u32 [#allocation11], 4
      %s37 = int_to_ptr.vmem [resolvable:$true] %s36
      %42 = dma.hbm_to_vmem [thread:$0]  %s1, 256, %s37, [#allocation12], 128, 128, 8
    $region9: #{tpu_custom_call.1} parent=1 // pred_fallthru
      _
    // Predicated region
    $region10: #{tpu_custom_call.1} parent=1 // pred_check
      _
    $region11: #{tpu_custom_call.1} parent=1 // pred_check_branch
      %44 = sbr.rel (0) target = $region13
    $region12: #{tpu_custom_call.1} parent=1 // pred_region
      %s46 = ssub.s32 512, 512
      %47 = vsyncadd [#allocation12], %s46
      %s48 = sshll.u32 [#allocation13], 4
      %s49 = int_to_ptr.vmem [resolvable:$true] %s48
      %54 = dma.hbm_to_vmem [thread:$0]  %s2, 512, %s49, [#allocation12], 128, 128, 8
    $region13: #{tpu_custom_call.1} parent=1 // pred_fallthru
      _
    // Predicated region
    $region14: #{tpu_custom_call.1} parent=1 // pred_check
      _
    $region15: #{tpu_custom_call.1} parent=1 // pred_check_branch
      %56 = sbr.rel (0) target = $region17
    $region16: #{tpu_custom_call.1} parent=1 // pred_region
      _
    $region17: #{tpu_custom_call.1} parent=1 // pred_fallthru
      _
    // Predicated region
    $region18: #{tpu_custom_call.1} parent=1 // pred_check
      _
    $region19: #{tpu_custom_call.1} parent=1 // pred_check_branch
      %58 = sbr.rel (0) target = $region21
    $region20: #{tpu_custom_call.1} parent=1 // pred_region
      %s60 = ssub.s32 512, 512
      %61 = vsyncadd [#allocation15], %s60
      %s62 = sshll.u32 [#allocation14], 4
      %s63 = int_to_ptr.vmem [resolvable:$true] %s62
      %68 = dma.hbm_to_vmem [thread:$0]  %s4, 512, %s63, [#allocation15], 128, 128, 8
    $region21: #{tpu_custom_call.1} parent=1 // pred_fallthru
      _
    // Predicated region
    $region22: #{tpu_custom_call.1} parent=1 // pred_check
      _
    $region23: #{tpu_custom_call.1} parent=1 // pred_check_branch
      %70 = sbr.rel (0) target = $region25
    $region24: #{tpu_custom_call.1} parent=1 // pred_region
      %s72 = ssub.s32 512, 512
      %73 = vsyncadd [#allocation15], %s72
      %s74 = sshll.u32 [#allocation16], 4
      %s75 = int_to_ptr.vmem [resolvable:$true] %s74
      %80 = dma.hbm_to_vmem [thread:$0]  %s5, 512, %s75, [#allocation15], 128, 128, 8
    $region25: #{tpu_custom_call.1} parent=1 // pred_fallthru
      _
    // Predicated region
    $region26: #{tpu_custom_call.1} parent=1 // pred_check
      _
    $region27: #{tpu_custom_call.1} parent=1 // pred_check_branch
      %82 = sbr.rel (0) target = $region29
    $region28: #{tpu_custom_call.1} parent=1 // pred_region
      _
    $region29: #{tpu_custom_call.1} parent=1 // pred_fallthru
      _
    // Predicated region
    $region30: #{tpu_custom_call.1} parent=1 // pred_check
      _
    $region31: #{tpu_custom_call.1} parent=1 // pred_check_branch
      %84 = sbr.rel (0) target = $region33
    $region32: #{tpu_custom_call.1} parent=1 // pred_region
      %s86 = ssub.s32 512, 512
      %87 = vsyncadd [#allocation18], %s86
      %s88 = sshll.u32 [#allocation17], 4
      %s89 = int_to_ptr.vmem [resolvable:$true] %s88
      %94 = dma.hbm_to_vmem [thread:$0]  %s7, 512, %s89, [#allocation18], 128, 128, 8
    $region33: #{tpu_custom_call.1} parent=1 // pred_fallthru
      _
    // Predicated region
    $region34: #{tpu_custom_call.1} parent=1 // pred_check
      _
    $region35: #{tpu_custom_call.1} parent=1 // pred_check_branch
      %96 = sbr.rel (0) target = $region37
    $region36: #{tpu_custom_call.1} parent=1 // pred_region
      _
    $region37: #{tpu_custom_call.1} parent=1 // pred_fallthru
      _
    // Predicated region
    $region38: #{tpu_custom_call.1} parent=1 // pred_check
      _
    $region39: #{tpu_custom_call.1} parent=1 // pred_check_branch
      %98 = sbr.rel (0) target = $region41
    $region40: #{tpu_custom_call.1} parent=1 // pred_region
      %99 = dma.done [#allocation9], 256
    $region41: #{tpu_custom_call.1} parent=1 // pred_fallthru
      _
    // Predicated region
    $region42: #{tpu_custom_call.1} parent=1 // pred_check
      _
    $region43: #{tpu_custom_call.1} parent=1 // pred_check_branch
      %101 = sbr.rel (0) target = $region45
    $region44: #{tpu_custom_call.1} parent=1 // pred_region
      %102 = dma.done [#allocation12], 256
    $region45: #{tpu_custom_call.1} parent=1 // pred_fallthru
      _
    // Predicated region
    $region46: #{tpu_custom_call.1} parent=1 // pred_check
      _
    $region47: #{tpu_custom_call.1} parent=1 // pred_check_branch
      %104 = sbr.rel (0) target = $region49
    $region48: #{tpu_custom_call.1} parent=1 // pred_region
      %105 = dma.done [#allocation12], 512
    $region49: #{tpu_custom_call.1} parent=1 // pred_fallthru
      _
    // Predicated region
    $region50: #{tpu_custom_call.1} parent=1 // pred_check
      _
    $region51: #{tpu_custom_call.1} parent=1 // pred_check_branch
      %107 = sbr.rel (0) target = $region53
    $region52: #{tpu_custom_call.1} parent=1 // pred_region
      %108 = dma.done [#allocation15], 512
    $region53: #{tpu_custom_call.1} parent=1 // pred_fallthru
      _
    // Predicated region
    $region54: #{tpu_custom_call.1} parent=1 // pred_check
      _
    $region55: #{tpu_custom_call.1} parent=1 // pred_check_branch
      %110 = sbr.rel (0) target = $region57
    $region56: #{tpu_custom_call.1} parent=1 // pred_region
      %111 = dma.done [#allocation15], 512
    $region57: #{tpu_custom_call.1} parent=1 // pred_fallthru
      _
    // Predicated region
    $region58: #{tpu_custom_call.1} parent=1 // pred_check
      _
    $region59: #{tpu_custom_call.1} parent=1 // pred_check_branch
      %113 = sbr.rel (0) target = $region61
    $region60: #{tpu_custom_call.1} parent=1 // pred_region
      %114 = dma.done [#allocation18], 512
    $region61: #{tpu_custom_call.1} parent=1 // pred_fallthru
      _
    %p115 = scmp.eq.s32.totalorder 0, 0
    // Predicated region
    $region62: #{tpu_custom_call.1} parent=1 // pred_check
      %p116 = pneg %p115
    $region63: #{tpu_custom_call.1} parent=1 // pred_check_branch
      %118 = sbr.rel (%p116) target = $region65
    $region64: #{tpu_custom_call.1} parent=1 // pred_region
      %vm119 = vcmask 254976
      %120 = vst.msk [vmem:[#allocation4] sm:$0x3] %vm119, 0.0
      %121 = vst.msk [vmem:[#allocation5] sm:$0x3] %vm119, 0.0
      %122 = vst.msk [vmem:[#allocation6] sm:$0x3] %vm119, 0.0
      %123 = vst.msk [vmem:[#allocation7] sm:$0x3] %vm119, 0.0
    $region65: #{tpu_custom_call.1} parent=1 // pred_fallthru
      _
    %v124 = vld [vmem:[#allocation8] sm:$0x3]
    %v125 = vld [vmem:[#allocation8 + $0x2] sm:$0x3]
    %v126 = vld [vmem:[#allocation8 + $0x4] sm:$0x3]
    %v127 = vld [vmem:[#allocation8 + $0x6] sm:$0x3]
    %v128 = vld [vmem:[#allocation8 + $0x8] sm:$0x3]
    %v129 = vld [vmem:[#allocation8 + $0xa] sm:$0x3]
    %v130 = vld [vmem:[#allocation8 + $0xc] sm:$0x3]
    %v131 = vld [vmem:[#allocation8 + $0xe] sm:$0x3]
    %v132 = vld [vmem:[#allocation11] sm:$0xff]
    %v133 = vld [vmem:[#allocation11 + $0x8] sm:$0xff]
    %v134 = vld [vmem:[%s3] sm:$0x1]
    %v136 = vlaneseq
    %v137 = vshrl.u32 %v136, 7
    %v138 = vsub.s32 0, %v137
    %v139 = vrot.slane %v134, %v138
    %v148 = vcombine.low %v124, %v125
    %v149 = vcombine.low %v126, %v127
    %v151 = vunpack.c.l.s4 1983009808
    %v152 = vunpack.c.0.s8 %v151
    %v153 = vlaneseq
    %v154 = vshrl.u32 %v153, 7
    %v155 = vsub.s32 %v152, %v154
    %v156 = vrot.slane %v148, %v155
    %v158 = vunpack.c.l.s4 1983009808
    %v159 = vunpack.c.0.s8 %v158
    %v160 = vlaneseq
    %v161 = vshrl.u32 %v160, 7
    %v162 = vsub.s32 %v159, %v161
    %v163 = vrot.slane %v149, %v162
    %v164 = vcombine.low %v156, %v163
    %v165 = vcombine.low %v128, %v129
    %v166 = vcombine.low %v130, %v131
    %v168 = vunpack.c.l.s4 1983009808
    %v169 = vunpack.c.0.s8 %v168
    %v170 = vlaneseq
    %v171 = vshrl.u32 %v170, 7
    %v172 = vsub.s32 %v169, %v171
    %v173 = vrot.slane %v165, %v172
    %v175 = vunpack.c.l.s4 1983009808
    %v176 = vunpack.c.0.s8 %v175
    %v177 = vlaneseq
    %v178 = vshrl.u32 %v177, 7
    %v179 = vsub.s32 %v176, %v178
    %v180 = vrot.slane %v166, %v179
    %v181 = vcombine.low %v173, %v180
    %v182 = vcombine.low %v139, %v139
    %v184 = vunpack.c.l.s4 1983009808
    %v185 = vunpack.c.0.s8 %v184
    %v186 = vlaneseq
    %v187 = vshrl.u32 %v186, 7
    %v188 = vsub.s32 %v185, %v187
    %v189 = vrot.slane %v182, %v188
    %v190 = vcombine.low %v189, %v189
    %vm192 = vcmask 130048
    %v193 = vsel %vm192, %v164, 0
    %v195 = vsel %vm192, %v181, 0
    %197 = vmatprep.subr.mxu0 0.0
    %198 = vmatpush1.msra.mxu0 %v132
    %199 = vmatprep.subr.mxu0 0.0
    %200 = vmatpush1.msra.mxu0 %v133
    %201 = vmatprep.subr.mxu0 0.0
    %202 = vmatpush1.msra.mxu0 0.0
    %203 = vmatprep.subr.mxu0 0.0
    %204 = vmatpush1.msra.mxu0 0.0
    %205 = vmatprep.subr.mxu0 0.0
    %206 = vmatpush1.msra.mxu0 0.0
    %207 = vmatprep.subr.mxu0 0.0
    %208 = vmatpush1.msra.mxu0 0.0
    %209 = vmatprep.subr.mxu0 0.0
    %210 = vmatpush1.msra.mxu0 0.0
    %211 = vmatprep.subr.mxu0 0.0
    %212 = vmatpush1.msra.mxu0 0.0
    %213 = vmatprep.subr.mxu0 0.0
    %214 = vmatpush1.msra.mxu0 0.0
    %215 = vmatprep.subr.mxu0 0.0
    %216 = vmatpush1.msra.mxu0 0.0
    %217 = vmatprep.subr.mxu0 0.0
    %218 = vmatpush1.msra.mxu0 0.0
    %219 = vmatprep.subr.mxu0 0.0
    %220 = vmatpush1.msra.mxu0 0.0
    %221 = vmatprep.subr.mxu0 0.0
    %222 = vmatpush1.msra.mxu0 0.0
    %223 = vmatprep.subr.mxu0 0.0
    %224 = vmatpush1.msra.mxu0 0.0
    %225 = vmatprep.subr.mxu0 0.0
    %226 = vmatpush1.msra.mxu0 0.0
    %227 = vmatprep.subr.mxu0 0.0
    %228 = vmatpush1.msra.mxu0 0.0
    %229 = vmatprep.subr.mxu0 0.0
    %230 = vmatpush1.msra.mxu0 0.0
    %231 = vmatprep.subr.mxu0 0.0
    %232 = vmatpush1.msra.mxu0 0.0
    %233 = vmatprep.subr.mxu0 0.0
    %234 = vmatpush1.msra.mxu0 0.0
    %235 = vmatprep.subr.mxu0 0.0
    %236 = vmatpush1.msra.mxu0 0.0
    %237 = vmatprep.subr.mxu0 0.0
    %238 = vmatpush1.msra.mxu0 0.0
    %239 = vmatprep.subr.mxu0 0.0
    %240 = vmatpush1.msra.mxu0 0.0
    %241 = vmatprep.subr.mxu0 0.0
    %242 = vmatpush1.msra.mxu0 0.0
    %243 = vmatprep.subr.mxu0 0.0
    %244 = vmatpush1.msra.mxu0 0.0
    %245 = vmatprep.subr.mxu0 0.0
    %246 = vmatpush1.msra.mxu0 0.0
    %247 = vmatprep.subr.mxu0 0.0
    %248 = vmatpush1.msra.mxu0 0.0
    %249 = vmatprep.subr.mxu0 0.0
    %250 = vmatpush1.msra.mxu0 0.0
    %251 = vmatprep.subr.mxu0 0.0
    %252 = vmatpush1.msra.mxu0 0.0
    %253 = vmatprep.subr.mxu0 0.0
    %254 = vmatpush1.msra.mxu0 0.0
    %255 = vmatprep.subr.mxu0 0.0
    %256 = vmatpush1.msra.mxu0 0.0
    %257 = vmatprep.subr.mxu0 0.0
    %258 = vmatpush1.msra.mxu0 0.0
    %259 = vmatprep.subr.mxu0 0.0
    %260 = vmatpush1.msra.mxu0 0.0
    %261 = vmatprep.mubr.f32.mxu0 0.0
    %262 = vmatmul.mubr.f32.gmra.mrb[0].mxu0 %v193
    %v263 = vpop.f32.mrb[0].mxu0
    %v264 = vadd.f32 %v190, %v263
    %v265 = vpop.f32.mrb[0].mxu0
    %266 = vmatprep.mubr.f32.mxu0 0.0
    %267 = vmatmul.mubr.f32.gmra.mrb[0].mxu0 %v195
    %v268 = vpop.f32.mrb[0].mxu0
    %v269 = vadd.f32 %v190, %v268
    %v270 = vpop.f32.mrb[0].mxu0
    %271 = vdwg.mxu0
    %v274 = vcombine.high %v264, %v264
    %v276 = vunpack.c.l.s4 1983009808
    %v277 = vunpack.c.0.s8 %v276
    %v278 = vlaneseq
    %v279 = vshrl.u32 %v278, 7
    %v280 = vsub.s32 %v277, %v279
    %v281 = vrot.slane %v264, %v280
    %v283 = vunpack.c.l.s4 1983009808
    %v284 = vunpack.c.0.s8 %v283
    %v285 = vlaneseq
    %v286 = vshrl.u32 %v285, 7
    %v287 = vsub.s32 %v284, %v286
    %v288 = vrot.slane %v274, %v287
    %v289 = vcombine.high %v281, %v281
    %v290 = vcombine.high %v288, %v288
    %v291 = vcombine.high %v269, %v269
    %v293 = vunpack.c.l.s4 1983009808
    %v294 = vunpack.c.0.s8 %v293
    %v295 = vlaneseq
    %v296 = vshrl.u32 %v295, 7
    %v297 = vsub.s32 %v294, %v296
    %v298 = vrot.slane %v269, %v297
    %v300 = vunpack.c.l.s4 1983009808
    %v301 = vunpack.c.0.s8 %v300
    %v302 = vlaneseq
    %v303 = vshrl.u32 %v302, 7
    %v304 = vsub.s32 %v301, %v303
    %v305 = vrot.slane %v291, %v304
    %v306 = vcombine.high %v298, %v298
    %v307 = vcombine.high %v305, %v305
    %316 = vst [vmem:[#allocation2] sm:$0x3] %v281
    %317 = vst [vmem:[#allocation2 + $0x2] sm:$0x3] %v289
    %318 = vst [vmem:[#allocation2 + $0x4] sm:$0x3] %v288
    %319 = vst [vmem:[#allocation2 + $0x6] sm:$0x3] %v290
    %320 = vst [vmem:[#allocation2 + $0x8] sm:$0x3] %v298
    %321 = vst [vmem:[#allocation2 + $0xa] sm:$0x3] %v306
    %322 = vst [vmem:[#allocation2 + $0xc] sm:$0x3] %v305
    %323 = vst [vmem:[#allocation2 + $0xe] sm:$0x3] %v307
    %v324 = vld [vmem:[#allocation13] sm:$0xff]
    %v325 = vld [vmem:[#allocation13 + $0x8] sm:$0xff]
    %v326 = vld [vmem:[#allocation13 + $0x10] sm:$0xff]
    %v327 = vld [vmem:[#allocation13 + $0x18] sm:$0xff]
    %v328 = vld [vmem:[#allocation4] sm:$0x3]
    %v329 = vld [vmem:[#allocation5] sm:$0x3]
    %v330 = vld [vmem:[#allocation2] sm:$0x3]
    %vm331 = vcmask 261120
    %v333 = vsel %vm331, %v328, 0
    %335 = vmatprep.subr.mxu0 0.0
    %336 = vmatpush1.msra.mxu0 %v324
    %337 = vmatprep.subr.mxu0 0.0
    %338 = vmatpush1.msra.mxu0 %v325
    %339 = vmatprep.subr.mxu0 0.0
    %340 = vmatpush1.msra.mxu0 %v326
    %341 = vmatprep.subr.mxu0 0.0
    %342 = vmatpush1.msra.mxu0 %v327
    %343 = vmatprep.subr.mxu0 0.0
    %344 = vmatpush1.msra.mxu0 0.0
    %345 = vmatprep.subr.mxu0 0.0
    %346 = vmatpush1.msra.mxu0 0.0
    %347 = vmatprep.subr.mxu0 0.0
    %348 = vmatpush1.msra.mxu0 0.0
    %349 = vmatprep.subr.mxu0 0.0
    %350 = vmatpush1.msra.mxu0 0.0
    %351 = vmatprep.subr.mxu0 0.0
    %352 = vmatpush1.msra.mxu0 0.0
    %353 = vmatprep.subr.mxu0 0.0
    %354 = vmatpush1.msra.mxu0 0.0
    %355 = vmatprep.subr.mxu0 0.0
    %356 = vmatpush1.msra.mxu0 0.0
    %357 = vmatprep.subr.mxu0 0.0
    %358 = vmatpush1.msra.mxu0 0.0
    %359 = vmatprep.subr.mxu0 0.0
    %360 = vmatpush1.msra.mxu0 0.0
    %361 = vmatprep.subr.mxu0 0.0
    %362 = vmatpush1.msra.mxu0 0.0
    %363 = vmatprep.subr.mxu0 0.0
    %364 = vmatpush1.msra.mxu0 0.0
    %365 = vmatprep.subr.mxu0 0.0
    %366 = vmatpush1.msra.mxu0 0.0
    %367 = vmatprep.subr.mxu0 0.0
    %368 = vmatpush1.msra.mxu0 0.0
    %369 = vmatprep.subr.mxu0 0.0
    %370 = vmatpush1.msra.mxu0 0.0
    %371 = vmatprep.subr.mxu0 0.0
    %372 = vmatpush1.msra.mxu0 0.0
    %373 = vmatprep.subr.mxu0 0.0
    %374 = vmatpush1.msra.mxu0 0.0
    %375 = vmatprep.subr.mxu0 0.0
    %376 = vmatpush1.msra.mxu0 0.0
    %377 = vmatprep.subr.mxu0 0.0
    %378 = vmatpush1.msra.mxu0 0.0
    %379 = vmatprep.subr.mxu0 0.0
    %380 = vmatpush1.msra.mxu0 0.0
    %381 = vmatprep.subr.mxu0 0.0
    %382 = vmatpush1.msra.mxu0 0.0
    %383 = vmatprep.subr.mxu0 0.0
    %384 = vmatpush1.msra.mxu0 0.0
    %385 = vmatprep.subr.mxu0 0.0
    %386 = vmatpush1.msra.mxu0 0.0
    %387 = vmatprep.subr.mxu0 0.0
    %388 = vmatpush1.msra.mxu0 0.0
    %389 = vmatprep.subr.mxu0 0.0
    %390 = vmatpush1.msra.mxu0 0.0
    %391 = vmatprep.subr.mxu0 0.0
    %392 = vmatpush1.msra.mxu0 0.0
    %393 = vmatprep.subr.mxu0 0.0
    %394 = vmatpush1.msra.mxu0 0.0
    %395 = vmatprep.subr.mxu0 0.0
    %396 = vmatpush1.msra.mxu0 0.0
    %397 = vmatprep.subr.mxu0 0.0
    %398 = vmatpush1.msra.mxu0 0.0
    %399 = vmatprep.mubr.f32.mxu0 0.0
    %400 = vmatmul.mubr.f32.gmra.mrb[0].mxu0 %v333
    %v401 = vpop.f32.mrb[0].mxu0
    %v402 = vadd.f32 0.0, %v401
    %v403 = vpop.f32.mrb[0].mxu0
    %404 = vdwg.mxu0
    %v405 = vadd.f32 %v330, %v402
    %v406 = vxor.u32 %v405, 2147483648
    %v407 = vmul.f32 %v406, 1.442695
    %v408 = vpow.pop %v407
    %v409 = vadd.f32 %v408, 1.0
    %v410 = vrcp.pop %v409
    %v411 = vmul.f32 1.0, %v410
    %v412 = vtanh.pop %v405
    %414 = vrot.lane.b32.xlu0 %v329, 32
    %v415 = vpop.permute.xlu0 %414
    %v417 = vmul.f32 %v411, %v415
    %419 = vrot.lane.b32.xlu0 %v412, 64
    %v420 = vpop.permute.xlu0 %419
    %v422 = vmul.f32 %v411, %v420
    %424 = vrot.lane.b32.xlu0 %v422, 32
    %v425 = vpop.permute.xlu0 %424
    %v427 = vadd.f32 %v417, %v425
    %v428 = vtanh.pop %v427
    %430 = vrot.lane.b32.xlu0 %v428, 64
    %v431 = vpop.permute.xlu0 %430
    %v433 = vmul.f32 %v411, %v431
    %435 = vrot.lane.b32.xlu0 %v433, 32
    %v436 = vpop.permute.xlu0 %435
    %vm438 = vcmask 254976
    %439 = vst.msk [vmem:[#allocation3] sm:$0x3] %vm438, %v436
    %s440 = scalar_lea.vmem [#allocation2], 2
    %v441 = vld [vmem:[%s440] sm:$0x3]
    %v442 = vsel %vm331, %v436, 0
    %444 = vmatprep.subr.mxu0 0.0
    %445 = vmatpush1.msra.mxu0 %v324
    %446 = vmatprep.subr.mxu0 0.0
    %447 = vmatpush1.msra.mxu0 %v325
    %448 = vmatprep.subr.mxu0 0.0
    %449 = vmatpush1.msra.mxu0 %v326
    %450 = vmatprep.subr.mxu0 0.0
    %451 = vmatpush1.msra.mxu0 %v327
    %452 = vmatprep.subr.mxu0 0.0
    %453 = vmatpush1.msra.mxu0 0.0
    %454 = vmatprep.subr.mxu0 0.0
    %455 = vmatpush1.msra.mxu0 0.0
    %456 = vmatprep.subr.mxu0 0.0
    %457 = vmatpush1.msra.mxu0 0.0
    %458 = vmatprep.subr.mxu0 0.0
    %459 = vmatpush1.msra.mxu0 0.0
    %460 = vmatprep.subr.mxu0 0.0
    %461 = vmatpush1.msra.mxu0 0.0
    %462 = vmatprep.subr.mxu0 0.0
    %463 = vmatpush1.msra.mxu0 0.0
    %464 = vmatprep.subr.mxu0 0.0
    %465 = vmatpush1.msra.mxu0 0.0
    %466 = vmatprep.subr.mxu0 0.0
    %467 = vmatpush1.msra.mxu0 0.0
    %468 = vmatprep.subr.mxu0 0.0
    %469 = vmatpush1.msra.mxu0 0.0
    %470 = vmatprep.subr.mxu0 0.0
    %471 = vmatpush1.msra.mxu0 0.0
    %472 = vmatprep.subr.mxu0 0.0
    %473 = vmatpush1.msra.mxu0 0.0
    %474 = vmatprep.subr.mxu0 0.0
    %475 = vmatpush1.msra.mxu0 0.0
    %476 = vmatprep.subr.mxu0 0.0
    %477 = vmatpush1.msra.mxu0 0.0
    %478 = vmatprep.subr.mxu0 0.0
    %479 = vmatpush1.msra.mxu0 0.0
    %480 = vmatprep.subr.mxu0 0.0
    %481 = vmatpush1.msra.mxu0 0.0
    %482 = vmatprep.subr.mxu0 0.0
    %483 = vmatpush1.msra.mxu0 0.0
    %484 = vmatprep.subr.mxu0 0.0
    %485 = vmatpush1.msra.mxu0 0.0
    %486 = vmatprep.subr.mxu0 0.0
    %487 = vmatpush1.msra.mxu0 0.0
    %488 = vmatprep.subr.mxu0 0.0
    %489 = vmatpush1.msra.mxu0 0.0
    %490 = vmatprep.subr.mxu0 0.0
    %491 = vmatpush1.msra.mxu0 0.0
    %492 = vmatprep.subr.mxu0 0.0
    %493 = vmatpush1.msra.mxu0 0.0
    %494 = vmatprep.subr.mxu0 0.0
    %495 = vmatpush1.msra.mxu0 0.0
    %496 = vmatprep.subr.mxu0 0.0
    %497 = vmatpush1.msra.mxu0 0.0
    %498 = vmatprep.subr.mxu0 0.0
    %499 = vmatpush1.msra.mxu0 0.0
    %500 = vmatprep.subr.mxu0 0.0
    %501 = vmatpush1.msra.mxu0 0.0
    %502 = vmatprep.subr.mxu0 0.0
    %503 = vmatpush1.msra.mxu0 0.0
    %504 = vmatprep.subr.mxu0 0.0
    %505 = vmatpush1.msra.mxu0 0.0
    %506 = vmatprep.subr.mxu0 0.0
    %507 = vmatpush1.msra.mxu0 0.0
    %508 = vmatprep.mubr.f32.mxu0 0.0
    %509 = vmatmul.mubr.f32.gmra.mrb[0].mxu0 %v442
    %v510 = vpop.f32.mrb[0].mxu0
    %v511 = vadd.f32 0.0, %v510
    %v512 = vpop.f32.mrb[0].mxu0
    %513 = vdwg.mxu0
    %v514 = vadd.f32 %v441, %v511
    %v515 = vxor.u32 %v514, 2147483648
    %v516 = vmul.f32 %v515, 1.442695
    %v517 = vpow.pop %v516
    %v518 = vadd.f32 %v517, 1.0
    %v519 = vrcp.pop %v518
    %v520 = vmul.f32 1.0, %v519
    %v521 = vtanh.pop %v514
    %v522 = vmul.f32 %v520, %v427
    %524 = vrot.lane.b32.xlu0 %v521, 64
    %v525 = vpop.permute.xlu0 %524
    %v527 = vmul.f32 %v520, %v525
    %529 = vrot.lane.b32.xlu0 %v527, 32
    %v530 = vpop.permute.xlu0 %529
    %v532 = vadd.f32 %v522, %v530
    %v533 = vtanh.pop %v532
    %535 = vrot.lane.b32.xlu0 %v533, 64
    %v536 = vpop.permute.xlu0 %535
    %v538 = vmul.f32 %v520, %v536
    %540 = vrot.lane.b32.xlu0 %v538, 32
    %v541 = vpop.permute.xlu0 %540
    %s543 = scalar_lea.vmem [#allocation3], 2
    %544 = vst.msk [vmem:[%s543] sm:$0x3] %vm438, %v541
    %s545 = scalar_lea.vmem [#allocation2], 4
    %v546 = vld [vmem:[%s545] sm:$0x3]
    %v547 = vsel %vm331, %v541, 0
    %549 = vmatprep.subr.mxu0 0.0
    %550 = vmatpush1.msra.mxu0 %v324
    %551 = vmatprep.subr.mxu0 0.0
    %552 = vmatpush1.msra.mxu0 %v325
    %553 = vmatprep.subr.mxu0 0.0
    %554 = vmatpush1.msra.mxu0 %v326
    %555 = vmatprep.subr.mxu0 0.0
    %556 = vmatpush1.msra.mxu0 %v327
    %557 = vmatprep.subr.mxu0 0.0
    %558 = vmatpush1.msra.mxu0 0.0
    %559 = vmatprep.subr.mxu0 0.0
    %560 = vmatpush1.msra.mxu0 0.0
    %561 = vmatprep.subr.mxu0 0.0
    %562 = vmatpush1.msra.mxu0 0.0
    %563 = vmatprep.subr.mxu0 0.0
    %564 = vmatpush1.msra.mxu0 0.0
    %565 = vmatprep.subr.mxu0 0.0
    %566 = vmatpush1.msra.mxu0 0.0
    %567 = vmatprep.subr.mxu0 0.0
    %568 = vmatpush1.msra.mxu0 0.0
    %569 = vmatprep.subr.mxu0 0.0
    %570 = vmatpush1.msra.mxu0 0.0
    %571 = vmatprep.subr.mxu0 0.0
    %572 = vmatpush1.msra.mxu0 0.0
    %573 = vmatprep.subr.mxu0 0.0
    %574 = vmatpush1.msra.mxu0 0.0
    %575 = vmatprep.subr.mxu0 0.0
    %576 = vmatpush1.msra.mxu0 0.0
    %577 = vmatprep.subr.mxu0 0.0
    %578 = vmatpush1.msra.mxu0 0.0
    %579 = vmatprep.subr.mxu0 0.0
    %580 = vmatpush1.msra.mxu0 0.0
    %581 = vmatprep.subr.mxu0 0.0
    %582 = vmatpush1.msra.mxu0 0.0
    %583 = vmatprep.subr.mxu0 0.0
    %584 = vmatpush1.msra.mxu0 0.0
    %585 = vmatprep.subr.mxu0 0.0
    %586 = vmatpush1.msra.mxu0 0.0
    %587 = vmatprep.subr.mxu0 0.0
    %588 = vmatpush1.msra.mxu0 0.0
    %589 = vmatprep.subr.mxu0 0.0
    %590 = vmatpush1.msra.mxu0 0.0
    %591 = vmatprep.subr.mxu0 0.0
    %592 = vmatpush1.msra.mxu0 0.0
    %593 = vmatprep.subr.mxu0 0.0
    %594 = vmatpush1.msra.mxu0 0.0
    %595 = vmatprep.subr.mxu0 0.0
    %596 = vmatpush1.msra.mxu0 0.0
    %597 = vmatprep.subr.mxu0 0.0
    %598 = vmatpush1.msra.mxu0 0.0
    %599 = vmatprep.subr.mxu0 0.0
    %600 = vmatpush1.msra.mxu0 0.0
    %601 = vmatprep.subr.mxu0 0.0
    %602 = vmatpush1.msra.mxu0 0.0
    %603 = vmatprep.subr.mxu0 0.0
    %604 = vmatpush1.msra.mxu0 0.0
    %605 = vmatprep.subr.mxu0 0.0
    %606 = vmatpush1.msra.mxu0 0.0
    %607 = vmatprep.subr.mxu0 0.0
    %608 = vmatpush1.msra.mxu0 0.0
    %609 = vmatprep.subr.mxu0 0.0
    %610 = vmatpush1.msra.mxu0 0.0
    %611 = vmatprep.subr.mxu0 0.0
    %612 = vmatpush1.msra.mxu0 0.0
    %613 = vmatprep.mubr.f32.mxu0 0.0
    %614 = vmatmul.mubr.f32.gmra.mrb[0].mxu0 %v547
    %v615 = vpop.f32.mrb[0].mxu0
    %v616 = vadd.f32 0.0, %v615
    %v617 = vpop.f32.mrb[0].mxu0
    %618 = vdwg.mxu0
    %v619 = vadd.f32 %v546, %v616
    %v620 = vxor.u32 %v619, 2147483648
    %v621 = vmul.f32 %v620, 1.442695
    %v622 = vpow.pop %v621
    %v623 = vadd.f32 %v622, 1.0
    %v624 = vrcp.pop %v623
    %v625 = vmul.f32 1.0, %v624
    %v626 = vtanh.pop %v619
    %v627 = vmul.f32 %v625, %v532
    %629 = vrot.lane.b32.xlu0 %v626, 64
    %v630 = vpop.permute.xlu0 %629
    %v632 = vmul.f32 %v625, %v630
    %634 = vrot.lane.b32.xlu0 %v632, 32
    %v635 = vpop.permute.xlu0 %634
    %v637 = vadd.f32 %v627, %v635
    %v638 = vtanh.pop %v637
    %640 = vrot.lane.b32.xlu0 %v638, 64
    %v641 = vpop.permute.xlu0 %640
    %v643 = vmul.f32 %v625, %v641
    %645 = vrot.lane.b32.xlu0 %v643, 32
    %v646 = vpop.permute.xlu0 %645
    %s648 = scalar_lea.vmem [#allocation3], 4
    %649 = vst.msk [vmem:[%s648] sm:$0x3] %vm438, %v646
    %s650 = scalar_lea.vmem [#allocation2], 6
    %v651 = vld [vmem:[%s650] sm:$0x3]
    %v652 = vsel %vm331, %v646, 0
    %654 = vmatprep.subr.mxu0 0.0
    %655 = vmatpush1.msra.mxu0 %v324
    %656 = vmatprep.subr.mxu0 0.0
    %657 = vmatpush1.msra.mxu0 %v325
    %658 = vmatprep.subr.mxu0 0.0
    %659 = vmatpush1.msra.mxu0 %v326
    %660 = vmatprep.subr.mxu0 0.0
    %661 = vmatpush1.msra.mxu0 %v327
    %662 = vmatprep.subr.mxu0 0.0
    %663 = vmatpush1.msra.mxu0 0.0
    %664 = vmatprep.subr.mxu0 0.0
    %665 = vmatpush1.msra.mxu0 0.0
    %666 = vmatprep.subr.mxu0 0.0
    %667 = vmatpush1.msra.mxu0 0.0
    %668 = vmatprep.subr.mxu0 0.0
    %669 = vmatpush1.msra.mxu0 0.0
    %670 = vmatprep.subr.mxu0 0.0
    %671 = vmatpush1.msra.mxu0 0.0
    %672 = vmatprep.subr.mxu0 0.0
    %673 = vmatpush1.msra.mxu0 0.0
    %674 = vmatprep.subr.mxu0 0.0
    %675 = vmatpush1.msra.mxu0 0.0
    %676 = vmatprep.subr.mxu0 0.0
    %677 = vmatpush1.msra.mxu0 0.0
    %678 = vmatprep.subr.mxu0 0.0
    %679 = vmatpush1.msra.mxu0 0.0
    %680 = vmatprep.subr.mxu0 0.0
    %681 = vmatpush1.msra.mxu0 0.0
    %682 = vmatprep.subr.mxu0 0.0
    %683 = vmatpush1.msra.mxu0 0.0
    %684 = vmatprep.subr.mxu0 0.0
    %685 = vmatpush1.msra.mxu0 0.0
    %686 = vmatprep.subr.mxu0 0.0
    %687 = vmatpush1.msra.mxu0 0.0
    %688 = vmatprep.subr.mxu0 0.0
    %689 = vmatpush1.msra.mxu0 0.0
    %690 = vmatprep.subr.mxu0 0.0
    %691 = vmatpush1.msra.mxu0 0.0
    %692 = vmatprep.subr.mxu0 0.0
    %693 = vmatpush1.msra.mxu0 0.0
    %694 = vmatprep.subr.mxu0 0.0
    %695 = vmatpush1.msra.mxu0 0.0
    %696 = vmatprep.subr.mxu0 0.0
    %697 = vmatpush1.msra.mxu0 0.0
    %698 = vmatprep.subr.mxu0 0.0
    %699 = vmatpush1.msra.mxu0 0.0
    %700 = vmatprep.subr.mxu0 0.0
    %701 = vmatpush1.msra.mxu0 0.0
    %702 = vmatprep.subr.mxu0 0.0
    %703 = vmatpush1.msra.mxu0 0.0
    %704 = vmatprep.subr.mxu0 0.0
    %705 = vmatpush1.msra.mxu0 0.0
    %706 = vmatprep.subr.mxu0 0.0
    %707 = vmatpush1.msra.mxu0 0.0
    %708 = vmatprep.subr.mxu0 0.0
    %709 = vmatpush1.msra.mxu0 0.0
    %710 = vmatprep.subr.mxu0 0.0
    %711 = vmatpush1.msra.mxu0 0.0
    %712 = vmatprep.subr.mxu0 0.0
    %713 = vmatpush1.msra.mxu0 0.0
    %714 = vmatprep.subr.mxu0 0.0
    %715 = vmatpush1.msra.mxu0 0.0
    %716 = vmatprep.subr.mxu0 0.0
    %717 = vmatpush1.msra.mxu0 0.0
    %718 = vmatprep.mubr.f32.mxu0 0.0
    %719 = vmatmul.mubr.f32.gmra.mrb[0].mxu0 %v652
    %v720 = vpop.f32.mrb[0].mxu0
    %v721 = vadd.f32 0.0, %v720
    %v722 = vpop.f32.mrb[0].mxu0
    %723 = vdwg.mxu0
    %v724 = vadd.f32 %v651, %v721
    %v725 = vxor.u32 %v724, 2147483648
    %v726 = vmul.f32 %v725, 1.442695
    %v727 = vpow.pop %v726
    %v728 = vadd.f32 %v727, 1.0
    %v729 = vrcp.pop %v728
    %v730 = vmul.f32 1.0, %v729
    %v731 = vtanh.pop %v724
    %v732 = vmul.f32 %v730, %v637
    %734 = vrot.lane.b32.xlu0 %v731, 64
    %v735 = vpop.permute.xlu0 %734
    %v737 = vmul.f32 %v730, %v735
    %739 = vrot.lane.b32.xlu0 %v737, 32
    %v740 = vpop.permute.xlu0 %739
    %v742 = vadd.f32 %v732, %v740
    %v743 = vtanh.pop %v742
    %745 = vrot.lane.b32.xlu0 %v743, 64
    %v746 = vpop.permute.xlu0 %745
    %v748 = vmul.f32 %v730, %v746
    %750 = vrot.lane.b32.xlu0 %v748, 32
    %v751 = vpop.permute.xlu0 %750
    %s753 = scalar_lea.vmem [#allocation3], 6
    %754 = vst.msk [vmem:[%s753] sm:$0x3] %vm438, %v751
    %s755 = scalar_lea.vmem [#allocation2], 8
    %v756 = vld [vmem:[%s755] sm:$0x3]
    %v757 = vsel %vm331, %v751, 0
    %759 = vmatprep.subr.mxu0 0.0
    %760 = vmatpush1.msra.mxu0 %v324
    %761 = vmatprep.subr.mxu0 0.0
    %762 = vmatpush1.msra.mxu0 %v325
    %763 = vmatprep.subr.mxu0 0.0
    %764 = vmatpush1.msra.mxu0 %v326
    %765 = vmatprep.subr.mxu0 0.0
    %766 = vmatpush1.msra.mxu0 %v327
    %767 = vmatprep.subr.mxu0 0.0
    %768 = vmatpush1.msra.mxu0 0.0
    %769 = vmatprep.subr.mxu0 0.0
    %770 = vmatpush1.msra.mxu0 0.0
    %771 = vmatprep.subr.mxu0 0.0
    %772 = vmatpush1.msra.mxu0 0.0
    %773 = vmatprep.subr.mxu0 0.0
    %774 = vmatpush1.msra.mxu0 0.0
    %775 = vmatprep.subr.mxu0 0.0
    %776 = vmatpush1.msra.mxu0 0.0
    %777 = vmatprep.subr.mxu0 0.0
    %778 = vmatpush1.msra.mxu0 0.0
    %779 = vmatprep.subr.mxu0 0.0
    %780 = vmatpush1.msra.mxu0 0.0
    %781 = vmatprep.subr.mxu0 0.0
    %782 = vmatpush1.msra.mxu0 0.0
    %783 = vmatprep.subr.mxu0 0.0
    %784 = vmatpush1.msra.mxu0 0.0
    %785 = vmatprep.subr.mxu0 0.0
    %786 = vmatpush1.msra.mxu0 0.0
    %787 = vmatprep.subr.mxu0 0.0
    %788 = vmatpush1.msra.mxu0 0.0
    %789 = vmatprep.subr.mxu0 0.0
    %790 = vmatpush1.msra.mxu0 0.0
    %791 = vmatprep.subr.mxu0 0.0
    %792 = vmatpush1.msra.mxu0 0.0
    %793 = vmatprep.subr.mxu0 0.0
    %794 = vmatpush1.msra.mxu0 0.0
    %795 = vmatprep.subr.mxu0 0.0
    %796 = vmatpush1.msra.mxu0 0.0
    %797 = vmatprep.subr.mxu0 0.0
    %798 = vmatpush1.msra.mxu0 0.0
    %799 = vmatprep.subr.mxu0 0.0
    %800 = vmatpush1.msra.mxu0 0.0
    %801 = vmatprep.subr.mxu0 0.0
    %802 = vmatpush1.msra.mxu0 0.0
    %803 = vmatprep.subr.mxu0 0.0
    %804 = vmatpush1.msra.mxu0 0.0
    %805 = vmatprep.subr.mxu0 0.0
    %806 = vmatpush1.msra.mxu0 0.0
    %807 = vmatprep.subr.mxu0 0.0
    %808 = vmatpush1.msra.mxu0 0.0
    %809 = vmatprep.subr.mxu0 0.0
    %810 = vmatpush1.msra.mxu0 0.0
    %811 = vmatprep.subr.mxu0 0.0
    %812 = vmatpush1.msra.mxu0 0.0
    %813 = vmatprep.subr.mxu0 0.0
    %814 = vmatpush1.msra.mxu0 0.0
    %815 = vmatprep.subr.mxu0 0.0
    %816 = vmatpush1.msra.mxu0 0.0
    %817 = vmatprep.subr.mxu0 0.0
    %818 = vmatpush1.msra.mxu0 0.0
    %819 = vmatprep.subr.mxu0 0.0
    %820 = vmatpush1.msra.mxu0 0.0
    %821 = vmatprep.subr.mxu0 0.0
    %822 = vmatpush1.msra.mxu0 0.0
    %823 = vmatprep.mubr.f32.mxu0 0.0
    %824 = vmatmul.mubr.f32.gmra.mrb[0].mxu0 %v757
    %v825 = vpop.f32.mrb[0].mxu0
    %v826 = vadd.f32 0.0, %v825
    %v827 = vpop.f32.mrb[0].mxu0
    %828 = vdwg.mxu0
    %v829 = vadd.f32 %v756, %v826
    %v830 = vxor.u32 %v829, 2147483648
    %v831 = vmul.f32 %v830, 1.442695
    %v832 = vpow.pop %v831
    %v833 = vadd.f32 %v832, 1.0
    %v834 = vrcp.pop %v833
    %v835 = vmul.f32 1.0, %v834
    %v836 = vtanh.pop %v829
    %v837 = vmul.f32 %v835, %v742
    %839 = vrot.lane.b32.xlu0 %v836, 64
    %v840 = vpop.permute.xlu0 %839
    %v842 = vmul.f32 %v835, %v840
    %844 = vrot.lane.b32.xlu0 %v842, 32
    %v845 = vpop.permute.xlu0 %844
    %v847 = vadd.f32 %v837, %v845
    %v848 = vtanh.pop %v847
    %850 = vrot.lane.b32.xlu0 %v848, 64
    %v851 = vpop.permute.xlu0 %850
    %v853 = vmul.f32 %v835, %v851
    %855 = vrot.lane.b32.xlu0 %v853, 32
    %v856 = vpop.permute.xlu0 %855
    %s858 = scalar_lea.vmem [#allocation3], 8
    %859 = vst.msk [vmem:[%s858] sm:$0x3] %vm438, %v856
    %s860 = scalar_lea.vmem [#allocation2], 10
    %v861 = vld [vmem:[%s860] sm:$0x3]
    %v862 = vsel %vm331, %v856, 0
    %864 = vmatprep.subr.mxu0 0.0
    %865 = vmatpush1.msra.mxu0 %v324
    %866 = vmatprep.subr.mxu0 0.0
    %867 = vmatpush1.msra.mxu0 %v325
    %868 = vmatprep.subr.mxu0 0.0
    %869 = vmatpush1.msra.mxu0 %v326
    %870 = vmatprep.subr.mxu0 0.0
    %871 = vmatpush1.msra.mxu0 %v327
    %872 = vmatprep.subr.mxu0 0.0
    %873 = vmatpush1.msra.mxu0 0.0
    %874 = vmatprep.subr.mxu0 0.0
    %875 = vmatpush1.msra.mxu0 0.0
    %876 = vmatprep.subr.mxu0 0.0
    %877 = vmatpush1.msra.mxu0 0.0
    %878 = vmatprep.subr.mxu0 0.0
    %879 = vmatpush1.msra.mxu0 0.0
    %880 = vmatprep.subr.mxu0 0.0
    %881 = vmatpush1.msra.mxu0 0.0
    %882 = vmatprep.subr.mxu0 0.0
    %883 = vmatpush1.msra.mxu0 0.0
    %884 = vmatprep.subr.mxu0 0.0
    %885 = vmatpush1.msra.mxu0 0.0
    %886 = vmatprep.subr.mxu0 0.0
    %887 = vmatpush1.msra.mxu0 0.0
    %888 = vmatprep.subr.mxu0 0.0
    %889 = vmatpush1.msra.mxu0 0.0
    %890 = vmatprep.subr.mxu0 0.0
    %891 = vmatpush1.msra.mxu0 0.0
    %892 = vmatprep.subr.mxu0 0.0
    %893 = vmatpush1.msra.mxu0 0.0
    %894 = vmatprep.subr.mxu0 0.0
    %895 = vmatpush1.msra.mxu0 0.0
    %896 = vmatprep.subr.mxu0 0.0
    %897 = vmatpush1.msra.mxu0 0.0
    %898 = vmatprep.subr.mxu0 0.0
    %899 = vmatpush1.msra.mxu0 0.0
    %900 = vmatprep.subr.mxu0 0.0
    %901 = vmatpush1.msra.mxu0 0.0
    %902 = vmatprep.subr.mxu0 0.0
    %903 = vmatpush1.msra.mxu0 0.0
    %904 = vmatprep.subr.mxu0 0.0
    %905 = vmatpush1.msra.mxu0 0.0
    %906 = vmatprep.subr.mxu0 0.0
    %907 = vmatpush1.msra.mxu0 0.0
    %908 = vmatprep.subr.mxu0 0.0
    %909 = vmatpush1.msra.mxu0 0.0
    %910 = vmatprep.subr.mxu0 0.0
    %911 = vmatpush1.msra.mxu0 0.0
    %912 = vmatprep.subr.mxu0 0.0
    %913 = vmatpush1.msra.mxu0 0.0
    %914 = vmatprep.subr.mxu0 0.0
    %915 = vmatpush1.msra.mxu0 0.0
    %916 = vmatprep.subr.mxu0 0.0
    %917 = vmatpush1.msra.mxu0 0.0
    %918 = vmatprep.subr.mxu0 0.0
    %919 = vmatpush1.msra.mxu0 0.0
    %920 = vmatprep.subr.mxu0 0.0
    %921 = vmatpush1.msra.mxu0 0.0
    %922 = vmatprep.subr.mxu0 0.0
    %923 = vmatpush1.msra.mxu0 0.0
    %924 = vmatprep.subr.mxu0 0.0
    %925 = vmatpush1.msra.mxu0 0.0
    %926 = vmatprep.subr.mxu0 0.0
    %927 = vmatpush1.msra.mxu0 0.0
    %928 = vmatprep.mubr.f32.mxu0 0.0
    %929 = vmatmul.mubr.f32.gmra.mrb[0].mxu0 %v862
    %v930 = vpop.f32.mrb[0].mxu0
    %v931 = vadd.f32 0.0, %v930
    %v932 = vpop.f32.mrb[0].mxu0
    %933 = vdwg.mxu0
    %v934 = vadd.f32 %v861, %v931
    %v935 = vxor.u32 %v934, 2147483648
    %v936 = vmul.f32 %v935, 1.442695
    %v937 = vpow.pop %v936
    %v938 = vadd.f32 %v937, 1.0
    %v939 = vrcp.pop %v938
    %v940 = vmul.f32 1.0, %v939
    %v941 = vtanh.pop %v934
    %v942 = vmul.f32 %v940, %v847
    %944 = vrot.lane.b32.xlu0 %v941, 64
    %v945 = vpop.permute.xlu0 %944
    %v947 = vmul.f32 %v940, %v945
    %949 = vrot.lane.b32.xlu0 %v947, 32
    %v950 = vpop.permute.xlu0 %949
    %v952 = vadd.f32 %v942, %v950
    %v953 = vtanh.pop %v952
    %955 = vrot.lane.b32.xlu0 %v953, 64
    %v956 = vpop.permute.xlu0 %955
    %v958 = vmul.f32 %v940, %v956
    %960 = vrot.lane.b32.xlu0 %v958, 32
    %v961 = vpop.permute.xlu0 %960
    %s963 = scalar_lea.vmem [#allocation3], 10
    %964 = vst.msk [vmem:[%s963] sm:$0x3] %vm438, %v961
    %s965 = scalar_lea.vmem [#allocation2], 12
    %v966 = vld [vmem:[%s965] sm:$0x3]
    %v967 = vsel %vm331, %v961, 0
    %969 = vmatprep.subr.mxu0 0.0
    %970 = vmatpush1.msra.mxu0 %v324
    %971 = vmatprep.subr.mxu0 0.0
    %972 = vmatpush1.msra.mxu0 %v325
    %973 = vmatprep.subr.mxu0 0.0
    %974 = vmatpush1.msra.mxu0 %v326
    %975 = vmatprep.subr.mxu0 0.0
    %976 = vmatpush1.msra.mxu0 %v327
    %977 = vmatprep.subr.mxu0 0.0
    %978 = vmatpush1.msra.mxu0 0.0
    %979 = vmatprep.subr.mxu0 0.0
    %980 = vmatpush1.msra.mxu0 0.0
    %981 = vmatprep.subr.mxu0 0.0
    %982 = vmatpush1.msra.mxu0 0.0
    %983 = vmatprep.subr.mxu0 0.0
    %984 = vmatpush1.msra.mxu0 0.0
    %985 = vmatprep.subr.mxu0 0.0
    %986 = vmatpush1.msra.mxu0 0.0
    %987 = vmatprep.subr.mxu0 0.0
    %988 = vmatpush1.msra.mxu0 0.0
    %989 = vmatprep.subr.mxu0 0.0
    %990 = vmatpush1.msra.mxu0 0.0
    %991 = vmatprep.subr.mxu0 0.0
    %992 = vmatpush1.msra.mxu0 0.0
    %993 = vmatprep.subr.mxu0 0.0
    %994 = vmatpush1.msra.mxu0 0.0
    %995 = vmatprep.subr.mxu0 0.0
    %996 = vmatpush1.msra.mxu0 0.0
    %997 = vmatprep.subr.mxu0 0.0
    %998 = vmatpush1.msra.mxu0 0.0
    %999 = vmatprep.subr.mxu0 0.0
    %1000 = vmatpush1.msra.mxu0 0.0
    %1001 = vmatprep.subr.mxu0 0.0
    %1002 = vmatpush1.msra.mxu0 0.0
    %1003 = vmatprep.subr.mxu0 0.0
    %1004 = vmatpush1.msra.mxu0 0.0
    %1005 = vmatprep.subr.mxu0 0.0
    %1006 = vmatpush1.msra.mxu0 0.0
    %1007 = vmatprep.subr.mxu0 0.0
    %1008 = vmatpush1.msra.mxu0 0.0
    %1009 = vmatprep.subr.mxu0 0.0
    %1010 = vmatpush1.msra.mxu0 0.0
    %1011 = vmatprep.subr.mxu0 0.0
    %1012 = vmatpush1.msra.mxu0 0.0
    %1013 = vmatprep.subr.mxu0 0.0
    %1014 = vmatpush1.msra.mxu0 0.0
    %1015 = vmatprep.subr.mxu0 0.0
    %1016 = vmatpush1.msra.mxu0 0.0
    %1017 = vmatprep.subr.mxu0 0.0
    %1018 = vmatpush1.msra.mxu0 0.0
    %1019 = vmatprep.subr.mxu0 0.0
    %1020 = vmatpush1.msra.mxu0 0.0
    %1021 = vmatprep.subr.mxu0 0.0
    %1022 = vmatpush1.msra.mxu0 0.0
    %1023 = vmatprep.subr.mxu0 0.0
    %1024 = vmatpush1.msra.mxu0 0.0
    %1025 = vmatprep.subr.mxu0 0.0
    %1026 = vmatpush1.msra.mxu0 0.0
    %1027 = vmatprep.subr.mxu0 0.0
    %1028 = vmatpush1.msra.mxu0 0.0
    %1029 = vmatprep.subr.mxu0 0.0
    %1030 = vmatpush1.msra.mxu0 0.0
    %1031 = vmatprep.subr.mxu0 0.0
    %1032 = vmatpush1.msra.mxu0 0.0
    %1033 = vmatprep.mubr.f32.mxu0 0.0
    %1034 = vmatmul.mubr.f32.gmra.mrb[0].mxu0 %v967
    %v1035 = vpop.f32.mrb[0].mxu0
    %v1036 = vadd.f32 0.0, %v1035
    %v1037 = vpop.f32.mrb[0].mxu0
    %1038 = vdwg.mxu0
    %v1039 = vadd.f32 %v966, %v1036
    %v1040 = vxor.u32 %v1039, 2147483648
    %v1041 = vmul.f32 %v1040, 1.442695
    %v1042 = vpow.pop %v1041
    %v1043 = vadd.f32 %v1042, 1.0
    %v1044 = vrcp.pop %v1043
    %v1045 = vmul.f32 1.0, %v1044
    %v1046 = vtanh.pop %v1039
    %v1047 = vmul.f32 %v1045, %v952
    %1049 = vrot.lane.b32.xlu0 %v1046, 64
    %v1050 = vpop.permute.xlu0 %1049
    %v1052 = vmul.f32 %v1045, %v1050
    %1054 = vrot.lane.b32.xlu0 %v1052, 32
    %v1055 = vpop.permute.xlu0 %1054
    %v1057 = vadd.f32 %v1047, %v1055
    %v1058 = vtanh.pop %v1057
    %1060 = vrot.lane.b32.xlu0 %v1058, 64
    %v1061 = vpop.permute.xlu0 %1060
    %v1063 = vmul.f32 %v1045, %v1061
    %1065 = vrot.lane.b32.xlu0 %v1063, 32
    %v1066 = vpop.permute.xlu0 %1065
    %s1068 = scalar_lea.vmem [#allocation3], 12
    %1069 = vst.msk [vmem:[%s1068] sm:$0x3] %vm438, %v1066
    %s1070 = scalar_lea.vmem [#allocation2], 14
    %v1071 = vld [vmem:[%s1070] sm:$0x3]
    %v1072 = vsel %vm331, %v1066, 0
    %1074 = vmatprep.subr.mxu0 0.0
    %1075 = vmatpush1.msra.mxu0 %v324
    %1076 = vmatprep.subr.mxu0 0.0
    %1077 = vmatpush1.msra.mxu0 %v325
    %1078 = vmatprep.subr.mxu0 0.0
    %1079 = vmatpush1.msra.mxu0 %v326
    %1080 = vmatprep.subr.mxu0 0.0
    %1081 = vmatpush1.msra.mxu0 %v327
    %1082 = vmatprep.subr.mxu0 0.0
    %1083 = vmatpush1.msra.mxu0 0.0
    %1084 = vmatprep.subr.mxu0 0.0
    %1085 = vmatpush1.msra.mxu0 0.0
    %1086 = vmatprep.subr.mxu0 0.0
    %1087 = vmatpush1.msra.mxu0 0.0
    %1088 = vmatprep.subr.mxu0 0.0
    %1089 = vmatpush1.msra.mxu0 0.0
    %1090 = vmatprep.subr.mxu0 0.0
    %1091 = vmatpush1.msra.mxu0 0.0
    %1092 = vmatprep.subr.mxu0 0.0
    %1093 = vmatpush1.msra.mxu0 0.0
    %1094 = vmatprep.subr.mxu0 0.0
    %1095 = vmatpush1.msra.mxu0 0.0
    %1096 = vmatprep.subr.mxu0 0.0
    %1097 = vmatpush1.msra.mxu0 0.0
    %1098 = vmatprep.subr.mxu0 0.0
    %1099 = vmatpush1.msra.mxu0 0.0
    %1100 = vmatprep.subr.mxu0 0.0
    %1101 = vmatpush1.msra.mxu0 0.0
    %1102 = vmatprep.subr.mxu0 0.0
    %1103 = vmatpush1.msra.mxu0 0.0
    %1104 = vmatprep.subr.mxu0 0.0
    %1105 = vmatpush1.msra.mxu0 0.0
    %1106 = vmatprep.subr.mxu0 0.0
    %1107 = vmatpush1.msra.mxu0 0.0
    %1108 = vmatprep.subr.mxu0 0.0
    %1109 = vmatpush1.msra.mxu0 0.0
    %1110 = vmatprep.subr.mxu0 0.0
    %1111 = vmatpush1.msra.mxu0 0.0
    %1112 = vmatprep.subr.mxu0 0.0
    %1113 = vmatpush1.msra.mxu0 0.0
    %1114 = vmatprep.subr.mxu0 0.0
    %1115 = vmatpush1.msra.mxu0 0.0
    %1116 = vmatprep.subr.mxu0 0.0
    %1117 = vmatpush1.msra.mxu0 0.0
    %1118 = vmatprep.subr.mxu0 0.0
    %1119 = vmatpush1.msra.mxu0 0.0
    %1120 = vmatprep.subr.mxu0 0.0
    %1121 = vmatpush1.msra.mxu0 0.0
    %1122 = vmatprep.subr.mxu0 0.0
    %1123 = vmatpush1.msra.mxu0 0.0
    %1124 = vmatprep.subr.mxu0 0.0
    %1125 = vmatpush1.msra.mxu0 0.0
    %1126 = vmatprep.subr.mxu0 0.0
    %1127 = vmatpush1.msra.mxu0 0.0
    %1128 = vmatprep.subr.mxu0 0.0
    %1129 = vmatpush1.msra.mxu0 0.0
    %1130 = vmatprep.subr.mxu0 0.0
    %1131 = vmatpush1.msra.mxu0 0.0
    %1132 = vmatprep.subr.mxu0 0.0
    %1133 = vmatpush1.msra.mxu0 0.0
    %1134 = vmatprep.subr.mxu0 0.0
    %1135 = vmatpush1.msra.mxu0 0.0
    %1136 = vmatprep.subr.mxu0 0.0
    %1137 = vmatpush1.msra.mxu0 0.0
    %1138 = vmatprep.mubr.f32.mxu0 0.0
    %1139 = vmatmul.mubr.f32.gmra.mrb[0].mxu0 %v1072
    %v1140 = vpop.f32.mrb[0].mxu0
    %v1141 = vadd.f32 0.0, %v1140
    %v1142 = vpop.f32.mrb[0].mxu0
    %1143 = vdwg.mxu0
    %v1144 = vadd.f32 %v1071, %v1141
    %v1145 = vxor.u32 %v1144, 2147483648
    %v1146 = vmul.f32 %v1145, 1.442695
    %v1147 = vpow.pop %v1146
    %v1148 = vadd.f32 %v1147, 1.0
    %v1149 = vrcp.pop %v1148
    %v1150 = vmul.f32 1.0, %v1149
    %v1151 = vtanh.pop %v1144
    %v1152 = vmul.f32 %v1150, %v1057
    %1154 = vrot.lane.b32.xlu0 %v1151, 64
    %v1155 = vpop.permute.xlu0 %1154
    %v1157 = vmul.f32 %v1150, %v1155
    %1159 = vrot.lane.b32.xlu0 %v1157, 32
    %v1160 = vpop.permute.xlu0 %1159
    %v1162 = vadd.f32 %v1152, %v1160
    %v1163 = vtanh.pop %v1162
    %1165 = vrot.lane.b32.xlu0 %v1163, 64
    %v1166 = vpop.permute.xlu0 %1165
    %v1168 = vmul.f32 %v1150, %v1166
    %1170 = vrot.lane.b32.xlu0 %v1168, 32
    %v1171 = vpop.permute.xlu0 %1170
    %s1173 = scalar_lea.vmem [#allocation3], 14
    %1174 = vst.msk [vmem:[%s1173] sm:$0x3] %vm438, %v1171
    %1175 = vst.msk [vmem:[#allocation4] sm:$0x3] %vm438, %v1171
    %1177 = vrot.lane.b32.xlu0 %v1162, 96
    %v1178 = vpop.permute.xlu0 %1177
    %1180 = vst.msk [vmem:[#allocation5] sm:$0x3] %vm438, %v1178
    %v1181 = vld [vmem:[#allocation3] sm:$0x3]
    %v1182 = vld [vmem:[#allocation3 + $0x2] sm:$0x3]
    %v1183 = vld [vmem:[#allocation3 + $0x4] sm:$0x3]
    %v1184 = vld [vmem:[#allocation3 + $0x6] sm:$0x3]
    %v1185 = vld [vmem:[#allocation3 + $0x8] sm:$0x3]
    %v1186 = vld [vmem:[#allocation3 + $0xa] sm:$0x3]
    %v1187 = vld [vmem:[#allocation3 + $0xc] sm:$0x3]
    %v1188 = vld [vmem:[#allocation3 + $0xe] sm:$0x3]
    %v1189 = vld [vmem:[#allocation14] sm:$0xff]
    %v1190 = vld [vmem:[#allocation14 + $0x8] sm:$0xff]
    %v1191 = vld [vmem:[#allocation14 + $0x10] sm:$0xff]
    %v1192 = vld [vmem:[#allocation14 + $0x18] sm:$0xff]
    %v1193 = vld [vmem:[%s6] sm:$0x1]
    %v1195 = vlaneseq
    %v1196 = vshrl.u32 %v1195, 7
    %v1197 = vsub.s32 0, %v1196
    %v1198 = vrot.slane %v1193, %v1197
    %v1207 = vcombine.low %v1181, %v1182
    %v1208 = vcombine.low %v1183, %v1184
    %v1210 = vunpack.c.l.s4 1983009808
    %v1211 = vunpack.c.0.s8 %v1210
    %v1212 = vlaneseq
    %v1213 = vshrl.u32 %v1212, 7
    %v1214 = vsub.s32 %v1211, %v1213
    %v1215 = vrot.slane %v1207, %v1214
    %v1217 = vunpack.c.l.s4 1983009808
    %v1218 = vunpack.c.0.s8 %v1217
    %v1219 = vlaneseq
    %v1220 = vshrl.u32 %v1219, 7
    %v1221 = vsub.s32 %v1218, %v1220
    %v1222 = vrot.slane %v1208, %v1221
    %v1223 = vcombine.low %v1215, %v1222
    %v1224 = vcombine.low %v1185, %v1186
    %v1225 = vcombine.low %v1187, %v1188
    %v1227 = vunpack.c.l.s4 1983009808
    %v1228 = vunpack.c.0.s8 %v1227
    %v1229 = vlaneseq
    %v1230 = vshrl.u32 %v1229, 7
    %v1231 = vsub.s32 %v1228, %v1230
    %v1232 = vrot.slane %v1224, %v1231
    %v1234 = vunpack.c.l.s4 1983009808
    %v1235 = vunpack.c.0.s8 %v1234
    %v1236 = vlaneseq
    %v1237 = vshrl.u32 %v1236, 7
    %v1238 = vsub.s32 %v1235, %v1237
    %v1239 = vrot.slane %v1225, %v1238
    %v1240 = vcombine.low %v1232, %v1239
    %v1241 = vcombine.low %v1198, %v1198
    %v1243 = vunpack.c.l.s4 1983009808
    %v1244 = vunpack.c.0.s8 %v1243
    %v1245 = vlaneseq
    %v1246 = vshrl.u32 %v1245, 7
    %v1247 = vsub.s32 %v1244, %v1246
    %v1248 = vrot.slane %v1241, %v1247
    %v1249 = vcombine.low %v1248, %v1248
    %v1251 = vsel %vm331, %v1223, 0
    %v1253 = vsel %vm331, %v1240, 0
    %1255 = vmatprep.subr.mxu0 0.0
    %1256 = vmatpush1.msra.mxu0 %v1189
    %1257 = vmatprep.subr.mxu0 0.0
    %1258 = vmatpush1.msra.mxu0 %v1190
    %1259 = vmatprep.subr.mxu0 0.0
    %1260 = vmatpush1.msra.mxu0 %v1191
    %1261 = vmatprep.subr.mxu0 0.0
    %1262 = vmatpush1.msra.mxu0 %v1192
    %1263 = vmatprep.subr.mxu0 0.0
    %1264 = vmatpush1.msra.mxu0 0.0
    %1265 = vmatprep.subr.mxu0 0.0
    %1266 = vmatpush1.msra.mxu0 0.0
    %1267 = vmatprep.subr.mxu0 0.0
    %1268 = vmatpush1.msra.mxu0 0.0
    %1269 = vmatprep.subr.mxu0 0.0
    %1270 = vmatpush1.msra.mxu0 0.0
    %1271 = vmatprep.subr.mxu0 0.0
    %1272 = vmatpush1.msra.mxu0 0.0
    %1273 = vmatprep.subr.mxu0 0.0
    %1274 = vmatpush1.msra.mxu0 0.0
    %1275 = vmatprep.subr.mxu0 0.0
    %1276 = vmatpush1.msra.mxu0 0.0
    %1277 = vmatprep.subr.mxu0 0.0
    %1278 = vmatpush1.msra.mxu0 0.0
    %1279 = vmatprep.subr.mxu0 0.0
    %1280 = vmatpush1.msra.mxu0 0.0
    %1281 = vmatprep.subr.mxu0 0.0
    %1282 = vmatpush1.msra.mxu0 0.0
    %1283 = vmatprep.subr.mxu0 0.0
    %1284 = vmatpush1.msra.mxu0 0.0
    %1285 = vmatprep.subr.mxu0 0.0
    %1286 = vmatpush1.msra.mxu0 0.0
    %1287 = vmatprep.subr.mxu0 0.0
    %1288 = vmatpush1.msra.mxu0 0.0
    %1289 = vmatprep.subr.mxu0 0.0
    %1290 = vmatpush1.msra.mxu0 0.0
    %1291 = vmatprep.subr.mxu0 0.0
    %1292 = vmatpush1.msra.mxu0 0.0
    %1293 = vmatprep.subr.mxu0 0.0
    %1294 = vmatpush1.msra.mxu0 0.0
    %1295 = vmatprep.subr.mxu0 0.0
    %1296 = vmatpush1.msra.mxu0 0.0
    %1297 = vmatprep.subr.mxu0 0.0
    %1298 = vmatpush1.msra.mxu0 0.0
    %1299 = vmatprep.subr.mxu0 0.0
    %1300 = vmatpush1.msra.mxu0 0.0
    %1301 = vmatprep.subr.mxu0 0.0
    %1302 = vmatpush1.msra.mxu0 0.0
    %1303 = vmatprep.subr.mxu0 0.0
    %1304 = vmatpush1.msra.mxu0 0.0
    %1305 = vmatprep.subr.mxu0 0.0
    %1306 = vmatpush1.msra.mxu0 0.0
    %1307 = vmatprep.subr.mxu0 0.0
    %1308 = vmatpush1.msra.mxu0 0.0
    %1309 = vmatprep.subr.mxu0 0.0
    %1310 = vmatpush1.msra.mxu0 0.0
    %1311 = vmatprep.subr.mxu0 0.0
    %1312 = vmatpush1.msra.mxu0 0.0
    %1313 = vmatprep.subr.mxu0 0.0
    %1314 = vmatpush1.msra.mxu0 0.0
    %1315 = vmatprep.subr.mxu0 0.0
    %1316 = vmatpush1.msra.mxu0 0.0
    %1317 = vmatprep.subr.mxu0 0.0
    %1318 = vmatpush1.msra.mxu0 0.0
    %1319 = vmatprep.mubr.f32.mxu0 0.0
    %1320 = vmatmul.mubr.f32.gmra.mrb[0].mxu0 %v1251
    %v1321 = vpop.f32.mrb[0].mxu0
    %v1322 = vadd.f32 %v1249, %v1321
    %v1323 = vpop.f32.mrb[0].mxu0
    %1324 = vmatprep.mubr.f32.mxu0 0.0
    %1325 = vmatmul.mubr.f32.gmra.mrb[0].mxu0 %v1253
    %v1326 = vpop.f32.mrb[0].mxu0
    %v1327 = vadd.f32 %v1249, %v1326
    %v1328 = vpop.f32.mrb[0].mxu0
    %1329 = vdwg.mxu0
    %v1332 = vcombine.high %v1322, %v1322
    %v1334 = vunpack.c.l.s4 1983009808
    %v1335 = vunpack.c.0.s8 %v1334
    %v1336 = vlaneseq
    %v1337 = vshrl.u32 %v1336, 7
    %v1338 = vsub.s32 %v1335, %v1337
    %v1339 = vrot.slane %v1322, %v1338
    %v1341 = vunpack.c.l.s4 1983009808
    %v1342 = vunpack.c.0.s8 %v1341
    %v1343 = vlaneseq
    %v1344 = vshrl.u32 %v1343, 7
    %v1345 = vsub.s32 %v1342, %v1344
    %v1346 = vrot.slane %v1332, %v1345
    %v1347 = vcombine.high %v1339, %v1339
    %v1348 = vcombine.high %v1346, %v1346
    %v1349 = vcombine.high %v1327, %v1327
    %v1351 = vunpack.c.l.s4 1983009808
    %v1352 = vunpack.c.0.s8 %v1351
    %v1353 = vlaneseq
    %v1354 = vshrl.u32 %v1353, 7
    %v1355 = vsub.s32 %v1352, %v1354
    %v1356 = vrot.slane %v1327, %v1355
    %v1358 = vunpack.c.l.s4 1983009808
    %v1359 = vunpack.c.0.s8 %v1358
    %v1360 = vlaneseq
    %v1361 = vshrl.u32 %v1360, 7
    %v1362 = vsub.s32 %v1359, %v1361
    %v1363 = vrot.slane %v1349, %v1362
    %v1364 = vcombine.high %v1356, %v1356
    %v1365 = vcombine.high %v1363, %v1363
    %1374 = vst [vmem:[#allocation2] sm:$0x3] %v1339
    %1375 = vst [vmem:[#allocation2 + $0x2] sm:$0x3] %v1347
    %1376 = vst [vmem:[#allocation2 + $0x4] sm:$0x3] %v1346
    %1377 = vst [vmem:[#allocation2 + $0x6] sm:$0x3] %v1348
    %1378 = vst [vmem:[#allocation2 + $0x8] sm:$0x3] %v1356
    %1379 = vst [vmem:[#allocation2 + $0xa] sm:$0x3] %v1364
    %1380 = vst [vmem:[#allocation2 + $0xc] sm:$0x3] %v1363
    %1381 = vst [vmem:[#allocation2 + $0xe] sm:$0x3] %v1365
    %v1382 = vld [vmem:[#allocation16] sm:$0xff]
    %v1383 = vld [vmem:[#allocation16 + $0x8] sm:$0xff]
    %v1384 = vld [vmem:[#allocation16 + $0x10] sm:$0xff]
    %v1385 = vld [vmem:[#allocation16 + $0x18] sm:$0xff]
    %v1386 = vld [vmem:[#allocation6] sm:$0x3]
    %v1387 = vld [vmem:[#allocation7] sm:$0x3]
    %v1388 = vld [vmem:[#allocation2] sm:$0x3]
    %v1390 = vsel %vm331, %v1386, 0
    %1392 = vmatprep.subr.mxu0 0.0
    %1393 = vmatpush1.msra.mxu0 %v1382
    %1394 = vmatprep.subr.mxu0 0.0
    %1395 = vmatpush1.msra.mxu0 %v1383
    %1396 = vmatprep.subr.mxu0 0.0
    %1397 = vmatpush1.msra.mxu0 %v1384
    %1398 = vmatprep.subr.mxu0 0.0
    %1399 = vmatpush1.msra.mxu0 %v1385
    %1400 = vmatprep.subr.mxu0 0.0
    %1401 = vmatpush1.msra.mxu0 0.0
    %1402 = vmatprep.subr.mxu0 0.0
    %1403 = vmatpush1.msra.mxu0 0.0
    %1404 = vmatprep.subr.mxu0 0.0
    %1405 = vmatpush1.msra.mxu0 0.0
    %1406 = vmatprep.subr.mxu0 0.0
    %1407 = vmatpush1.msra.mxu0 0.0
    %1408 = vmatprep.subr.mxu0 0.0
    %1409 = vmatpush1.msra.mxu0 0.0
    %1410 = vmatprep.subr.mxu0 0.0
    %1411 = vmatpush1.msra.mxu0 0.0
    %1412 = vmatprep.subr.mxu0 0.0
    %1413 = vmatpush1.msra.mxu0 0.0
    %1414 = vmatprep.subr.mxu0 0.0
    %1415 = vmatpush1.msra.mxu0 0.0
    %1416 = vmatprep.subr.mxu0 0.0
    %1417 = vmatpush1.msra.mxu0 0.0
    %1418 = vmatprep.subr.mxu0 0.0
    %1419 = vmatpush1.msra.mxu0 0.0
    %1420 = vmatprep.subr.mxu0 0.0
    %1421 = vmatpush1.msra.mxu0 0.0
    %1422 = vmatprep.subr.mxu0 0.0
    %1423 = vmatpush1.msra.mxu0 0.0
    %1424 = vmatprep.subr.mxu0 0.0
    %1425 = vmatpush1.msra.mxu0 0.0
    %1426 = vmatprep.subr.mxu0 0.0
    %1427 = vmatpush1.msra.mxu0 0.0
    %1428 = vmatprep.subr.mxu0 0.0
    %1429 = vmatpush1.msra.mxu0 0.0
    %1430 = vmatprep.subr.mxu0 0.0
    %1431 = vmatpush1.msra.mxu0 0.0
    %1432 = vmatprep.subr.mxu0 0.0
    %1433 = vmatpush1.msra.mxu0 0.0
    %1434 = vmatprep.subr.mxu0 0.0
    %1435 = vmatpush1.msra.mxu0 0.0
    %1436 = vmatprep.subr.mxu0 0.0
    %1437 = vmatpush1.msra.mxu0 0.0
    %1438 = vmatprep.subr.mxu0 0.0
    %1439 = vmatpush1.msra.mxu0 0.0
    %1440 = vmatprep.subr.mxu0 0.0
    %1441 = vmatpush1.msra.mxu0 0.0
    %1442 = vmatprep.subr.mxu0 0.0
    %1443 = vmatpush1.msra.mxu0 0.0
    %1444 = vmatprep.subr.mxu0 0.0
    %1445 = vmatpush1.msra.mxu0 0.0
    %1446 = vmatprep.subr.mxu0 0.0
    %1447 = vmatpush1.msra.mxu0 0.0
    %1448 = vmatprep.subr.mxu0 0.0
    %1449 = vmatpush1.msra.mxu0 0.0
    %1450 = vmatprep.subr.mxu0 0.0
    %1451 = vmatpush1.msra.mxu0 0.0
    %1452 = vmatprep.subr.mxu0 0.0
    %1453 = vmatpush1.msra.mxu0 0.0
    %1454 = vmatprep.subr.mxu0 0.0
    %1455 = vmatpush1.msra.mxu0 0.0
    %1456 = vmatprep.mubr.f32.mxu0 0.0
    %1457 = vmatmul.mubr.f32.gmra.mrb[0].mxu0 %v1390
    %v1458 = vpop.f32.mrb[0].mxu0
    %v1459 = vadd.f32 0.0, %v1458
    %v1460 = vpop.f32.mrb[0].mxu0
    %1461 = vdwg.mxu0
    %v1462 = vadd.f32 %v1388, %v1459
    %v1463 = vxor.u32 %v1462, 2147483648
    %v1464 = vmul.f32 %v1463, 1.442695
    %v1465 = vpow.pop %v1464
    %v1466 = vadd.f32 %v1465, 1.0
    %v1467 = vrcp.pop %v1466
    %v1468 = vmul.f32 1.0, %v1467
    %v1469 = vtanh.pop %v1462
    %1471 = vrot.lane.b32.xlu0 %v1387, 32
    %v1472 = vpop.permute.xlu0 %1471
    %v1474 = vmul.f32 %v1468, %v1472
    %1476 = vrot.lane.b32.xlu0 %v1469, 64
    %v1477 = vpop.permute.xlu0 %1476
    %v1479 = vmul.f32 %v1468, %v1477
    %1481 = vrot.lane.b32.xlu0 %v1479, 32
    %v1482 = vpop.permute.xlu0 %1481
    %v1484 = vadd.f32 %v1474, %v1482
    %v1485 = vtanh.pop %v1484
    %1487 = vrot.lane.b32.xlu0 %v1485, 64
    %v1488 = vpop.permute.xlu0 %1487
    %v1490 = vmul.f32 %v1468, %v1488
    %v1491 = vld [vmem:[%s440] sm:$0x3]
    %1493 = vrot.lane.b32.xlu0 %v1490, 32
    %v1494 = vpop.permute.xlu0 %1493
    %v1495 = vsel %vm331, %v1494, 0
    %1497 = vmatprep.subr.mxu0 0.0
    %1498 = vmatpush1.msra.mxu0 %v1382
    %1499 = vmatprep.subr.mxu0 0.0
    %1500 = vmatpush1.msra.mxu0 %v1383
    %1501 = vmatprep.subr.mxu0 0.0
    %1502 = vmatpush1.msra.mxu0 %v1384
    %1503 = vmatprep.subr.mxu0 0.0
    %1504 = vmatpush1.msra.mxu0 %v1385
    %1505 = vmatprep.subr.mxu0 0.0
    %1506 = vmatpush1.msra.mxu0 0.0
    %1507 = vmatprep.subr.mxu0 0.0
    %1508 = vmatpush1.msra.mxu0 0.0
    %1509 = vmatprep.subr.mxu0 0.0
    %1510 = vmatpush1.msra.mxu0 0.0
    %1511 = vmatprep.subr.mxu0 0.0
    %1512 = vmatpush1.msra.mxu0 0.0
    %1513 = vmatprep.subr.mxu0 0.0
    %1514 = vmatpush1.msra.mxu0 0.0
    %1515 = vmatprep.subr.mxu0 0.0
    %1516 = vmatpush1.msra.mxu0 0.0
    %1517 = vmatprep.subr.mxu0 0.0
    %1518 = vmatpush1.msra.mxu0 0.0
    %1519 = vmatprep.subr.mxu0 0.0
    %1520 = vmatpush1.msra.mxu0 0.0
    %1521 = vmatprep.subr.mxu0 0.0
    %1522 = vmatpush1.msra.mxu0 0.0
    %1523 = vmatprep.subr.mxu0 0.0
    %1524 = vmatpush1.msra.mxu0 0.0
    %1525 = vmatprep.subr.mxu0 0.0
    %1526 = vmatpush1.msra.mxu0 0.0
    %1527 = vmatprep.subr.mxu0 0.0
    %1528 = vmatpush1.msra.mxu0 0.0
    %1529 = vmatprep.subr.mxu0 0.0
    %1530 = vmatpush1.msra.mxu0 0.0
    %1531 = vmatprep.subr.mxu0 0.0
    %1532 = vmatpush1.msra.mxu0 0.0
    %1533 = vmatprep.subr.mxu0 0.0
    %1534 = vmatpush1.msra.mxu0 0.0
    %1535 = vmatprep.subr.mxu0 0.0
    %1536 = vmatpush1.msra.mxu0 0.0
    %1537 = vmatprep.subr.mxu0 0.0
    %1538 = vmatpush1.msra.mxu0 0.0
    %1539 = vmatprep.subr.mxu0 0.0
    %1540 = vmatpush1.msra.mxu0 0.0
    %1541 = vmatprep.subr.mxu0 0.0
    %1542 = vmatpush1.msra.mxu0 0.0
    %1543 = vmatprep.subr.mxu0 0.0
    %1544 = vmatpush1.msra.mxu0 0.0
    %1545 = vmatprep.subr.mxu0 0.0
    %1546 = vmatpush1.msra.mxu0 0.0
    %1547 = vmatprep.subr.mxu0 0.0
    %1548 = vmatpush1.msra.mxu0 0.0
    %1549 = vmatprep.subr.mxu0 0.0
    %1550 = vmatpush1.msra.mxu0 0.0
    %1551 = vmatprep.subr.mxu0 0.0
    %1552 = vmatpush1.msra.mxu0 0.0
    %1553 = vmatprep.subr.mxu0 0.0
    %1554 = vmatpush1.msra.mxu0 0.0
    %1555 = vmatprep.subr.mxu0 0.0
    %1556 = vmatpush1.msra.mxu0 0.0
    %1557 = vmatprep.subr.mxu0 0.0
    %1558 = vmatpush1.msra.mxu0 0.0
    %1559 = vmatprep.subr.mxu0 0.0
    %1560 = vmatpush1.msra.mxu0 0.0
    %1561 = vmatprep.mubr.f32.mxu0 0.0
    %1562 = vmatmul.mubr.f32.gmra.mrb[0].mxu0 %v1495
    %v1563 = vpop.f32.mrb[0].mxu0
    %v1564 = vadd.f32 0.0, %v1563
    %v1565 = vpop.f32.mrb[0].mxu0
    %1566 = vdwg.mxu0
    %v1567 = vadd.f32 %v1491, %v1564
    %v1568 = vxor.u32 %v1567, 2147483648
    %v1569 = vmul.f32 %v1568, 1.442695
    %v1570 = vpow.pop %v1569
    %v1571 = vadd.f32 %v1570, 1.0
    %v1572 = vrcp.pop %v1571
    %v1573 = vmul.f32 1.0, %v1572
    %v1574 = vtanh.pop %v1567
    %v1575 = vmul.f32 %v1573, %v1484
    %1577 = vrot.lane.b32.xlu0 %v1574, 64
    %v1578 = vpop.permute.xlu0 %1577
    %v1580 = vmul.f32 %v1573, %v1578
    %1582 = vrot.lane.b32.xlu0 %v1580, 32
    %v1583 = vpop.permute.xlu0 %1582
    %v1585 = vadd.f32 %v1575, %v1583
    %v1586 = vtanh.pop %v1585
    %1588 = vrot.lane.b32.xlu0 %v1586, 64
    %v1589 = vpop.permute.xlu0 %1588
    %v1591 = vmul.f32 %v1573, %v1589
    %v1592 = vld [vmem:[%s545] sm:$0x3]
    %1594 = vrot.lane.b32.xlu0 %v1591, 32
    %v1595 = vpop.permute.xlu0 %1594
    %v1596 = vsel %vm331, %v1595, 0
    %1598 = vmatprep.subr.mxu0 0.0
    %1599 = vmatpush1.msra.mxu0 %v1382
    %1600 = vmatprep.subr.mxu0 0.0
    %1601 = vmatpush1.msra.mxu0 %v1383
    %1602 = vmatprep.subr.mxu0 0.0
    %1603 = vmatpush1.msra.mxu0 %v1384
    %1604 = vmatprep.subr.mxu0 0.0
    %1605 = vmatpush1.msra.mxu0 %v1385
    %1606 = vmatprep.subr.mxu0 0.0
    %1607 = vmatpush1.msra.mxu0 0.0
    %1608 = vmatprep.subr.mxu0 0.0
    %1609 = vmatpush1.msra.mxu0 0.0
    %1610 = vmatprep.subr.mxu0 0.0
    %1611 = vmatpush1.msra.mxu0 0.0
    %1612 = vmatprep.subr.mxu0 0.0
    %1613 = vmatpush1.msra.mxu0 0.0
    %1614 = vmatprep.subr.mxu0 0.0
    %1615 = vmatpush1.msra.mxu0 0.0
    %1616 = vmatprep.subr.mxu0 0.0
    %1617 = vmatpush1.msra.mxu0 0.0
    %1618 = vmatprep.subr.mxu0 0.0
    %1619 = vmatpush1.msra.mxu0 0.0
    %1620 = vmatprep.subr.mxu0 0.0
    %1621 = vmatpush1.msra.mxu0 0.0
    %1622 = vmatprep.subr.mxu0 0.0
    %1623 = vmatpush1.msra.mxu0 0.0
    %1624 = vmatprep.subr.mxu0 0.0
    %1625 = vmatpush1.msra.mxu0 0.0
    %1626 = vmatprep.subr.mxu0 0.0
    %1627 = vmatpush1.msra.mxu0 0.0
    %1628 = vmatprep.subr.mxu0 0.0
    %1629 = vmatpush1.msra.mxu0 0.0
    %1630 = vmatprep.subr.mxu0 0.0
    %1631 = vmatpush1.msra.mxu0 0.0
    %1632 = vmatprep.subr.mxu0 0.0
    %1633 = vmatpush1.msra.mxu0 0.0
    %1634 = vmatprep.subr.mxu0 0.0
    %1635 = vmatpush1.msra.mxu0 0.0
    %1636 = vmatprep.subr.mxu0 0.0
    %1637 = vmatpush1.msra.mxu0 0.0
    %1638 = vmatprep.subr.mxu0 0.0
    %1639 = vmatpush1.msra.mxu0 0.0
    %1640 = vmatprep.subr.mxu0 0.0
    %1641 = vmatpush1.msra.mxu0 0.0
    %1642 = vmatprep.subr.mxu0 0.0
    %1643 = vmatpush1.msra.mxu0 0.0
    %1644 = vmatprep.subr.mxu0 0.0
    %1645 = vmatpush1.msra.mxu0 0.0
    %1646 = vmatprep.subr.mxu0 0.0
    %1647 = vmatpush1.msra.mxu0 0.0
    %1648 = vmatprep.subr.mxu0 0.0
    %1649 = vmatpush1.msra.mxu0 0.0
    %1650 = vmatprep.subr.mxu0 0.0
    %1651 = vmatpush1.msra.mxu0 0.0
    %1652 = vmatprep.subr.mxu0 0.0
    %1653 = vmatpush1.msra.mxu0 0.0
    %1654 = vmatprep.subr.mxu0 0.0
    %1655 = vmatpush1.msra.mxu0 0.0
    %1656 = vmatprep.subr.mxu0 0.0
    %1657 = vmatpush1.msra.mxu0 0.0
    %1658 = vmatprep.subr.mxu0 0.0
    %1659 = vmatpush1.msra.mxu0 0.0
    %1660 = vmatprep.subr.mxu0 0.0
    %1661 = vmatpush1.msra.mxu0 0.0
    %1662 = vmatprep.mubr.f32.mxu0 0.0
    %1663 = vmatmul.mubr.f32.gmra.mrb[0].mxu0 %v1596
    %v1664 = vpop.f32.mrb[0].mxu0
    %v1665 = vadd.f32 0.0, %v1664
    %v1666 = vpop.f32.mrb[0].mxu0
    %1667 = vdwg.mxu0
    %v1668 = vadd.f32 %v1592, %v1665
    %v1669 = vxor.u32 %v1668, 2147483648
    %v1670 = vmul.f32 %v1669, 1.442695
    %v1671 = vpow.pop %v1670
    %v1672 = vadd.f32 %v1671, 1.0
    %v1673 = vrcp.pop %v1672
    %v1674 = vmul.f32 1.0, %v1673
    %v1675 = vtanh.pop %v1668
    %v1676 = vmul.f32 %v1674, %v1585
    %1678 = vrot.lane.b32.xlu0 %v1675, 64
    %v1679 = vpop.permute.xlu0 %1678
    %v1681 = vmul.f32 %v1674, %v1679
    %1683 = vrot.lane.b32.xlu0 %v1681, 32
    %v1684 = vpop.permute.xlu0 %1683
    %v1686 = vadd.f32 %v1676, %v1684
    %v1687 = vtanh.pop %v1686
    %1689 = vrot.lane.b32.xlu0 %v1687, 64
    %v1690 = vpop.permute.xlu0 %1689
    %v1692 = vmul.f32 %v1674, %v1690
    %v1693 = vld [vmem:[%s650] sm:$0x3]
    %1695 = vrot.lane.b32.xlu0 %v1692, 32
    %v1696 = vpop.permute.xlu0 %1695
    %v1697 = vsel %vm331, %v1696, 0
    %1699 = vmatprep.subr.mxu0 0.0
    %1700 = vmatpush1.msra.mxu0 %v1382
    %1701 = vmatprep.subr.mxu0 0.0
    %1702 = vmatpush1.msra.mxu0 %v1383
    %1703 = vmatprep.subr.mxu0 0.0
    %1704 = vmatpush1.msra.mxu0 %v1384
    %1705 = vmatprep.subr.mxu0 0.0
    %1706 = vmatpush1.msra.mxu0 %v1385
    %1707 = vmatprep.subr.mxu0 0.0
    %1708 = vmatpush1.msra.mxu0 0.0
    %1709 = vmatprep.subr.mxu0 0.0
    %1710 = vmatpush1.msra.mxu0 0.0
    %1711 = vmatprep.subr.mxu0 0.0
    %1712 = vmatpush1.msra.mxu0 0.0
    %1713 = vmatprep.subr.mxu0 0.0
    %1714 = vmatpush1.msra.mxu0 0.0
    %1715 = vmatprep.subr.mxu0 0.0
    %1716 = vmatpush1.msra.mxu0 0.0
    %1717 = vmatprep.subr.mxu0 0.0
    %1718 = vmatpush1.msra.mxu0 0.0
    %1719 = vmatprep.subr.mxu0 0.0
    %1720 = vmatpush1.msra.mxu0 0.0
    %1721 = vmatprep.subr.mxu0 0.0
    %1722 = vmatpush1.msra.mxu0 0.0
    %1723 = vmatprep.subr.mxu0 0.0
    %1724 = vmatpush1.msra.mxu0 0.0
    %1725 = vmatprep.subr.mxu0 0.0
    %1726 = vmatpush1.msra.mxu0 0.0
    %1727 = vmatprep.subr.mxu0 0.0
    %1728 = vmatpush1.msra.mxu0 0.0
    %1729 = vmatprep.subr.mxu0 0.0
    %1730 = vmatpush1.msra.mxu0 0.0
    %1731 = vmatprep.subr.mxu0 0.0
    %1732 = vmatpush1.msra.mxu0 0.0
    %1733 = vmatprep.subr.mxu0 0.0
    %1734 = vmatpush1.msra.mxu0 0.0
    %1735 = vmatprep.subr.mxu0 0.0
    %1736 = vmatpush1.msra.mxu0 0.0
    %1737 = vmatprep.subr.mxu0 0.0
    %1738 = vmatpush1.msra.mxu0 0.0
    %1739 = vmatprep.subr.mxu0 0.0
    %1740 = vmatpush1.msra.mxu0 0.0
    %1741 = vmatprep.subr.mxu0 0.0
    %1742 = vmatpush1.msra.mxu0 0.0
    %1743 = vmatprep.subr.mxu0 0.0
    %1744 = vmatpush1.msra.mxu0 0.0
    %1745 = vmatprep.subr.mxu0 0.0
    %1746 = vmatpush1.msra.mxu0 0.0
    %1747 = vmatprep.subr.mxu0 0.0
    %1748 = vmatpush1.msra.mxu0 0.0
    %1749 = vmatprep.subr.mxu0 0.0
    %1750 = vmatpush1.msra.mxu0 0.0
    %1751 = vmatprep.subr.mxu0 0.0
    %1752 = vmatpush1.msra.mxu0 0.0
    %1753 = vmatprep.subr.mxu0 0.0
    %1754 = vmatpush1.msra.mxu0 0.0
    %1755 = vmatprep.subr.mxu0 0.0
    %1756 = vmatpush1.msra.mxu0 0.0
    %1757 = vmatprep.subr.mxu0 0.0
    %1758 = vmatpush1.msra.mxu0 0.0
    %1759 = vmatprep.subr.mxu0 0.0
    %1760 = vmatpush1.msra.mxu0 0.0
    %1761 = vmatprep.subr.mxu0 0.0
    %1762 = vmatpush1.msra.mxu0 0.0
    %1763 = vmatprep.mubr.f32.mxu0 0.0
    %1764 = vmatmul.mubr.f32.gmra.mrb[0].mxu0 %v1697
    %v1765 = vpop.f32.mrb[0].mxu0
    %v1766 = vadd.f32 0.0, %v1765
    %v1767 = vpop.f32.mrb[0].mxu0
    %1768 = vdwg.mxu0
    %v1769 = vadd.f32 %v1693, %v1766
    %v1770 = vxor.u32 %v1769, 2147483648
    %v1771 = vmul.f32 %v1770, 1.442695
    %v1772 = vpow.pop %v1771
    %v1773 = vadd.f32 %v1772, 1.0
    %v1774 = vrcp.pop %v1773
    %v1775 = vmul.f32 1.0, %v1774
    %v1776 = vtanh.pop %v1769
    %v1777 = vmul.f32 %v1775, %v1686
    %1779 = vrot.lane.b32.xlu0 %v1776, 64
    %v1780 = vpop.permute.xlu0 %1779
    %v1782 = vmul.f32 %v1775, %v1780
    %1784 = vrot.lane.b32.xlu0 %v1782, 32
    %v1785 = vpop.permute.xlu0 %1784
    %v1787 = vadd.f32 %v1777, %v1785
    %v1788 = vtanh.pop %v1787
    %1790 = vrot.lane.b32.xlu0 %v1788, 64
    %v1791 = vpop.permute.xlu0 %1790
    %v1793 = vmul.f32 %v1775, %v1791
    %v1794 = vld [vmem:[%s755] sm:$0x3]
    %1796 = vrot.lane.b32.xlu0 %v1793, 32
    %v1797 = vpop.permute.xlu0 %1796
    %v1798 = vsel %vm331, %v1797, 0
    %1800 = vmatprep.subr.mxu0 0.0
    %1801 = vmatpush1.msra.mxu0 %v1382
    %1802 = vmatprep.subr.mxu0 0.0
    %1803 = vmatpush1.msra.mxu0 %v1383
    %1804 = vmatprep.subr.mxu0 0.0
    %1805 = vmatpush1.msra.mxu0 %v1384
    %1806 = vmatprep.subr.mxu0 0.0
    %1807 = vmatpush1.msra.mxu0 %v1385
    %1808 = vmatprep.subr.mxu0 0.0
    %1809 = vmatpush1.msra.mxu0 0.0
    %1810 = vmatprep.subr.mxu0 0.0
    %1811 = vmatpush1.msra.mxu0 0.0
    %1812 = vmatprep.subr.mxu0 0.0
    %1813 = vmatpush1.msra.mxu0 0.0
    %1814 = vmatprep.subr.mxu0 0.0
    %1815 = vmatpush1.msra.mxu0 0.0
    %1816 = vmatprep.subr.mxu0 0.0
    %1817 = vmatpush1.msra.mxu0 0.0
    %1818 = vmatprep.subr.mxu0 0.0
    %1819 = vmatpush1.msra.mxu0 0.0
    %1820 = vmatprep.subr.mxu0 0.0
    %1821 = vmatpush1.msra.mxu0 0.0
    %1822 = vmatprep.subr.mxu0 0.0
    %1823 = vmatpush1.msra.mxu0 0.0
    %1824 = vmatprep.subr.mxu0 0.0
    %1825 = vmatpush1.msra.mxu0 0.0
    %1826 = vmatprep.subr.mxu0 0.0
    %1827 = vmatpush1.msra.mxu0 0.0
    %1828 = vmatprep.subr.mxu0 0.0
    %1829 = vmatpush1.msra.mxu0 0.0
    %1830 = vmatprep.subr.mxu0 0.0
    %1831 = vmatpush1.msra.mxu0 0.0
    %1832 = vmatprep.subr.mxu0 0.0
    %1833 = vmatpush1.msra.mxu0 0.0
    %1834 = vmatprep.subr.mxu0 0.0
    %1835 = vmatpush1.msra.mxu0 0.0
    %1836 = vmatprep.subr.mxu0 0.0
    %1837 = vmatpush1.msra.mxu0 0.0
    %1838 = vmatprep.subr.mxu0 0.0
    %1839 = vmatpush1.msra.mxu0 0.0
    %1840 = vmatprep.subr.mxu0 0.0
    %1841 = vmatpush1.msra.mxu0 0.0
    %1842 = vmatprep.subr.mxu0 0.0
    %1843 = vmatpush1.msra.mxu0 0.0
    %1844 = vmatprep.subr.mxu0 0.0
    %1845 = vmatpush1.msra.mxu0 0.0
    %1846 = vmatprep.subr.mxu0 0.0
    %1847 = vmatpush1.msra.mxu0 0.0
    %1848 = vmatprep.subr.mxu0 0.0
    %1849 = vmatpush1.msra.mxu0 0.0
    %1850 = vmatprep.subr.mxu0 0.0
    %1851 = vmatpush1.msra.mxu0 0.0
    %1852 = vmatprep.subr.mxu0 0.0
    %1853 = vmatpush1.msra.mxu0 0.0
    %1854 = vmatprep.subr.mxu0 0.0
    %1855 = vmatpush1.msra.mxu0 0.0
    %1856 = vmatprep.subr.mxu0 0.0
    %1857 = vmatpush1.msra.mxu0 0.0
    %1858 = vmatprep.subr.mxu0 0.0
    %1859 = vmatpush1.msra.mxu0 0.0
    %1860 = vmatprep.subr.mxu0 0.0
    %1861 = vmatpush1.msra.mxu0 0.0
    %1862 = vmatprep.subr.mxu0 0.0
    %1863 = vmatpush1.msra.mxu0 0.0
    %1864 = vmatprep.mubr.f32.mxu0 0.0
    %1865 = vmatmul.mubr.f32.gmra.mrb[0].mxu0 %v1798
    %v1866 = vpop.f32.mrb[0].mxu0
    %v1867 = vadd.f32 0.0, %v1866
    %v1868 = vpop.f32.mrb[0].mxu0
    %1869 = vdwg.mxu0
    %v1870 = vadd.f32 %v1794, %v1867
    %v1871 = vxor.u32 %v1870, 2147483648
    %v1872 = vmul.f32 %v1871, 1.442695
    %v1873 = vpow.pop %v1872
    %v1874 = vadd.f32 %v1873, 1.0
    %v1875 = vrcp.pop %v1874
    %v1876 = vmul.f32 1.0, %v1875
    %v1877 = vtanh.pop %v1870
    %v1878 = vmul.f32 %v1876, %v1787
    %1880 = vrot.lane.b32.xlu0 %v1877, 64
    %v1881 = vpop.permute.xlu0 %1880
    %v1883 = vmul.f32 %v1876, %v1881
    %1885 = vrot.lane.b32.xlu0 %v1883, 32
    %v1886 = vpop.permute.xlu0 %1885
    %v1888 = vadd.f32 %v1878, %v1886
    %v1889 = vtanh.pop %v1888
    %1891 = vrot.lane.b32.xlu0 %v1889, 64
    %v1892 = vpop.permute.xlu0 %1891
    %v1894 = vmul.f32 %v1876, %v1892
    %v1895 = vld [vmem:[%s860] sm:$0x3]
    %1897 = vrot.lane.b32.xlu0 %v1894, 32
    %v1898 = vpop.permute.xlu0 %1897
    %v1899 = vsel %vm331, %v1898, 0
    %1901 = vmatprep.subr.mxu0 0.0
    %1902 = vmatpush1.msra.mxu0 %v1382
    %1903 = vmatprep.subr.mxu0 0.0
    %1904 = vmatpush1.msra.mxu0 %v1383
    %1905 = vmatprep.subr.mxu0 0.0
    %1906 = vmatpush1.msra.mxu0 %v1384
    %1907 = vmatprep.subr.mxu0 0.0
    %1908 = vmatpush1.msra.mxu0 %v1385
    %1909 = vmatprep.subr.mxu0 0.0
    %1910 = vmatpush1.msra.mxu0 0.0
    %1911 = vmatprep.subr.mxu0 0.0
    %1912 = vmatpush1.msra.mxu0 0.0
    %1913 = vmatprep.subr.mxu0 0.0
    %1914 = vmatpush1.msra.mxu0 0.0
    %1915 = vmatprep.subr.mxu0 0.0
    %1916 = vmatpush1.msra.mxu0 0.0
    %1917 = vmatprep.subr.mxu0 0.0
    %1918 = vmatpush1.msra.mxu0 0.0
    %1919 = vmatprep.subr.mxu0 0.0
    %1920 = vmatpush1.msra.mxu0 0.0
    %1921 = vmatprep.subr.mxu0 0.0
    %1922 = vmatpush1.msra.mxu0 0.0
    %1923 = vmatprep.subr.mxu0 0.0
    %1924 = vmatpush1.msra.mxu0 0.0
    %1925 = vmatprep.subr.mxu0 0.0
    %1926 = vmatpush1.msra.mxu0 0.0
    %1927 = vmatprep.subr.mxu0 0.0
    %1928 = vmatpush1.msra.mxu0 0.0
    %1929 = vmatprep.subr.mxu0 0.0
    %1930 = vmatpush1.msra.mxu0 0.0
    %1931 = vmatprep.subr.mxu0 0.0
    %1932 = vmatpush1.msra.mxu0 0.0
    %1933 = vmatprep.subr.mxu0 0.0
    %1934 = vmatpush1.msra.mxu0 0.0
    %1935 = vmatprep.subr.mxu0 0.0
    %1936 = vmatpush1.msra.mxu0 0.0
    %1937 = vmatprep.subr.mxu0 0.0
    %1938 = vmatpush1.msra.mxu0 0.0
    %1939 = vmatprep.subr.mxu0 0.0
    %1940 = vmatpush1.msra.mxu0 0.0
    %1941 = vmatprep.subr.mxu0 0.0
    %1942 = vmatpush1.msra.mxu0 0.0
    %1943 = vmatprep.subr.mxu0 0.0
    %1944 = vmatpush1.msra.mxu0 0.0
    %1945 = vmatprep.subr.mxu0 0.0
    %1946 = vmatpush1.msra.mxu0 0.0
    %1947 = vmatprep.subr.mxu0 0.0
    %1948 = vmatpush1.msra.mxu0 0.0
    %1949 = vmatprep.subr.mxu0 0.0
    %1950 = vmatpush1.msra.mxu0 0.0
    %1951 = vmatprep.subr.mxu0 0.0
    %1952 = vmatpush1.msra.mxu0 0.0
    %1953 = vmatprep.subr.mxu0 0.0
    %1954 = vmatpush1.msra.mxu0 0.0
    %1955 = vmatprep.subr.mxu0 0.0
    %1956 = vmatpush1.msra.mxu0 0.0
    %1957 = vmatprep.subr.mxu0 0.0
    %1958 = vmatpush1.msra.mxu0 0.0
    %1959 = vmatprep.subr.mxu0 0.0
    %1960 = vmatpush1.msra.mxu0 0.0
    %1961 = vmatprep.subr.mxu0 0.0
    %1962 = vmatpush1.msra.mxu0 0.0
    %1963 = vmatprep.subr.mxu0 0.0
    %1964 = vmatpush1.msra.mxu0 0.0
    %1965 = vmatprep.mubr.f32.mxu0 0.0
    %1966 = vmatmul.mubr.f32.gmra.mrb[0].mxu0 %v1899
    %v1967 = vpop.f32.mrb[0].mxu0
    %v1968 = vadd.f32 0.0, %v1967
    %v1969 = vpop.f32.mrb[0].mxu0
    %1970 = vdwg.mxu0
    %v1971 = vadd.f32 %v1895, %v1968
    %v1972 = vxor.u32 %v1971, 2147483648
    %v1973 = vmul.f32 %v1972, 1.442695
    %v1974 = vpow.pop %v1973
    %v1975 = vadd.f32 %v1974, 1.0
    %v1976 = vrcp.pop %v1975
    %v1977 = vmul.f32 1.0, %v1976
    %v1978 = vtanh.pop %v1971
    %v1979 = vmul.f32 %v1977, %v1888
    %1981 = vrot.lane.b32.xlu0 %v1978, 64
    %v1982 = vpop.permute.xlu0 %1981
    %v1984 = vmul.f32 %v1977, %v1982
    %1986 = vrot.lane.b32.xlu0 %v1984, 32
    %v1987 = vpop.permute.xlu0 %1986
    %v1989 = vadd.f32 %v1979, %v1987
    %v1990 = vtanh.pop %v1989
    %1992 = vrot.lane.b32.xlu0 %v1990, 64
    %v1993 = vpop.permute.xlu0 %1992
    %v1995 = vmul.f32 %v1977, %v1993
    %v1996 = vld [vmem:[%s965] sm:$0x3]
    %1998 = vrot.lane.b32.xlu0 %v1995, 32
    %v1999 = vpop.permute.xlu0 %1998
    %v2000 = vsel %vm331, %v1999, 0
    %2002 = vmatprep.subr.mxu0 0.0
    %2003 = vmatpush1.msra.mxu0 %v1382
    %2004 = vmatprep.subr.mxu0 0.0
    %2005 = vmatpush1.msra.mxu0 %v1383
    %2006 = vmatprep.subr.mxu0 0.0
    %2007 = vmatpush1.msra.mxu0 %v1384
    %2008 = vmatprep.subr.mxu0 0.0
    %2009 = vmatpush1.msra.mxu0 %v1385
    %2010 = vmatprep.subr.mxu0 0.0
    %2011 = vmatpush1.msra.mxu0 0.0
    %2012 = vmatprep.subr.mxu0 0.0
    %2013 = vmatpush1.msra.mxu0 0.0
    %2014 = vmatprep.subr.mxu0 0.0
    %2015 = vmatpush1.msra.mxu0 0.0
    %2016 = vmatprep.subr.mxu0 0.0
    %2017 = vmatpush1.msra.mxu0 0.0
    %2018 = vmatprep.subr.mxu0 0.0
    %2019 = vmatpush1.msra.mxu0 0.0
    %2020 = vmatprep.subr.mxu0 0.0
    %2021 = vmatpush1.msra.mxu0 0.0
    %2022 = vmatprep.subr.mxu0 0.0
    %2023 = vmatpush1.msra.mxu0 0.0
    %2024 = vmatprep.subr.mxu0 0.0
    %2025 = vmatpush1.msra.mxu0 0.0
    %2026 = vmatprep.subr.mxu0 0.0
    %2027 = vmatpush1.msra.mxu0 0.0
    %2028 = vmatprep.subr.mxu0 0.0
    %2029 = vmatpush1.msra.mxu0 0.0
    %2030 = vmatprep.subr.mxu0 0.0
    %2031 = vmatpush1.msra.mxu0 0.0
    %2032 = vmatprep.subr.mxu0 0.0
    %2033 = vmatpush1.msra.mxu0 0.0
    %2034 = vmatprep.subr.mxu0 0.0
    %2035 = vmatpush1.msra.mxu0 0.0
    %2036 = vmatprep.subr.mxu0 0.0
    %2037 = vmatpush1.msra.mxu0 0.0
    %2038 = vmatprep.subr.mxu0 0.0
    %2039 = vmatpush1.msra.mxu0 0.0
    %2040 = vmatprep.subr.mxu0 0.0
    %2041 = vmatpush1.msra.mxu0 0.0
    %2042 = vmatprep.subr.mxu0 0.0
    %2043 = vmatpush1.msra.mxu0 0.0
    %2044 = vmatprep.subr.mxu0 0.0
    %2045 = vmatpush1.msra.mxu0 0.0
    %2046 = vmatprep.subr.mxu0 0.0
    %2047 = vmatpush1.msra.mxu0 0.0
    %2048 = vmatprep.subr.mxu0 0.0
    %2049 = vmatpush1.msra.mxu0 0.0
    %2050 = vmatprep.subr.mxu0 0.0
    %2051 = vmatpush1.msra.mxu0 0.0
    %2052 = vmatprep.subr.mxu0 0.0
    %2053 = vmatpush1.msra.mxu0 0.0
    %2054 = vmatprep.subr.mxu0 0.0
    %2055 = vmatpush1.msra.mxu0 0.0
    %2056 = vmatprep.subr.mxu0 0.0
    %2057 = vmatpush1.msra.mxu0 0.0
    %2058 = vmatprep.subr.mxu0 0.0
    %2059 = vmatpush1.msra.mxu0 0.0
    %2060 = vmatprep.subr.mxu0 0.0
    %2061 = vmatpush1.msra.mxu0 0.0
    %2062 = vmatprep.subr.mxu0 0.0
    %2063 = vmatpush1.msra.mxu0 0.0
    %2064 = vmatprep.subr.mxu0 0.0
    %2065 = vmatpush1.msra.mxu0 0.0
    %2066 = vmatprep.mubr.f32.mxu0 0.0
    %2067 = vmatmul.mubr.f32.gmra.mrb[0].mxu0 %v2000
    %v2068 = vpop.f32.mrb[0].mxu0
    %v2069 = vadd.f32 0.0, %v2068
    %v2070 = vpop.f32.mrb[0].mxu0
    %2071 = vdwg.mxu0
    %v2072 = vadd.f32 %v1996, %v2069
    %v2073 = vxor.u32 %v2072, 2147483648
    %v2074 = vmul.f32 %v2073, 1.442695
    %v2075 = vpow.pop %v2074
    %v2076 = vadd.f32 %v2075, 1.0
    %v2077 = vrcp.pop %v2076
    %v2078 = vmul.f32 1.0, %v2077
    %v2079 = vtanh.pop %v2072
    %v2080 = vmul.f32 %v2078, %v1989
    %2082 = vrot.lane.b32.xlu0 %v2079, 64
    %v2083 = vpop.permute.xlu0 %2082
    %v2085 = vmul.f32 %v2078, %v2083
    %2087 = vrot.lane.b32.xlu0 %v2085, 32
    %v2088 = vpop.permute.xlu0 %2087
    %v2090 = vadd.f32 %v2080, %v2088
    %v2091 = vtanh.pop %v2090
    %2093 = vrot.lane.b32.xlu0 %v2091, 64
    %v2094 = vpop.permute.xlu0 %2093
    %v2096 = vmul.f32 %v2078, %v2094
    %v2097 = vld [vmem:[%s1070] sm:$0x3]
    %2099 = vrot.lane.b32.xlu0 %v2096, 32
    %v2100 = vpop.permute.xlu0 %2099
    %v2101 = vsel %vm331, %v2100, 0
    %2103 = vmatprep.subr.mxu0 0.0
    %2104 = vmatpush1.msra.mxu0 %v1382
    %2105 = vmatprep.subr.mxu0 0.0
    %2106 = vmatpush1.msra.mxu0 %v1383
    %2107 = vmatprep.subr.mxu0 0.0
    %2108 = vmatpush1.msra.mxu0 %v1384
    %2109 = vmatprep.subr.mxu0 0.0
    %2110 = vmatpush1.msra.mxu0 %v1385
    %2111 = vmatprep.subr.mxu0 0.0
    %2112 = vmatpush1.msra.mxu0 0.0
    %2113 = vmatprep.subr.mxu0 0.0
    %2114 = vmatpush1.msra.mxu0 0.0
    %2115 = vmatprep.subr.mxu0 0.0
    %2116 = vmatpush1.msra.mxu0 0.0
    %2117 = vmatprep.subr.mxu0 0.0
    %2118 = vmatpush1.msra.mxu0 0.0
    %2119 = vmatprep.subr.mxu0 0.0
    %2120 = vmatpush1.msra.mxu0 0.0
    %2121 = vmatprep.subr.mxu0 0.0
    %2122 = vmatpush1.msra.mxu0 0.0
    %2123 = vmatprep.subr.mxu0 0.0
    %2124 = vmatpush1.msra.mxu0 0.0
    %2125 = vmatprep.subr.mxu0 0.0
    %2126 = vmatpush1.msra.mxu0 0.0
    %2127 = vmatprep.subr.mxu0 0.0
    %2128 = vmatpush1.msra.mxu0 0.0
    %2129 = vmatprep.subr.mxu0 0.0
    %2130 = vmatpush1.msra.mxu0 0.0
    %2131 = vmatprep.subr.mxu0 0.0
    %2132 = vmatpush1.msra.mxu0 0.0
    %2133 = vmatprep.subr.mxu0 0.0
    %2134 = vmatpush1.msra.mxu0 0.0
    %2135 = vmatprep.subr.mxu0 0.0
    %2136 = vmatpush1.msra.mxu0 0.0
    %2137 = vmatprep.subr.mxu0 0.0
    %2138 = vmatpush1.msra.mxu0 0.0
    %2139 = vmatprep.subr.mxu0 0.0
    %2140 = vmatpush1.msra.mxu0 0.0
    %2141 = vmatprep.subr.mxu0 0.0
    %2142 = vmatpush1.msra.mxu0 0.0
    %2143 = vmatprep.subr.mxu0 0.0
    %2144 = vmatpush1.msra.mxu0 0.0
    %2145 = vmatprep.subr.mxu0 0.0
    %2146 = vmatpush1.msra.mxu0 0.0
    %2147 = vmatprep.subr.mxu0 0.0
    %2148 = vmatpush1.msra.mxu0 0.0
    %2149 = vmatprep.subr.mxu0 0.0
    %2150 = vmatpush1.msra.mxu0 0.0
    %2151 = vmatprep.subr.mxu0 0.0
    %2152 = vmatpush1.msra.mxu0 0.0
    %2153 = vmatprep.subr.mxu0 0.0
    %2154 = vmatpush1.msra.mxu0 0.0
    %2155 = vmatprep.subr.mxu0 0.0
    %2156 = vmatpush1.msra.mxu0 0.0
    %2157 = vmatprep.subr.mxu0 0.0
    %2158 = vmatpush1.msra.mxu0 0.0
    %2159 = vmatprep.subr.mxu0 0.0
    %2160 = vmatpush1.msra.mxu0 0.0
    %2161 = vmatprep.subr.mxu0 0.0
    %2162 = vmatpush1.msra.mxu0 0.0
    %2163 = vmatprep.subr.mxu0 0.0
    %2164 = vmatpush1.msra.mxu0 0.0
    %2165 = vmatprep.subr.mxu0 0.0
    %2166 = vmatpush1.msra.mxu0 0.0
    %2167 = vmatprep.mubr.f32.mxu0 0.0
    %2168 = vmatmul.mubr.f32.gmra.mrb[0].mxu0 %v2101
    %v2169 = vpop.f32.mrb[0].mxu0
    %v2170 = vadd.f32 0.0, %v2169
    %v2171 = vpop.f32.mrb[0].mxu0
    %2172 = vdwg.mxu0
    %v2173 = vadd.f32 %v2097, %v2170
    %v2174 = vxor.u32 %v2173, 2147483648
    %v2175 = vmul.f32 %v2174, 1.442695
    %v2176 = vpow.pop %v2175
    %v2177 = vadd.f32 %v2176, 1.0
    %v2178 = vrcp.pop %v2177
    %v2179 = vmul.f32 1.0, %v2178
    %v2180 = vtanh.pop %v2173
    %v2181 = vmul.f32 %v2179, %v2090
    %2183 = vrot.lane.b32.xlu0 %v2180, 64
    %v2184 = vpop.permute.xlu0 %2183
    %v2186 = vmul.f32 %v2179, %v2184
    %2188 = vrot.lane.b32.xlu0 %v2186, 32
    %v2189 = vpop.permute.xlu0 %2188
    %v2191 = vadd.f32 %v2181, %v2189
    %v2192 = vtanh.pop %v2191
    %2194 = vrot.lane.b32.xlu0 %v2192, 64
    %v2195 = vpop.permute.xlu0 %2194
    %v2197 = vmul.f32 %v2179, %v2195
    %2199 = vrot.lane.b32.xlu0 %v2197, 32
    %v2200 = vpop.permute.xlu0 %2199
    %2202 = vst.msk [vmem:[#allocation6] sm:$0x3] %vm438, %v2200
    %2204 = vrot.lane.b32.xlu0 %v2191, 96
    %v2205 = vpop.permute.xlu0 %2204
    %2207 = vst.msk [vmem:[#allocation7] sm:$0x3] %vm438, %v2205
    // Predicated region
    $region66: #{tpu_custom_call.1} parent=1 // pred_check
      %p2208 = pneg %p115
    $region67: #{tpu_custom_call.1} parent=1 // pred_check_branch
      %2210 = sbr.rel (%p2208) target = $region69
    $region68: #{tpu_custom_call.1} parent=1 // pred_region
      %v2211 = vld [vmem:[#allocation17] sm:$0xff]
      %v2212 = vld [vmem:[#allocation17 + $0x8] sm:$0xff]
      %v2213 = vld [vmem:[#allocation17 + $0x10] sm:$0xff]
      %v2214 = vld [vmem:[#allocation17 + $0x18] sm:$0xff]
      %v2215 = vld [vmem:[%s8] sm:$0x1]
      %v2217 = vlaneseq
      %v2218 = vshrl.u32 %v2217, 7
      %v2219 = vsub.s32 0, %v2218
      %v2220 = vrot.slane %v2215, %v2219
      %v2222 = vsel %vm331, %v2200, 0
      %2224 = vmatprep.subr.mxu0 0.0
      %2225 = vmatpush1.msra.mxu0 %v2211
      %2226 = vmatprep.subr.mxu0 0.0
      %2227 = vmatpush1.msra.mxu0 %v2212
      %2228 = vmatprep.subr.mxu0 0.0
      %2229 = vmatpush1.msra.mxu0 %v2213
      %2230 = vmatprep.subr.mxu0 0.0
      %2231 = vmatpush1.msra.mxu0 %v2214
      %2232 = vmatprep.subr.mxu0 0.0
      %2233 = vmatpush1.msra.mxu0 0.0
      %2234 = vmatprep.subr.mxu0 0.0
      %2235 = vmatpush1.msra.mxu0 0.0
      %2236 = vmatprep.subr.mxu0 0.0
      %2237 = vmatpush1.msra.mxu0 0.0
      %2238 = vmatprep.subr.mxu0 0.0
      %2239 = vmatpush1.msra.mxu0 0.0
      %2240 = vmatprep.subr.mxu0 0.0
      %2241 = vmatpush1.msra.mxu0 0.0
      %2242 = vmatprep.subr.mxu0 0.0
      %2243 = vmatpush1.msra.mxu0 0.0
      %2244 = vmatprep.subr.mxu0 0.0
      %2245 = vmatpush1.msra.mxu0 0.0
      %2246 = vmatprep.subr.mxu0 0.0
      %2247 = vmatpush1.msra.mxu0 0.0
      %2248 = vmatprep.subr.mxu0 0.0
      %2249 = vmatpush1.msra.mxu0 0.0
      %2250 = vmatprep.subr.mxu0 0.0
      %2251 = vmatpush1.msra.mxu0 0.0
      %2252 = vmatprep.subr.mxu0 0.0
      %2253 = vmatpush1.msra.mxu0 0.0
      %2254 = vmatprep.subr.mxu0 0.0
      %2255 = vmatpush1.msra.mxu0 0.0
      %2256 = vmatprep.subr.mxu0 0.0
      %2257 = vmatpush1.msra.mxu0 0.0
      %2258 = vmatprep.subr.mxu0 0.0
      %2259 = vmatpush1.msra.mxu0 0.0
      %2260 = vmatprep.subr.mxu0 0.0
      %2261 = vmatpush1.msra.mxu0 0.0
      %2262 = vmatprep.subr.mxu0 0.0
      %2263 = vmatpush1.msra.mxu0 0.0
      %2264 = vmatprep.subr.mxu0 0.0
      %2265 = vmatpush1.msra.mxu0 0.0
      %2266 = vmatprep.subr.mxu0 0.0
      %2267 = vmatpush1.msra.mxu0 0.0
      %2268 = vmatprep.subr.mxu0 0.0
      %2269 = vmatpush1.msra.mxu0 0.0
      %2270 = vmatprep.subr.mxu0 0.0
      %2271 = vmatpush1.msra.mxu0 0.0
      %2272 = vmatprep.subr.mxu0 0.0
      %2273 = vmatpush1.msra.mxu0 0.0
      %2274 = vmatprep.subr.mxu0 0.0
      %2275 = vmatpush1.msra.mxu0 0.0
      %2276 = vmatprep.subr.mxu0 0.0
      %2277 = vmatpush1.msra.mxu0 0.0
      %2278 = vmatprep.subr.mxu0 0.0
      %2279 = vmatpush1.msra.mxu0 0.0
      %2280 = vmatprep.subr.mxu0 0.0
      %2281 = vmatpush1.msra.mxu0 0.0
      %2282 = vmatprep.subr.mxu0 0.0
      %2283 = vmatpush1.msra.mxu0 0.0
      %2284 = vmatprep.subr.mxu0 0.0
      %2285 = vmatpush1.msra.mxu0 0.0
      %2286 = vmatprep.subr.mxu0 0.0
      %2287 = vmatpush1.msra.mxu0 0.0
      %2288 = vmatprep.mubr.f32.mxu0 0.0
      %2289 = vmatmul.mubr.f32.gmra.mrb[0].mxu0 %v2222
      %v2290 = vpop.f32.mrb[0].mxu0
      %v2291 = vadd.f32 %v2220, %v2290
      %v2292 = vpop.f32.mrb[0].mxu0
      %2293 = vdwg.mxu0
      %v2294 = vmax.f32 %v2291, 0.0
      %v2295 = vmul.f32 %v2294, %v2294
      %v2296 = vsel %vm438, %v2295, 0.0
      %2297 = vadd.xlane.f32.xlu0 %v2296
      %v2298 = vpop.xlane.xlu0 %2297
      %v2299 = vrsqrt.pop %v2298
      %v2300 = vmul.f32 %v2298, %v2299
      %vm2301 = vcmp.eq.f32.partialorder %v2298, inf
      %v2302 = vsel %vm2301, %v2298, %v2300
      %vm2303 = vcmp.eq.f32.partialorder %v2298, 0.0
      %v2304 = vand.u32 %v2298, 2147483648
      %v2305 = vsel %vm2303, %v2304, %v2302
      %v2306 = vadd.f32 %v2305, 1e-05
      %v2307 = vrcp.pop %v2306
      %v2308 = vmul.f32 %v2294, %v2307
      %2309 = vst.msk [vmem:[#allocation19] sm:$0x3] %vm438, %v2308
    $region69: #{tpu_custom_call.1} parent=1 // pred_fallthru
      _
    // Predicated region
    $region70: #{tpu_custom_call.1} parent=1 // pred_check
      _
    $region71: #{tpu_custom_call.1} parent=1 // pred_check_branch
      %2311 = sbr.rel (0) target = $region73
    $region72: #{tpu_custom_call.1} parent=1 // pred_region
      %s2313 = ssub.s32 32, 32
      %2314 = vsyncadd [#allocation10], %s2313
      %s2316 = sshll.u32 [#allocation19], 4
      %s2317 = int_to_ptr.vmem [resolvable:$true] %s2316
      %2319 = dma.vmem_to_hbm [thread:$0]  %s2317, 32, %s9, [#allocation10]
    $region73: #{tpu_custom_call.1} parent=1 // pred_fallthru
      _
    // Predicated region
    $region74: #{tpu_custom_call.1} parent=1 // pred_check
      _
    $region75: #{tpu_custom_call.1} parent=1 // pred_check_branch
      %2321 = sbr.rel (0) target = $region77
    $region76: #{tpu_custom_call.1} parent=1 // pred_region
      %2322 = dma.done [#allocation10], 32
    $region77: #{tpu_custom_call.1} parent=1 // pred_fallthru
      _
    %2323 = vsyncpa [#allocation9], 1
    %2324 = vsyncpa [#allocation12], 1
    %2325 = vsyncpa [#allocation15], 1
    %2326 = vsyncpa [#allocation18], 1
    %2327 = vsyncpa [#allocation10], 1

</llo_original>
